<compile_context>
chip_gen: v5e
topology: v5e:2x2
jax: 0.10.0
libtpu: 0.0.40
codegen_flags: <defaults>
</compile_context>

<pallas_src>
import numpy as np
import jax
import jax.numpy as jnp
from jax import lax
from jax.experimental import pallas as pl
from jax.experimental.pallas import tpu as pltpu


KH = KW = 4          # conv kernel size (all layers)
KPAD = 128           # lane-padded per-tap K block (A*Cin <= 128 everywhere)
EPS = 1e-5           # BatchNorm eps (PyTorch default)

# (A_in, Cin, Cout, stride, pad) per layer.
LAYER_CFG = (
    (32, 3, 8, 2, 1),     # L0: conv + bias + LeakyReLU
    (16, 8, 16, 2, 1),    # L1: conv + BN + LeakyReLU
    (8, 16, 32, 2, 1),    # L2: conv + BN + LeakyReLU
    (4, 32, 1, 1, 0),     # L3: conv + bias
)


def _out_size(a, s, p):
    return (a + 2 * p - KH) // s + 1


_B = tuple(_out_size(a, s, p) for (a, _, _, s, p) in LAYER_CFG)   # (16, 8, 4, 1)


# ----------------------------------------------------------------------------
# The single fused Pallas kernel
# ----------------------------------------------------------------------------
def _disc_fused_kernel(x_ref,
                       w0_ref, b0_ref,
                       w1_ref, sel1_ref, selt1_ref, g1_ref, be1_ref,
                       w2_ref, sel2_ref, selt2_ref, g2_ref, be2_ref,
                       w3_ref, b3_ref,
                       out_ref,
                       lhs0, lhs1, lhs2, lhs3):
    f32 = jnp.float32
    n = x_ref.shape[0]                      # batch size (static at trace time)
    (a0, c0i, _, s0, p0) = LAYER_CFG[0]
    (_, _, _, s1, p1) = LAYER_CFG[1]
    (_, _, _, s2, p2) = LAYER_CFG[2]
    (_, _, _, s3, p3) = LAYER_CFG[3]
    b0, b1, b2, b3 = _B

    # Zero the patch buffers once: conv-padding taps and the lane-padding of
    # layer 0 must read zeros (their weight rows handle the rest).
    lhs0[...] = jnp.zeros(lhs0.shape, f32)
    lhs1[...] = jnp.zeros(lhs1.shape, f32)
    lhs2[...] = jnp.zeros(lhs2.shape, f32)
    lhs3[...] = jnp.zeros(lhs3.shape, f32)

    def leaky(v):
        return jnp.where(v > 0, v, 0.2 * v)          # LeakyReLU(0.2)

    def scatter_rows(y_val, dst_ref, b_prev, b_next, stride, pad):
        # y_val: (b_prev*n, b_prev*c) previous-layer output, rows ordered
        # (oh, n), lanes ordered (ow, c) -> exactly the lane layout the next
        # layer's per-tap K blocks expect.  Pure static 2-row block copies.
        for ohn in range(b_next):
            for r in range(KH):
                src = stride * ohn + r - pad          # may hit H padding
                if 0 <= src < b_prev:
                    dst_ref[n * ohn:n * (ohn + 1),
                            KPAD * r:KPAD * (r + 1)] = (
                        y_val[n * src:n * (src + 1), :])

    def batchnorm_lrelu(y_val, sel_ref, selt_ref, g_ref, be_ref, count):
        # Training-mode BatchNorm2d: per-channel batch stats over (N, OH, OW),
        # biased variance (two-pass), affine folded into one FMA.  Channel
        # reduce/broadcast via 0/1 selection matmuls keeps everything
        # lane-dense.
        inv_cnt = 1.0 / count
        sum_c = jnp.dot(jnp.sum(y_val, axis=0, keepdims=True), sel_ref[...],
                        preferred_element_type=jnp.float32)       # (1, C)
        mean_c = sum_c * inv_cnt
        mean_l = jnp.dot(mean_c, selt_ref[...],
                         preferred_element_type=jnp.float32)      # (1, OW*C)
        cen = y_val - mean_l
        var_c = jnp.dot(jnp.sum(cen * cen, axis=0, keepdims=True), sel_ref[...],
                        preferred_element_type=jnp.float32) * inv_cnt
        var_l = jnp.dot(var_c, selt_ref[...],
                        preferred_element_type=jnp.float32)
        scale_l = g_ref[...] * lax.rsqrt(var_l + EPS)             # EUP rsqrt
        shift_l = be_ref[...] - mean_l * scale_l
        # TODO(synk): running_mean / running_var buffer updates (stateful
        # training-side BN buffers) are not materialized here.
        return leaky(y_val * scale_l + shift_l)

    # ---- layer 0: gather H-padded input rows into the patch buffer ---------
    w0lanes = a0 * c0i                                            # 96 lanes
    for oh in range(b0):
        for r in range(KH):
            lhs0[n * oh:n * (oh + 1), KPAD * r:KPAD * r + w0lanes] = (
                x_ref[:, s0 * oh + r, :])
    y = jnp.dot(lhs0[...], w0_ref[...], preferred_element_type=jnp.float32)
    y = leaky(y + b0_ref[...])                                    # (32, 128)

    # ---- layer 1 ------------------------------------------------------------
    scatter_rows(y, lhs1, b0, b1, s1, p1)
    y = jnp.dot(lhs1[...], w1_ref[...], preferred_element_type=jnp.float32)
    y = batchnorm_lrelu(y, sel1_ref, selt1_ref, g1_ref, be1_ref,
                        float(n * b1 * b1))                       # (16, 128)

    # ---- layer 2 ------------------------------------------------------------
    scatter_rows(y, lhs2, b1, b2, s2, p2)
    y = jnp.dot(lhs2[...], w2_ref[...], preferred_element_type=jnp.float32)
    y = batchnorm_lrelu(y, sel2_ref, selt2_ref, g2_ref, be2_ref,
                        float(n * b2 * b2))                       # (8, 128)

    # ---- layer 3: final 4x4 valid conv -> (N, 1) ----------------------------
    scatter_rows(y, lhs3, b2, b3, s3, p3)
    y = jnp.dot(lhs3[...], w3_ref[...], preferred_element_type=jnp.float32)
    out_ref[...] = y + b3_ref[...]                                # (N, 1)


# ----------------------------------------------------------------------------
# Host-side (numpy, one-time) parameter packing
# ----------------------------------------------------------------------------
def _build_banded_weight(wt_oihw, a, stride, pad):
    """Fold the W-direction im2col (incl. W zero padding) + stride into the
    weight.  Returns (KH*KPAD, B*Cout); row index = kh*KPAD + w*Cin + ci."""
    cout, cin, kh_, kw_ = wt_oihw.shape
    assert kh_ == KH and kw_ == KW and a * cin <= KPAD
    b = _out_size(a, stride, pad)
    wb = np.zeros((KH, KPAD, b, cout), np.float32)
    for kh in range(KH):
        for ow in range(b):
            for kw in range(KW):
                w_col = stride * ow + kw - pad
                if 0 <= w_col < a:
                    wb[kh, w_col * cin:(w_col + 1) * cin, ow, :] = (
                        wt_oihw[:, :, kh, kw].T)
    return wb.reshape(KH * KPAD, b * cout)


def make_params(key):
    """Deterministic params mirroring ConvDiscriminator.__init__
    (input_channels=3, dim=8, n_downsamplings=3, norm='batch_norm')."""
    keys = jax.random.split(key, 2 * len(LAYER_CFG))
    layers = []
    for i, (a, cin, cout, s, p) in enumerate(LAYER_CFG):
        w = np.asarray(jax.random.normal(keys[2 * i], (cout, cin, KH, KW),
                                         jnp.float32)) * 0.05
        has_bias = i in (0, 3)                  # BN layers use Conv(bias=False)
        bias = (np.asarray(jax.random.normal(keys[2 * i + 1], (cout,),
                                             jnp.float32)) * 0.05
                if has_bias else np.zeros((cout,), np.float32))
        layers.append(dict(w=w, b=bias,
                           gamma=np.ones((cout,), np.float32),   # BN init
                           beta=np.zeros((cout,), np.float32),
                           a=a, cin=cin, cout=cout, s=s, p=p,
                           bn=i in (1, 2), lrelu=i != 3))
    return layers


def pack_operands(layers):
    """Precompute the kernel's lane-dense operand set (no per-forward glue)."""
    l0, l1, l2, l3 = layers
    b0, b1, b2, _ = _B
    sel1 = np.tile(np.eye(l1['cout'], dtype=np.float32), (b1, 1))   # (128, 16)
    sel2 = np.tile(np.eye(l2['cout'], dtype=np.float32), (b2, 1))   # (128, 32)
    ops = [
        _build_banded_weight(l0['w'], l0['a'], l0['s'], l0['p']),   # (512,128)
        np.tile(l0['b'], b0)[None, :],                              # (1, 128)
        _build_banded_weight(l1['w'], l1['a'], l1['s'], l1['p']),   # (512,128)
        sel1,
        np.ascontiguousarray(sel1.T),                               # (16, 128)
        np.tile(l1['gamma'], b1)[None, :],                          # (1, 128)
        np.tile(l1['beta'], b1)[None, :],                           # (1, 128)
        _build_banded_weight(l2['w'], l2['a'], l2['s'], l2['p']),   # (512,128)
        sel2,
        np.ascontiguousarray(sel2.T),                               # (32, 128)
        np.tile(l2['gamma'], b2)[None, :],                          # (1, 128)
        np.tile(l2['beta'], b2)[None, :],                           # (1, 128)
        _build_banded_weight(l3['w'], l3['a'], l3['s'], l3['p']),   # (512, 1)
        l3['b'][None, :].astype(np.float32),                        # (1, 1)
    ]
    return [jnp.asarray(o) for o in ops]


# ----------------------------------------------------------------------------
# Wrapper
# ----------------------------------------------------------------------------
def _fused_forward_call(x_lane, operands):
    n = x_lane.shape[0]
    b0, b1, b2, b3 = _B
    flops = 2 * n * KH * KPAD * (b0 * 128 + b1 * 128 + b2 * 128 + b3 * 1)
    bytes_in = (int(x_lane.size) + sum(int(o.size) for o in operands) + n) * 4
    vmem = pl.BlockSpec(memory_space=pltpu.MemorySpace.VMEM)
    return pl.pallas_call(
        _disc_fused_kernel,
        out_shape=jax.ShapeDtypeStruct((n * b3, b3 * LAYER_CFG[3][2]),
                                       jnp.float32),
        in_specs=[vmem] * (1 + len(operands)),
        out_specs=vmem,
        scratch_shapes=[
            pltpu.VMEM((n * b0, KH * KPAD), jnp.float32),   # lhs0 (32, 512)
            pltpu.VMEM((n * b1, KH * KPAD), jnp.float32),   # lhs1 (16, 512)
            pltpu.VMEM((n * b2, KH * KPAD), jnp.float32),   # lhs2 ( 8, 512)
            pltpu.VMEM((n * b3, KH * KPAD), jnp.float32),   # lhs3 ( 2, 512)
        ],
        cost_estimate=pl.CostEstimate(flops=int(flops), transcendentals=256,
                                      bytes_accessed=int(bytes_in)),
    )(x_lane, *operands)


def conv_discriminator_forward(x_nchw, operands):
    n, c, h, w = x_nchw.shape
    # NCHW -> lane-dense rows (N, H, W*C), H padded by 1 (W padding is folded
    # into the banded weight matrices).  This is input formatting, not
    # per-layer glue.
    p0 = LAYER_CFG[0][4]
    x_lane = jnp.transpose(x_nchw, (0, 2, 3, 1)).reshape(n, h, w * c)
    x_lane = jnp.pad(x_lane.astype(jnp.float32), ((0, 0), (p0, p0), (0, 0)))
    y = _fused_forward_call(x_lane, operands)
    return y.reshape(n, 1, 1, 1)


# ----------------------------------------------------------------------------
# Pure-JAX reference (same math as the PyTorch module, training-mode BN)
# ----------------------------------------------------------------------------
def reference_forward(x_nchw, layers):
    y = x_nchw
    for lyr in layers:
        y = lax.conv_general_dilated(
            y, jnp.asarray(lyr['w']),
            window_strides=(lyr['s'], lyr['s']),
            padding=[(lyr['p'], lyr['p'])] * 2,
            dimension_numbers=('NCHW', 'OIHW', 'NCHW'),
            precision=lax.Precision.HIGHEST)
        if lyr['bn']:
            mean = jnp.mean(y, axis=(0, 2, 3), keepdims=True)
            var = jnp.mean((y - mean) ** 2, axis=(0, 2, 3), keepdims=True)
            y = (y - mean) * lax.rsqrt(var + EPS)
            y = (y * jnp.asarray(lyr['gamma']).reshape(1, -1, 1, 1)
                 + jnp.asarray(lyr['beta']).reshape(1, -1, 1, 1))
        else:
            y = y + jnp.asarray(lyr['b']).reshape(1, -1, 1, 1)
        if lyr['lrelu']:
            y = jnp.where(y > 0, y, 0.2 * y)
    return y


if __name__ == "__main__":
    key = jax.random.PRNGKey(0)
    k_param, k_input = jax.random.split(key)

    layers = make_params(k_param)
    operands = pack_operands(layers)
    x = jax.random.normal(k_input, (2, 3, 32, 32), jnp.float32)   # NCHW input

    fwd = jax.jit(lambda xx: conv_discriminator_forward(xx, operands))
    y = fwd(x)
    jax.block_until_ready(y)
    assert y.shape == (2, 1, 1, 1), y.shape

    # Sanity check against a pure-JAX reference of the same module.
    y_ref = reference_forward(x, layers)
    err = float(jnp.max(jnp.abs(y - y_ref)))
    assert err < 2e-2, f"kernel/reference mismatch: max abs err = {err}"
    print("KERNEL_OK")
</pallas_src>

<mosaic_0001>
module attributes {stable_mosaic.version = 11 : i64} {
  func.func @_disc_fused_kernel(%arg0: memref<2x34x96xf32, #tpu.memory_space<vmem>>, %arg1: memref<512x128xf32, #tpu.memory_space<vmem>>, %arg2: memref<1x128xf32, #tpu.memory_space<vmem>>, %arg3: memref<512x128xf32, #tpu.memory_space<vmem>>, %arg4: memref<128x16xf32, #tpu.memory_space<vmem>>, %arg5: memref<16x128xf32, #tpu.memory_space<vmem>>, %arg6: memref<1x128xf32, #tpu.memory_space<vmem>>, %arg7: memref<1x128xf32, #tpu.memory_space<vmem>>, %arg8: memref<512x128xf32, #tpu.memory_space<vmem>>, %arg9: memref<128x32xf32, #tpu.memory_space<vmem>>, %arg10: memref<32x128xf32, #tpu.memory_space<vmem>>, %arg11: memref<1x128xf32, #tpu.memory_space<vmem>>, %arg12: memref<1x128xf32, #tpu.memory_space<vmem>>, %arg13: memref<512x1xf32, #tpu.memory_space<vmem>>, %arg14: memref<1x1xf32, #tpu.memory_space<vmem>>, %arg15: memref<2x1xf32, #tpu.memory_space<vmem>>, %arg16: memref<32x512xf32, #tpu.memory_space<vmem>>, %arg17: memref<16x512xf32, #tpu.memory_space<vmem>>, %arg18: memref<8x512xf32, #tpu.memory_space<vmem>>, %arg19: memref<2x512xf32, #tpu.memory_space<vmem>>) attributes {dimension_semantics = [], scalar_prefetch = 0 : i64, scratch_operands = 4 : i64, tpu.core_type = #tpu.core_type<tc>} {
    %cst = arith.constant 0.000000e+00 : f32
    %0 = vector.broadcast %cst : f32 to vector<32x512xf32>
    %c0 = arith.constant 0 : index
    %c0_0 = arith.constant 0 : index
    %1 = vector.load %arg16[%c0, %c0_0] : memref<32x512xf32, #tpu.memory_space<vmem>>, vector<32x512xf32>
    tpu.vector_store %arg16[%c0, %c0_0], %0 {strides = array<i32>} : memref<32x512xf32, #tpu.memory_space<vmem>>, vector<32x512xf32>,
    %cst_1 = arith.constant 0.000000e+00 : f32
    %2 = vector.broadcast %cst_1 : f32 to vector<16x512xf32>
    %c0_2 = arith.constant 0 : index
    %c0_3 = arith.constant 0 : index
    %3 = vector.load %arg17[%c0_2, %c0_3] : memref<16x512xf32, #tpu.memory_space<vmem>>, vector<16x512xf32>
    tpu.vector_store %arg17[%c0_2, %c0_3], %2 {strides = array<i32>} : memref<16x512xf32, #tpu.memory_space<vmem>>, vector<16x512xf32>,
    %cst_4 = arith.constant 0.000000e+00 : f32
    %4 = vector.broadcast %cst_4 : f32 to vector<8x512xf32>
    %c0_5 = arith.constant 0 : index
    %c0_6 = arith.constant 0 : index
    %5 = vector.load %arg18[%c0_5, %c0_6] : memref<8x512xf32, #tpu.memory_space<vmem>>, vector<8x512xf32>
    tpu.vector_store %arg18[%c0_5, %c0_6], %4 {strides = array<i32>} : memref<8x512xf32, #tpu.memory_space<vmem>>, vector<8x512xf32>,
    %cst_7 = arith.constant 0.000000e+00 : f32
    %6 = vector.broadcast %cst_7 : f32 to vector<2x512xf32>
    %c0_8 = arith.constant 0 : index
    %c0_9 = arith.constant 0 : index
    %7 = vector.load %arg19[%c0_8, %c0_9] : memref<2x512xf32, #tpu.memory_space<vmem>>, vector<2x512xf32>
    tpu.vector_store %arg19[%c0_8, %c0_9], %6 {strides = array<i32>} : memref<2x512xf32, #tpu.memory_space<vmem>>, vector<2x512xf32>,
    %c0_10 = arith.constant 0 : index
    %c0_11 = arith.constant 0 : index
    %c0_12 = arith.constant 0 : index
    %8 = vector.load %arg0[%c0_10, %c0_11, %c0_12] : memref<2x34x96xf32, #tpu.memory_space<vmem>>, vector<2x1x96xf32>
    %9 = vector.shape_cast %8 : vector<2x1x96xf32> to vector<2x96xf32>
    %c0_13 = arith.constant 0 : index
    %c0_14 = arith.constant 0 : index
    %10 = vector.load %arg16[%c0_13, %c0_14] : memref<32x512xf32, #tpu.memory_space<vmem>>, vector<2x96xf32>
    tpu.vector_store %arg16[%c0_13, %c0_14], %9 {strides = array<i32>} : memref<32x512xf32, #tpu.memory_space<vmem>>, vector<2x96xf32>,
    %c0_15 = arith.constant 0 : index
    %c1 = arith.constant 1 : index
    %c0_16 = arith.constant 0 : index
    %11 = vector.load %arg0[%c0_15, %c1, %c0_16] : memref<2x34x96xf32, #tpu.memory_space<vmem>>, vector<2x1x96xf32>
    %12 = vector.shape_cast %11 : vector<2x1x96xf32> to vector<2x96xf32>
    %c0_17 = arith.constant 0 : index
    %c128 = arith.constant 128 : index
    %13 = vector.load %arg16[%c0_17, %c128] : memref<32x512xf32, #tpu.memory_space<vmem>>, vector<2x96xf32>
    tpu.vector_store %arg16[%c0_17, %c128], %12 {strides = array<i32>} : memref<32x512xf32, #tpu.memory_space<vmem>>, vector<2x96xf32>,
    %c0_18 = arith.constant 0 : index
    %c2 = arith.constant 2 : index
    %c0_19 = arith.constant 0 : index
    %14 = vector.load %arg0[%c0_18, %c2, %c0_19] : memref<2x34x96xf32, #tpu.memory_space<vmem>>, vector<2x1x96xf32>
    %15 = vector.shape_cast %14 : vector<2x1x96xf32> to vector<2x96xf32>
    %c0_20 = arith.constant 0 : index
    %c256 = arith.constant 256 : index
    %16 = vector.load %arg16[%c0_20, %c256] : memref<32x512xf32, #tpu.memory_space<vmem>>, vector<2x96xf32>
    tpu.vector_store %arg16[%c0_20, %c256], %15 {strides = array<i32>} : memref<32x512xf32, #tpu.memory_space<vmem>>, vector<2x96xf32>,
    %c0_21 = arith.constant 0 : index
    %c3 = arith.constant 3 : index
    %c0_22 = arith.constant 0 : index
    %17 = vector.load %arg0[%c0_21, %c3, %c0_22] : memref<2x34x96xf32, #tpu.memory_space<vmem>>, vector<2x1x96xf32>
    %18 = vector.shape_cast %17 : vector<2x1x96xf32> to vector<2x96xf32>
    %c0_23 = arith.constant 0 : index
    %c384 = arith.constant 384 : index
    %19 = vector.load %arg16[%c0_23, %c384] : memref<32x512xf32, #tpu.memory_space<vmem>>, vector<2x96xf32>
    tpu.vector_store %arg16[%c0_23, %c384], %18 {strides = array<i32>} : memref<32x512xf32, #tpu.memory_space<vmem>>, vector<2x96xf32>,
    %c0_24 = arith.constant 0 : index
    %c2_25 = arith.constant 2 : index
    %c0_26 = arith.constant 0 : index
    %20 = vector.load %arg0[%c0_24, %c2_25, %c0_26] : memref<2x34x96xf32, #tpu.memory_space<vmem>>, vector<2x1x96xf32>
    %21 = vector.shape_cast %20 : vector<2x1x96xf32> to vector<2x96xf32>
    %c2_27 = arith.constant 2 : index
    %c0_28 = arith.constant 0 : index
    %22 = vector.load %arg16[%c2_27, %c0_28] : memref<32x512xf32, #tpu.memory_space<vmem>>, vector<2x96xf32>
    tpu.vector_store %arg16[%c2_27, %c0_28], %21 {strides = array<i32>} : memref<32x512xf32, #tpu.memory_space<vmem>>, vector<2x96xf32>,
    %c0_29 = arith.constant 0 : index
    %c3_30 = arith.constant 3 : index
    %c0_31 = arith.constant 0 : index
    %23 = vector.load %arg0[%c0_29, %c3_30, %c0_31] : memref<2x34x96xf32, #tpu.memory_space<vmem>>, vector<2x1x96xf32>
    %24 = vector.shape_cast %23 : vector<2x1x96xf32> to vector<2x96xf32>
    %c2_32 = arith.constant 2 : index
    %c128_33 = arith.constant 128 : index
    %25 = vector.load %arg16[%c2_32, %c128_33] : memref<32x512xf32, #tpu.memory_space<vmem>>, vector<2x96xf32>
    tpu.vector_store %arg16[%c2_32, %c128_33], %24 {strides = array<i32>} : memref<32x512xf32, #tpu.memory_space<vmem>>, vector<2x96xf32>,
    %c0_34 = arith.constant 0 : index
    %c4 = arith.constant 4 : index
    %c0_35 = arith.constant 0 : index
    %26 = vector.load %arg0[%c0_34, %c4, %c0_35] : memref<2x34x96xf32, #tpu.memory_space<vmem>>, vector<2x1x96xf32>
    %27 = vector.shape_cast %26 : vector<2x1x96xf32> to vector<2x96xf32>
    %c2_36 = arith.constant 2 : index
    %c256_37 = arith.constant 256 : index
    %28 = vector.load %arg16[%c2_36, %c256_37] : memref<32x512xf32, #tpu.memory_space<vmem>>, vector<2x96xf32>
    tpu.vector_store %arg16[%c2_36, %c256_37], %27 {strides = array<i32>} : memref<32x512xf32, #tpu.memory_space<vmem>>, vector<2x96xf32>,
    %c0_38 = arith.constant 0 : index
    %c5 = arith.constant 5 : index
    %c0_39 = arith.constant 0 : index
    %29 = vector.load %arg0[%c0_38, %c5, %c0_39] : memref<2x34x96xf32, #tpu.memory_space<vmem>>, vector<2x1x96xf32>
    %30 = vector.shape_cast %29 : vector<2x1x96xf32> to vector<2x96xf32>
    %c2_40 = arith.constant 2 : index
    %c384_41 = arith.constant 384 : index
    %31 = vector.load %arg16[%c2_40, %c384_41] : memref<32x512xf32, #tpu.memory_space<vmem>>, vector<2x96xf32>
    tpu.vector_store %arg16[%c2_40, %c384_41], %30 {strides = array<i32>} : memref<32x512xf32, #tpu.memory_space<vmem>>, vector<2x96xf32>,
    %c0_42 = arith.constant 0 : index
    %c4_43 = arith.constant 4 : index
    %c0_44 = arith.constant 0 : index
    %32 = vector.load %arg0[%c0_42, %c4_43, %c0_44] : memref<2x34x96xf32, #tpu.memory_space<vmem>>, vector<2x1x96xf32>
    %33 = vector.shape_cast %32 : vector<2x1x96xf32> to vector<2x96xf32>
    %c4_45 = arith.constant 4 : index
    %c0_46 = arith.constant 0 : index
    %34 = vector.load %arg16[%c4_45, %c0_46] : memref<32x512xf32, #tpu.memory_space<vmem>>, vector<2x96xf32>
    tpu.vector_store %arg16[%c4_45, %c0_46], %33 {strides = array<i32>} : memref<32x512xf32, #tpu.memory_space<vmem>>, vector<2x96xf32>,
    %c0_47 = arith.constant 0 : index
    %c5_48 = arith.constant 5 : index
    %c0_49 = arith.constant 0 : index
    %35 = vector.load %arg0[%c0_47, %c5_48, %c0_49] : memref<2x34x96xf32, #tpu.memory_space<vmem>>, vector<2x1x96xf32>
    %36 = vector.shape_cast %35 : vector<2x1x96xf32> to vector<2x96xf32>
    %c4_50 = arith.constant 4 : index
    %c128_51 = arith.constant 128 : index
    %37 = vector.load %arg16[%c4_50, %c128_51] : memref<32x512xf32, #tpu.memory_space<vmem>>, vector<2x96xf32>
    tpu.vector_store %arg16[%c4_50, %c128_51], %36 {strides = array<i32>} : memref<32x512xf32, #tpu.memory_space<vmem>>, vector<2x96xf32>,
    %c0_52 = arith.constant 0 : index
    %c6 = arith.constant 6 : index
    %c0_53 = arith.constant 0 : index
    %38 = vector.load %arg0[%c0_52, %c6, %c0_53] : memref<2x34x96xf32, #tpu.memory_space<vmem>>, vector<2x1x96xf32>
    %39 = vector.shape_cast %38 : vector<2x1x96xf32> to vector<2x96xf32>
    %c4_54 = arith.constant 4 : index
    %c256_55 = arith.constant 256 : index
    %40 = vector.load %arg16[%c4_54, %c256_55] : memref<32x512xf32, #tpu.memory_space<vmem>>, vector<2x96xf32>
    tpu.vector_store %arg16[%c4_54, %c256_55], %39 {strides = array<i32>} : memref<32x512xf32, #tpu.memory_space<vmem>>, vector<2x96xf32>,
    %c0_56 = arith.constant 0 : index
    %c7 = arith.constant 7 : index
    %c0_57 = arith.constant 0 : index
    %41 = vector.load %arg0[%c0_56, %c7, %c0_57] : memref<2x34x96xf32, #tpu.memory_space<vmem>>, vector<2x1x96xf32>
    %42 = vector.shape_cast %41 : vector<2x1x96xf32> to vector<2x96xf32>
    %c4_58 = arith.constant 4 : index
    %c384_59 = arith.constant 384 : index
    %43 = vector.load %arg16[%c4_58, %c384_59] : memref<32x512xf32, #tpu.memory_space<vmem>>, vector<2x96xf32>
    tpu.vector_store %arg16[%c4_58, %c384_59], %42 {strides = array<i32>} : memref<32x512xf32, #tpu.memory_space<vmem>>, vector<2x96xf32>,
    %c0_60 = arith.constant 0 : index
    %c6_61 = arith.constant 6 : index
    %c0_62 = arith.constant 0 : index
    %44 = vector.load %arg0[%c0_60, %c6_61, %c0_62] : memref<2x34x96xf32, #tpu.memory_space<vmem>>, vector<2x1x96xf32>
    %45 = vector.shape_cast %44 : vector<2x1x96xf32> to vector<2x96xf32>
    %c6_63 = arith.constant 6 : index
    %c0_64 = arith.constant 0 : index
    %46 = vector.load %arg16[%c6_63, %c0_64] : memref<32x512xf32, #tpu.memory_space<vmem>>, vector<2x96xf32>
    tpu.vector_store %arg16[%c6_63, %c0_64], %45 {strides = array<i32>} : memref<32x512xf32, #tpu.memory_space<vmem>>, vector<2x96xf32>,
    %c0_65 = arith.constant 0 : index
    %c7_66 = arith.constant 7 : index
    %c0_67 = arith.constant 0 : index
    %47 = vector.load %arg0[%c0_65, %c7_66, %c0_67] : memref<2x34x96xf32, #tpu.memory_space<vmem>>, vector<2x1x96xf32>
    %48 = vector.shape_cast %47 : vector<2x1x96xf32> to vector<2x96xf32>
    %c6_68 = arith.constant 6 : index
    %c128_69 = arith.constant 128 : index
    %49 = vector.load %arg16[%c6_68, %c128_69] : memref<32x512xf32, #tpu.memory_space<vmem>>, vector<2x96xf32>
    tpu.vector_store %arg16[%c6_68, %c128_69], %48 {strides = array<i32>} : memref<32x512xf32, #tpu.memory_space<vmem>>, vector<2x96xf32>,
    %c0_70 = arith.constant 0 : index
    %c8 = arith.constant 8 : index
    %c0_71 = arith.constant 0 : index
    %50 = vector.load %arg0[%c0_70, %c8, %c0_71] : memref<2x34x96xf32, #tpu.memory_space<vmem>>, vector<2x1x96xf32>
    %51 = vector.shape_cast %50 : vector<2x1x96xf32> to vector<2x96xf32>
    %c6_72 = arith.constant 6 : index
    %c256_73 = arith.constant 256 : index
    %52 = vector.load %arg16[%c6_72, %c256_73] : memref<32x512xf32, #tpu.memory_space<vmem>>, vector<2x96xf32>
    tpu.vector_store %arg16[%c6_72, %c256_73], %51 {strides = array<i32>} : memref<32x512xf32, #tpu.memory_space<vmem>>, vector<2x96xf32>,
    %c0_74 = arith.constant 0 : index
    %c9 = arith.constant 9 : index
    %c0_75 = arith.constant 0 : index
    %53 = vector.load %arg0[%c0_74, %c9, %c0_75] : memref<2x34x96xf32, #tpu.memory_space<vmem>>, vector<2x1x96xf32>
    %54 = vector.shape_cast %53 : vector<2x1x96xf32> to vector<2x96xf32>
    %c6_76 = arith.constant 6 : index
    %c384_77 = arith.constant 384 : index
    %55 = vector.load %arg16[%c6_76, %c384_77] : memref<32x512xf32, #tpu.memory_space<vmem>>, vector<2x96xf32>
    tpu.vector_store %arg16[%c6_76, %c384_77], %54 {strides = array<i32>} : memref<32x512xf32, #tpu.memory_space<vmem>>, vector<2x96xf32>,
    %c0_78 = arith.constant 0 : index
    %c8_79 = arith.constant 8 : index
    %c0_80 = arith.constant 0 : index
    %56 = vector.load %arg0[%c0_78, %c8_79, %c0_80] : memref<2x34x96xf32, #tpu.memory_space<vmem>>, vector<2x1x96xf32>
    %57 = vector.shape_cast %56 : vector<2x1x96xf32> to vector<2x96xf32>
    %c8_81 = arith.constant 8 : index
    %c0_82 = arith.constant 0 : index
    %58 = vector.load %arg16[%c8_81, %c0_82] : memref<32x512xf32, #tpu.memory_space<vmem>>, vector<2x96xf32>
    tpu.vector_store %arg16[%c8_81, %c0_82], %57 {strides = array<i32>} : memref<32x512xf32, #tpu.memory_space<vmem>>, vector<2x96xf32>,
    %c0_83 = arith.constant 0 : index
    %c9_84 = arith.constant 9 : index
    %c0_85 = arith.constant 0 : index
    %59 = vector.load %arg0[%c0_83, %c9_84, %c0_85] : memref<2x34x96xf32, #tpu.memory_space<vmem>>, vector<2x1x96xf32>
    %60 = vector.shape_cast %59 : vector<2x1x96xf32> to vector<2x96xf32>
    %c8_86 = arith.constant 8 : index
    %c128_87 = arith.constant 128 : index
    %61 = vector.load %arg16[%c8_86, %c128_87] : memref<32x512xf32, #tpu.memory_space<vmem>>, vector<2x96xf32>
    tpu.vector_store %arg16[%c8_86, %c128_87], %60 {strides = array<i32>} : memref<32x512xf32, #tpu.memory_space<vmem>>, vector<2x96xf32>,
    %c0_88 = arith.constant 0 : index
    %c10 = arith.constant 10 : index
    %c0_89 = arith.constant 0 : index
    %62 = vector.load %arg0[%c0_88, %c10, %c0_89] : memref<2x34x96xf32, #tpu.memory_space<vmem>>, vector<2x1x96xf32>
    %63 = vector.shape_cast %62 : vector<2x1x96xf32> to vector<2x96xf32>
    %c8_90 = arith.constant 8 : index
    %c256_91 = arith.constant 256 : index
    %64 = vector.load %arg16[%c8_90, %c256_91] : memref<32x512xf32, #tpu.memory_space<vmem>>, vector<2x96xf32>
    tpu.vector_store %arg16[%c8_90, %c256_91], %63 {strides = array<i32>} : memref<32x512xf32, #tpu.memory_space<vmem>>, vector<2x96xf32>,
    %c0_92 = arith.constant 0 : index
    %c11 = arith.constant 11 : index
    %c0_93 = arith.constant 0 : index
    %65 = vector.load %arg0[%c0_92, %c11, %c0_93] : memref<2x34x96xf32, #tpu.memory_space<vmem>>, vector<2x1x96xf32>
    %66 = vector.shape_cast %65 : vector<2x1x96xf32> to vector<2x96xf32>
    %c8_94 = arith.constant 8 : index
    %c384_95 = arith.constant 384 : index
    %67 = vector.load %arg16[%c8_94, %c384_95] : memref<32x512xf32, #tpu.memory_space<vmem>>, vector<2x96xf32>
    tpu.vector_store %arg16[%c8_94, %c384_95], %66 {strides = array<i32>} : memref<32x512xf32, #tpu.memory_space<vmem>>, vector<2x96xf32>,
    %c0_96 = arith.constant 0 : index
    %c10_97 = arith.constant 10 : index
    %c0_98 = arith.constant 0 : index
    %68 = vector.load %arg0[%c0_96, %c10_97, %c0_98] : memref<2x34x96xf32, #tpu.memory_space<vmem>>, vector<2x1x96xf32>
    %69 = vector.shape_cast %68 : vector<2x1x96xf32> to vector<2x96xf32>
    %c10_99 = arith.constant 10 : index
    %c0_100 = arith.constant 0 : index
    %70 = vector.load %arg16[%c10_99, %c0_100] : memref<32x512xf32, #tpu.memory_space<vmem>>, vector<2x96xf32>
    tpu.vector_store %arg16[%c10_99, %c0_100], %69 {strides = array<i32>} : memref<32x512xf32, #tpu.memory_space<vmem>>, vector<2x96xf32>,
    %c0_101 = arith.constant 0 : index
    %c11_102 = arith.constant 11 : index
    %c0_103 = arith.constant 0 : index
    %71 = vector.load %arg0[%c0_101, %c11_102, %c0_103] : memref<2x34x96xf32, #tpu.memory_space<vmem>>, vector<2x1x96xf32>
    %72 = vector.shape_cast %71 : vector<2x1x96xf32> to vector<2x96xf32>
    %c10_104 = arith.constant 10 : index
    %c128_105 = arith.constant 128 : index
    %73 = vector.load %arg16[%c10_104, %c128_105] : memref<32x512xf32, #tpu.memory_space<vmem>>, vector<2x96xf32>
    tpu.vector_store %arg16[%c10_104, %c128_105], %72 {strides = array<i32>} : memref<32x512xf32, #tpu.memory_space<vmem>>, vector<2x96xf32>,
    %c0_106 = arith.constant 0 : index
    %c12 = arith.constant 12 : index
    %c0_107 = arith.constant 0 : index
    %74 = vector.load %arg0[%c0_106, %c12, %c0_107] : memref<2x34x96xf32, #tpu.memory_space<vmem>>, vector<2x1x96xf32>
    %75 = vector.shape_cast %74 : vector<2x1x96xf32> to vector<2x96xf32>
    %c10_108 = arith.constant 10 : index
    %c256_109 = arith.constant 256 : index
    %76 = vector.load %arg16[%c10_108, %c256_109] : memref<32x512xf32, #tpu.memory_space<vmem>>, vector<2x96xf32>
    tpu.vector_store %arg16[%c10_108, %c256_109], %75 {strides = array<i32>} : memref<32x512xf32, #tpu.memory_space<vmem>>, vector<2x96xf32>,
    %c0_110 = arith.constant 0 : index
    %c13 = arith.constant 13 : index
    %c0_111 = arith.constant 0 : index
    %77 = vector.load %arg0[%c0_110, %c13, %c0_111] : memref<2x34x96xf32, #tpu.memory_space<vmem>>, vector<2x1x96xf32>
    %78 = vector.shape_cast %77 : vector<2x1x96xf32> to vector<2x96xf32>
    %c10_112 = arith.constant 10 : index
    %c384_113 = arith.constant 384 : index
    %79 = vector.load %arg16[%c10_112, %c384_113] : memref<32x512xf32, #tpu.memory_space<vmem>>, vector<2x96xf32>
    tpu.vector_store %arg16[%c10_112, %c384_113], %78 {strides = array<i32>} : memref<32x512xf32, #tpu.memory_space<vmem>>, vector<2x96xf32>,
    %c0_114 = arith.constant 0 : index
    %c12_115 = arith.constant 12 : index
    %c0_116 = arith.constant 0 : index
    %80 = vector.load %arg0[%c0_114, %c12_115, %c0_116] : memref<2x34x96xf32, #tpu.memory_space<vmem>>, vector<2x1x96xf32>
    %81 = vector.shape_cast %80 : vector<2x1x96xf32> to vector<2x96xf32>
    %c12_117 = arith.constant 12 : index
    %c0_118 = arith.constant 0 : index
    %82 = vector.load %arg16[%c12_117, %c0_118] : memref<32x512xf32, #tpu.memory_space<vmem>>, vector<2x96xf32>
    tpu.vector_store %arg16[%c12_117, %c0_118], %81 {strides = array<i32>} : memref<32x512xf32, #tpu.memory_space<vmem>>, vector<2x96xf32>,
    %c0_119 = arith.constant 0 : index
    %c13_120 = arith.constant 13 : index
    %c0_121 = arith.constant 0 : index
    %83 = vector.load %arg0[%c0_119, %c13_120, %c0_121] : memref<2x34x96xf32, #tpu.memory_space<vmem>>, vector<2x1x96xf32>
    %84 = vector.shape_cast %83 : vector<2x1x96xf32> to vector<2x96xf32>
    %c12_122 = arith.constant 12 : index
    %c128_123 = arith.constant 128 : index
    %85 = vector.load %arg16[%c12_122, %c128_123] : memref<32x512xf32, #tpu.memory_space<vmem>>, vector<2x96xf32>
    tpu.vector_store %arg16[%c12_122, %c128_123], %84 {strides = array<i32>} : memref<32x512xf32, #tpu.memory_space<vmem>>, vector<2x96xf32>,
    %c0_124 = arith.constant 0 : index
    %c14 = arith.constant 14 : index
    %c0_125 = arith.constant 0 : index
    %86 = vector.load %arg0[%c0_124, %c14, %c0_125] : memref<2x34x96xf32, #tpu.memory_space<vmem>>, vector<2x1x96xf32>
    %87 = vector.shape_cast %86 : vector<2x1x96xf32> to vector<2x96xf32>
    %c12_126 = arith.constant 12 : index
    %c256_127 = arith.constant 256 : index
    %88 = vector.load %arg16[%c12_126, %c256_127] : memref<32x512xf32, #tpu.memory_space<vmem>>, vector<2x96xf32>
    tpu.vector_store %arg16[%c12_126, %c256_127], %87 {strides = array<i32>} : memref<32x512xf32, #tpu.memory_space<vmem>>, vector<2x96xf32>,
    %c0_128 = arith.constant 0 : index
    %c15 = arith.constant 15 : index
    %c0_129 = arith.constant 0 : index
    %89 = vector.load %arg0[%c0_128, %c15, %c0_129] : memref<2x34x96xf32, #tpu.memory_space<vmem>>, vector<2x1x96xf32>
    %90 = vector.shape_cast %89 : vector<2x1x96xf32> to vector<2x96xf32>
    %c12_130 = arith.constant 12 : index
    %c384_131 = arith.constant 384 : index
    %91 = vector.load %arg16[%c12_130, %c384_131] : memref<32x512xf32, #tpu.memory_space<vmem>>, vector<2x96xf32>
    tpu.vector_store %arg16[%c12_130, %c384_131], %90 {strides = array<i32>} : memref<32x512xf32, #tpu.memory_space<vmem>>, vector<2x96xf32>,
    %c0_132 = arith.constant 0 : index
    %c14_133 = arith.constant 14 : index
    %c0_134 = arith.constant 0 : index
    %92 = vector.load %arg0[%c0_132, %c14_133, %c0_134] : memref<2x34x96xf32, #tpu.memory_space<vmem>>, vector<2x1x96xf32>
    %93 = vector.shape_cast %92 : vector<2x1x96xf32> to vector<2x96xf32>
    %c14_135 = arith.constant 14 : index
    %c0_136 = arith.constant 0 : index
    %94 = vector.load %arg16[%c14_135, %c0_136] : memref<32x512xf32, #tpu.memory_space<vmem>>, vector<2x96xf32>
    tpu.vector_store %arg16[%c14_135, %c0_136], %93 {strides = array<i32>} : memref<32x512xf32, #tpu.memory_space<vmem>>, vector<2x96xf32>,
    %c0_137 = arith.constant 0 : index
    %c15_138 = arith.constant 15 : index
    %c0_139 = arith.constant 0 : index
    %95 = vector.load %arg0[%c0_137, %c15_138, %c0_139] : memref<2x34x96xf32, #tpu.memory_space<vmem>>, vector<2x1x96xf32>
    %96 = vector.shape_cast %95 : vector<2x1x96xf32> to vector<2x96xf32>
    %c14_140 = arith.constant 14 : index
    %c128_141 = arith.constant 128 : index
    %97 = vector.load %arg16[%c14_140, %c128_141] : memref<32x512xf32, #tpu.memory_space<vmem>>, vector<2x96xf32>
    tpu.vector_store %arg16[%c14_140, %c128_141], %96 {strides = array<i32>} : memref<32x512xf32, #tpu.memory_space<vmem>>, vector<2x96xf32>,
    %c0_142 = arith.constant 0 : index
    %c16 = arith.constant 16 : index
    %c0_143 = arith.constant 0 : index
    %98 = vector.load %arg0[%c0_142, %c16, %c0_143] : memref<2x34x96xf32, #tpu.memory_space<vmem>>, vector<2x1x96xf32>
    %99 = vector.shape_cast %98 : vector<2x1x96xf32> to vector<2x96xf32>
    %c14_144 = arith.constant 14 : index
    %c256_145 = arith.constant 256 : index
    %100 = vector.load %arg16[%c14_144, %c256_145] : memref<32x512xf32, #tpu.memory_space<vmem>>, vector<2x96xf32>
    tpu.vector_store %arg16[%c14_144, %c256_145], %99 {strides = array<i32>} : memref<32x512xf32, #tpu.memory_space<vmem>>, vector<2x96xf32>,
    %c0_146 = arith.constant 0 : index
    %c17 = arith.constant 17 : index
    %c0_147 = arith.constant 0 : index
    %101 = vector.load %arg0[%c0_146, %c17, %c0_147] : memref<2x34x96xf32, #tpu.memory_space<vmem>>, vector<2x1x96xf32>
    %102 = vector.shape_cast %101 : vector<2x1x96xf32> to vector<2x96xf32>
    %c14_148 = arith.constant 14 : index
    %c384_149 = arith.constant 384 : index
    %103 = vector.load %arg16[%c14_148, %c384_149] : memref<32x512xf32, #tpu.memory_space<vmem>>, vector<2x96xf32>
    tpu.vector_store %arg16[%c14_148, %c384_149], %102 {strides = array<i32>} : memref<32x512xf32, #tpu.memory_space<vmem>>, vector<2x96xf32>,
    %c0_150 = arith.constant 0 : index
    %c16_151 = arith.constant 16 : index
    %c0_152 = arith.constant 0 : index
    %104 = vector.load %arg0[%c0_150, %c16_151, %c0_152] : memref<2x34x96xf32, #tpu.memory_space<vmem>>, vector<2x1x96xf32>
    %105 = vector.shape_cast %104 : vector<2x1x96xf32> to vector<2x96xf32>
    %c16_153 = arith.constant 16 : index
    %c0_154 = arith.constant 0 : index
    %106 = vector.load %arg16[%c16_153, %c0_154] : memref<32x512xf32, #tpu.memory_space<vmem>>, vector<2x96xf32>
    tpu.vector_store %arg16[%c16_153, %c0_154], %105 {strides = array<i32>} : memref<32x512xf32, #tpu.memory_space<vmem>>, vector<2x96xf32>,
    %c0_155 = arith.constant 0 : index
    %c17_156 = arith.constant 17 : index
    %c0_157 = arith.constant 0 : index
    %107 = vector.load %arg0[%c0_155, %c17_156, %c0_157] : memref<2x34x96xf32, #tpu.memory_space<vmem>>, vector<2x1x96xf32>
    %108 = vector.shape_cast %107 : vector<2x1x96xf32> to vector<2x96xf32>
    %c16_158 = arith.constant 16 : index
    %c128_159 = arith.constant 128 : index
    %109 = vector.load %arg16[%c16_158, %c128_159] : memref<32x512xf32, #tpu.memory_space<vmem>>, vector<2x96xf32>
    tpu.vector_store %arg16[%c16_158, %c128_159], %108 {strides = array<i32>} : memref<32x512xf32, #tpu.memory_space<vmem>>, vector<2x96xf32>,
    %c0_160 = arith.constant 0 : index
    %c18 = arith.constant 18 : index
    %c0_161 = arith.constant 0 : index
    %110 = vector.load %arg0[%c0_160, %c18, %c0_161] : memref<2x34x96xf32, #tpu.memory_space<vmem>>, vector<2x1x96xf32>
    %111 = vector.shape_cast %110 : vector<2x1x96xf32> to vector<2x96xf32>
    %c16_162 = arith.constant 16 : index
    %c256_163 = arith.constant 256 : index
    %112 = vector.load %arg16[%c16_162, %c256_163] : memref<32x512xf32, #tpu.memory_space<vmem>>, vector<2x96xf32>
    tpu.vector_store %arg16[%c16_162, %c256_163], %111 {strides = array<i32>} : memref<32x512xf32, #tpu.memory_space<vmem>>, vector<2x96xf32>,
    %c0_164 = arith.constant 0 : index
    %c19 = arith.constant 19 : index
    %c0_165 = arith.constant 0 : index
    %113 = vector.load %arg0[%c0_164, %c19, %c0_165] : memref<2x34x96xf32, #tpu.memory_space<vmem>>, vector<2x1x96xf32>
    %114 = vector.shape_cast %113 : vector<2x1x96xf32> to vector<2x96xf32>
    %c16_166 = arith.constant 16 : index
    %c384_167 = arith.constant 384 : index
    %115 = vector.load %arg16[%c16_166, %c384_167] : memref<32x512xf32, #tpu.memory_space<vmem>>, vector<2x96xf32>
    tpu.vector_store %arg16[%c16_166, %c384_167], %114 {strides = array<i32>} : memref<32x512xf32, #tpu.memory_space<vmem>>, vector<2x96xf32>,
    %c0_168 = arith.constant 0 : index
    %c18_169 = arith.constant 18 : index
    %c0_170 = arith.constant 0 : index
    %116 = vector.load %arg0[%c0_168, %c18_169, %c0_170] : memref<2x34x96xf32, #tpu.memory_space<vmem>>, vector<2x1x96xf32>
    %117 = vector.shape_cast %116 : vector<2x1x96xf32> to vector<2x96xf32>
    %c18_171 = arith.constant 18 : index
    %c0_172 = arith.constant 0 : index
    %118 = vector.load %arg16[%c18_171, %c0_172] : memref<32x512xf32, #tpu.memory_space<vmem>>, vector<2x96xf32>
    tpu.vector_store %arg16[%c18_171, %c0_172], %117 {strides = array<i32>} : memref<32x512xf32, #tpu.memory_space<vmem>>, vector<2x96xf32>,
    %c0_173 = arith.constant 0 : index
    %c19_174 = arith.constant 19 : index
    %c0_175 = arith.constant 0 : index
    %119 = vector.load %arg0[%c0_173, %c19_174, %c0_175] : memref<2x34x96xf32, #tpu.memory_space<vmem>>, vector<2x1x96xf32>
    %120 = vector.shape_cast %119 : vector<2x1x96xf32> to vector<2x96xf32>
    %c18_176 = arith.constant 18 : index
    %c128_177 = arith.constant 128 : index
    %121 = vector.load %arg16[%c18_176, %c128_177] : memref<32x512xf32, #tpu.memory_space<vmem>>, vector<2x96xf32>
    tpu.vector_store %arg16[%c18_176, %c128_177], %120 {strides = array<i32>} : memref<32x512xf32, #tpu.memory_space<vmem>>, vector<2x96xf32>,
    %c0_178 = arith.constant 0 : index
    %c20 = arith.constant 20 : index
    %c0_179 = arith.constant 0 : index
    %122 = vector.load %arg0[%c0_178, %c20, %c0_179] : memref<2x34x96xf32, #tpu.memory_space<vmem>>, vector<2x1x96xf32>
    %123 = vector.shape_cast %122 : vector<2x1x96xf32> to vector<2x96xf32>
    %c18_180 = arith.constant 18 : index
    %c256_181 = arith.constant 256 : index
    %124 = vector.load %arg16[%c18_180, %c256_181] : memref<32x512xf32, #tpu.memory_space<vmem>>, vector<2x96xf32>
    tpu.vector_store %arg16[%c18_180, %c256_181], %123 {strides = array<i32>} : memref<32x512xf32, #tpu.memory_space<vmem>>, vector<2x96xf32>,
    %c0_182 = arith.constant 0 : index
    %c21 = arith.constant 21 : index
    %c0_183 = arith.constant 0 : index
    %125 = vector.load %arg0[%c0_182, %c21, %c0_183] : memref<2x34x96xf32, #tpu.memory_space<vmem>>, vector<2x1x96xf32>
    %126 = vector.shape_cast %125 : vector<2x1x96xf32> to vector<2x96xf32>
    %c18_184 = arith.constant 18 : index
    %c384_185 = arith.constant 384 : index
    %127 = vector.load %arg16[%c18_184, %c384_185] : memref<32x512xf32, #tpu.memory_space<vmem>>, vector<2x96xf32>
    tpu.vector_store %arg16[%c18_184, %c384_185], %126 {strides = array<i32>} : memref<32x512xf32, #tpu.memory_space<vmem>>, vector<2x96xf32>,
    %c0_186 = arith.constant 0 : index
    %c20_187 = arith.constant 20 : index
    %c0_188 = arith.constant 0 : index
    %128 = vector.load %arg0[%c0_186, %c20_187, %c0_188] : memref<2x34x96xf32, #tpu.memory_space<vmem>>, vector<2x1x96xf32>
    %129 = vector.shape_cast %128 : vector<2x1x96xf32> to vector<2x96xf32>
    %c20_189 = arith.constant 20 : index
    %c0_190 = arith.constant 0 : index
    %130 = vector.load %arg16[%c20_189, %c0_190] : memref<32x512xf32, #tpu.memory_space<vmem>>, vector<2x96xf32>
    tpu.vector_store %arg16[%c20_189, %c0_190], %129 {strides = array<i32>} : memref<32x512xf32, #tpu.memory_space<vmem>>, vector<2x96xf32>,
    %c0_191 = arith.constant 0 : index
    %c21_192 = arith.constant 21 : index
    %c0_193 = arith.constant 0 : index
    %131 = vector.load %arg0[%c0_191, %c21_192, %c0_193] : memref<2x34x96xf32, #tpu.memory_space<vmem>>, vector<2x1x96xf32>
    %132 = vector.shape_cast %131 : vector<2x1x96xf32> to vector<2x96xf32>
    %c20_194 = arith.constant 20 : index
    %c128_195 = arith.constant 128 : index
    %133 = vector.load %arg16[%c20_194, %c128_195] : memref<32x512xf32, #tpu.memory_space<vmem>>, vector<2x96xf32>
    tpu.vector_store %arg16[%c20_194, %c128_195], %132 {strides = array<i32>} : memref<32x512xf32, #tpu.memory_space<vmem>>, vector<2x96xf32>,
    %c0_196 = arith.constant 0 : index
    %c22 = arith.constant 22 : index
    %c0_197 = arith.constant 0 : index
    %134 = vector.load %arg0[%c0_196, %c22, %c0_197] : memref<2x34x96xf32, #tpu.memory_space<vmem>>, vector<2x1x96xf32>
    %135 = vector.shape_cast %134 : vector<2x1x96xf32> to vector<2x96xf32>
    %c20_198 = arith.constant 20 : index
    %c256_199 = arith.constant 256 : index
    %136 = vector.load %arg16[%c20_198, %c256_199] : memref<32x512xf32, #tpu.memory_space<vmem>>, vector<2x96xf32>
    tpu.vector_store %arg16[%c20_198, %c256_199], %135 {strides = array<i32>} : memref<32x512xf32, #tpu.memory_space<vmem>>, vector<2x96xf32>,
    %c0_200 = arith.constant 0 : index
    %c23 = arith.constant 23 : index
    %c0_201 = arith.constant 0 : index
    %137 = vector.load %arg0[%c0_200, %c23, %c0_201] : memref<2x34x96xf32, #tpu.memory_space<vmem>>, vector<2x1x96xf32>
    %138 = vector.shape_cast %137 : vector<2x1x96xf32> to vector<2x96xf32>
    %c20_202 = arith.constant 20 : index
    %c384_203 = arith.constant 384 : index
    %139 = vector.load %arg16[%c20_202, %c384_203] : memref<32x512xf32, #tpu.memory_space<vmem>>, vector<2x96xf32>
    tpu.vector_store %arg16[%c20_202, %c384_203], %138 {strides = array<i32>} : memref<32x512xf32, #tpu.memory_space<vmem>>, vector<2x96xf32>,
    %c0_204 = arith.constant 0 : index
    %c22_205 = arith.constant 22 : index
    %c0_206 = arith.constant 0 : index
    %140 = vector.load %arg0[%c0_204, %c22_205, %c0_206] : memref<2x34x96xf32, #tpu.memory_space<vmem>>, vector<2x1x96xf32>
    %141 = vector.shape_cast %140 : vector<2x1x96xf32> to vector<2x96xf32>
    %c22_207 = arith.constant 22 : index
    %c0_208 = arith.constant 0 : index
    %142 = vector.load %arg16[%c22_207, %c0_208] : memref<32x512xf32, #tpu.memory_space<vmem>>, vector<2x96xf32>
    tpu.vector_store %arg16[%c22_207, %c0_208], %141 {strides = array<i32>} : memref<32x512xf32, #tpu.memory_space<vmem>>, vector<2x96xf32>,
    %c0_209 = arith.constant 0 : index
    %c23_210 = arith.constant 23 : index
    %c0_211 = arith.constant 0 : index
    %143 = vector.load %arg0[%c0_209, %c23_210, %c0_211] : memref<2x34x96xf32, #tpu.memory_space<vmem>>, vector<2x1x96xf32>
    %144 = vector.shape_cast %143 : vector<2x1x96xf32> to vector<2x96xf32>
    %c22_212 = arith.constant 22 : index
    %c128_213 = arith.constant 128 : index
    %145 = vector.load %arg16[%c22_212, %c128_213] : memref<32x512xf32, #tpu.memory_space<vmem>>, vector<2x96xf32>
    tpu.vector_store %arg16[%c22_212, %c128_213], %144 {strides = array<i32>} : memref<32x512xf32, #tpu.memory_space<vmem>>, vector<2x96xf32>,
    %c0_214 = arith.constant 0 : index
    %c24 = arith.constant 24 : index
    %c0_215 = arith.constant 0 : index
    %146 = vector.load %arg0[%c0_214, %c24, %c0_215] : memref<2x34x96xf32, #tpu.memory_space<vmem>>, vector<2x1x96xf32>
    %147 = vector.shape_cast %146 : vector<2x1x96xf32> to vector<2x96xf32>
    %c22_216 = arith.constant 22 : index
    %c256_217 = arith.constant 256 : index
    %148 = vector.load %arg16[%c22_216, %c256_217] : memref<32x512xf32, #tpu.memory_space<vmem>>, vector<2x96xf32>
    tpu.vector_store %arg16[%c22_216, %c256_217], %147 {strides = array<i32>} : memref<32x512xf32, #tpu.memory_space<vmem>>, vector<2x96xf32>,
    %c0_218 = arith.constant 0 : index
    %c25 = arith.constant 25 : index
    %c0_219 = arith.constant 0 : index
    %149 = vector.load %arg0[%c0_218, %c25, %c0_219] : memref<2x34x96xf32, #tpu.memory_space<vmem>>, vector<2x1x96xf32>
    %150 = vector.shape_cast %149 : vector<2x1x96xf32> to vector<2x96xf32>
    %c22_220 = arith.constant 22 : index
    %c384_221 = arith.constant 384 : index
    %151 = vector.load %arg16[%c22_220, %c384_221] : memref<32x512xf32, #tpu.memory_space<vmem>>, vector<2x96xf32>
    tpu.vector_store %arg16[%c22_220, %c384_221], %150 {strides = array<i32>} : memref<32x512xf32, #tpu.memory_space<vmem>>, vector<2x96xf32>,
    %c0_222 = arith.constant 0 : index
    %c24_223 = arith.constant 24 : index
    %c0_224 = arith.constant 0 : index
    %152 = vector.load %arg0[%c0_222, %c24_223, %c0_224] : memref<2x34x96xf32, #tpu.memory_space<vmem>>, vector<2x1x96xf32>
    %153 = vector.shape_cast %152 : vector<2x1x96xf32> to vector<2x96xf32>
    %c24_225 = arith.constant 24 : index
    %c0_226 = arith.constant 0 : index
    %154 = vector.load %arg16[%c24_225, %c0_226] : memref<32x512xf32, #tpu.memory_space<vmem>>, vector<2x96xf32>
    tpu.vector_store %arg16[%c24_225, %c0_226], %153 {strides = array<i32>} : memref<32x512xf32, #tpu.memory_space<vmem>>, vector<2x96xf32>,
    %c0_227 = arith.constant 0 : index
    %c25_228 = arith.constant 25 : index
    %c0_229 = arith.constant 0 : index
    %155 = vector.load %arg0[%c0_227, %c25_228, %c0_229] : memref<2x34x96xf32, #tpu.memory_space<vmem>>, vector<2x1x96xf32>
    %156 = vector.shape_cast %155 : vector<2x1x96xf32> to vector<2x96xf32>
    %c24_230 = arith.constant 24 : index
    %c128_231 = arith.constant 128 : index
    %157 = vector.load %arg16[%c24_230, %c128_231] : memref<32x512xf32, #tpu.memory_space<vmem>>, vector<2x96xf32>
    tpu.vector_store %arg16[%c24_230, %c128_231], %156 {strides = array<i32>} : memref<32x512xf32, #tpu.memory_space<vmem>>, vector<2x96xf32>,
    %c0_232 = arith.constant 0 : index
    %c26 = arith.constant 26 : index
    %c0_233 = arith.constant 0 : index
    %158 = vector.load %arg0[%c0_232, %c26, %c0_233] : memref<2x34x96xf32, #tpu.memory_space<vmem>>, vector<2x1x96xf32>
    %159 = vector.shape_cast %158 : vector<2x1x96xf32> to vector<2x96xf32>
    %c24_234 = arith.constant 24 : index
    %c256_235 = arith.constant 256 : index
    %160 = vector.load %arg16[%c24_234, %c256_235] : memref<32x512xf32, #tpu.memory_space<vmem>>, vector<2x96xf32>
    tpu.vector_store %arg16[%c24_234, %c256_235], %159 {strides = array<i32>} : memref<32x512xf32, #tpu.memory_space<vmem>>, vector<2x96xf32>,
    %c0_236 = arith.constant 0 : index
    %c27 = arith.constant 27 : index
    %c0_237 = arith.constant 0 : index
    %161 = vector.load %arg0[%c0_236, %c27, %c0_237] : memref<2x34x96xf32, #tpu.memory_space<vmem>>, vector<2x1x96xf32>
    %162 = vector.shape_cast %161 : vector<2x1x96xf32> to vector<2x96xf32>
    %c24_238 = arith.constant 24 : index
    %c384_239 = arith.constant 384 : index
    %163 = vector.load %arg16[%c24_238, %c384_239] : memref<32x512xf32, #tpu.memory_space<vmem>>, vector<2x96xf32>
    tpu.vector_store %arg16[%c24_238, %c384_239], %162 {strides = array<i32>} : memref<32x512xf32, #tpu.memory_space<vmem>>, vector<2x96xf32>,
    %c0_240 = arith.constant 0 : index
    %c26_241 = arith.constant 26 : index
    %c0_242 = arith.constant 0 : index
    %164 = vector.load %arg0[%c0_240, %c26_241, %c0_242] : memref<2x34x96xf32, #tpu.memory_space<vmem>>, vector<2x1x96xf32>
    %165 = vector.shape_cast %164 : vector<2x1x96xf32> to vector<2x96xf32>
    %c26_243 = arith.constant 26 : index
    %c0_244 = arith.constant 0 : index
    %166 = vector.load %arg16[%c26_243, %c0_244] : memref<32x512xf32, #tpu.memory_space<vmem>>, vector<2x96xf32>
    tpu.vector_store %arg16[%c26_243, %c0_244], %165 {strides = array<i32>} : memref<32x512xf32, #tpu.memory_space<vmem>>, vector<2x96xf32>,
    %c0_245 = arith.constant 0 : index
    %c27_246 = arith.constant 27 : index
    %c0_247 = arith.constant 0 : index
    %167 = vector.load %arg0[%c0_245, %c27_246, %c0_247] : memref<2x34x96xf32, #tpu.memory_space<vmem>>, vector<2x1x96xf32>
    %168 = vector.shape_cast %167 : vector<2x1x96xf32> to vector<2x96xf32>
    %c26_248 = arith.constant 26 : index
    %c128_249 = arith.constant 128 : index
    %169 = vector.load %arg16[%c26_248, %c128_249] : memref<32x512xf32, #tpu.memory_space<vmem>>, vector<2x96xf32>
    tpu.vector_store %arg16[%c26_248, %c128_249], %168 {strides = array<i32>} : memref<32x512xf32, #tpu.memory_space<vmem>>, vector<2x96xf32>,
    %c0_250 = arith.constant 0 : index
    %c28 = arith.constant 28 : index
    %c0_251 = arith.constant 0 : index
    %170 = vector.load %arg0[%c0_250, %c28, %c0_251] : memref<2x34x96xf32, #tpu.memory_space<vmem>>, vector<2x1x96xf32>
    %171 = vector.shape_cast %170 : vector<2x1x96xf32> to vector<2x96xf32>
    %c26_252 = arith.constant 26 : index
    %c256_253 = arith.constant 256 : index
    %172 = vector.load %arg16[%c26_252, %c256_253] : memref<32x512xf32, #tpu.memory_space<vmem>>, vector<2x96xf32>
    tpu.vector_store %arg16[%c26_252, %c256_253], %171 {strides = array<i32>} : memref<32x512xf32, #tpu.memory_space<vmem>>, vector<2x96xf32>,
    %c0_254 = arith.constant 0 : index
    %c29 = arith.constant 29 : index
    %c0_255 = arith.constant 0 : index
    %173 = vector.load %arg0[%c0_254, %c29, %c0_255] : memref<2x34x96xf32, #tpu.memory_space<vmem>>, vector<2x1x96xf32>
    %174 = vector.shape_cast %173 : vector<2x1x96xf32> to vector<2x96xf32>
    %c26_256 = arith.constant 26 : index
    %c384_257 = arith.constant 384 : index
    %175 = vector.load %arg16[%c26_256, %c384_257] : memref<32x512xf32, #tpu.memory_space<vmem>>, vector<2x96xf32>
    tpu.vector_store %arg16[%c26_256, %c384_257], %174 {strides = array<i32>} : memref<32x512xf32, #tpu.memory_space<vmem>>, vector<2x96xf32>,
    %c0_258 = arith.constant 0 : index
    %c28_259 = arith.constant 28 : index
    %c0_260 = arith.constant 0 : index
    %176 = vector.load %arg0[%c0_258, %c28_259, %c0_260] : memref<2x34x96xf32, #tpu.memory_space<vmem>>, vector<2x1x96xf32>
    %177 = vector.shape_cast %176 : vector<2x1x96xf32> to vector<2x96xf32>
    %c28_261 = arith.constant 28 : index
    %c0_262 = arith.constant 0 : index
    %178 = vector.load %arg16[%c28_261, %c0_262] : memref<32x512xf32, #tpu.memory_space<vmem>>, vector<2x96xf32>
    tpu.vector_store %arg16[%c28_261, %c0_262], %177 {strides = array<i32>} : memref<32x512xf32, #tpu.memory_space<vmem>>, vector<2x96xf32>,
    %c0_263 = arith.constant 0 : index
    %c29_264 = arith.constant 29 : index
    %c0_265 = arith.constant 0 : index
    %179 = vector.load %arg0[%c0_263, %c29_264, %c0_265] : memref<2x34x96xf32, #tpu.memory_space<vmem>>, vector<2x1x96xf32>
    %180 = vector.shape_cast %179 : vector<2x1x96xf32> to vector<2x96xf32>
    %c28_266 = arith.constant 28 : index
    %c128_267 = arith.constant 128 : index
    %181 = vector.load %arg16[%c28_266, %c128_267] : memref<32x512xf32, #tpu.memory_space<vmem>>, vector<2x96xf32>
    tpu.vector_store %arg16[%c28_266, %c128_267], %180 {strides = array<i32>} : memref<32x512xf32, #tpu.memory_space<vmem>>, vector<2x96xf32>,
    %c0_268 = arith.constant 0 : index
    %c30 = arith.constant 30 : index
    %c0_269 = arith.constant 0 : index
    %182 = vector.load %arg0[%c0_268, %c30, %c0_269] : memref<2x34x96xf32, #tpu.memory_space<vmem>>, vector<2x1x96xf32>
    %183 = vector.shape_cast %182 : vector<2x1x96xf32> to vector<2x96xf32>
    %c28_270 = arith.constant 28 : index
    %c256_271 = arith.constant 256 : index
    %184 = vector.load %arg16[%c28_270, %c256_271] : memref<32x512xf32, #tpu.memory_space<vmem>>, vector<2x96xf32>
    tpu.vector_store %arg16[%c28_270, %c256_271], %183 {strides = array<i32>} : memref<32x512xf32, #tpu.memory_space<vmem>>, vector<2x96xf32>,
    %c0_272 = arith.constant 0 : index
    %c31 = arith.constant 31 : index
    %c0_273 = arith.constant 0 : index
    %185 = vector.load %arg0[%c0_272, %c31, %c0_273] : memref<2x34x96xf32, #tpu.memory_space<vmem>>, vector<2x1x96xf32>
    %186 = vector.shape_cast %185 : vector<2x1x96xf32> to vector<2x96xf32>
    %c28_274 = arith.constant 28 : index
    %c384_275 = arith.constant 384 : index
    %187 = vector.load %arg16[%c28_274, %c384_275] : memref<32x512xf32, #tpu.memory_space<vmem>>, vector<2x96xf32>
    tpu.vector_store %arg16[%c28_274, %c384_275], %186 {strides = array<i32>} : memref<32x512xf32, #tpu.memory_space<vmem>>, vector<2x96xf32>,
    %c0_276 = arith.constant 0 : index
    %c30_277 = arith.constant 30 : index
    %c0_278 = arith.constant 0 : index
    %188 = vector.load %arg0[%c0_276, %c30_277, %c0_278] : memref<2x34x96xf32, #tpu.memory_space<vmem>>, vector<2x1x96xf32>
    %189 = vector.shape_cast %188 : vector<2x1x96xf32> to vector<2x96xf32>
    %c30_279 = arith.constant 30 : index
    %c0_280 = arith.constant 0 : index
    %190 = vector.load %arg16[%c30_279, %c0_280] : memref<32x512xf32, #tpu.memory_space<vmem>>, vector<2x96xf32>
    tpu.vector_store %arg16[%c30_279, %c0_280], %189 {strides = array<i32>} : memref<32x512xf32, #tpu.memory_space<vmem>>, vector<2x96xf32>,
    %c0_281 = arith.constant 0 : index
    %c31_282 = arith.constant 31 : index
    %c0_283 = arith.constant 0 : index
    %191 = vector.load %arg0[%c0_281, %c31_282, %c0_283] : memref<2x34x96xf32, #tpu.memory_space<vmem>>, vector<2x1x96xf32>
    %192 = vector.shape_cast %191 : vector<2x1x96xf32> to vector<2x96xf32>
    %c30_284 = arith.constant 30 : index
    %c128_285 = arith.constant 128 : index
    %193 = vector.load %arg16[%c30_284, %c128_285] : memref<32x512xf32, #tpu.memory_space<vmem>>, vector<2x96xf32>
    tpu.vector_store %arg16[%c30_284, %c128_285], %192 {strides = array<i32>} : memref<32x512xf32, #tpu.memory_space<vmem>>, vector<2x96xf32>,
    %c0_286 = arith.constant 0 : index
    %c32 = arith.constant 32 : index
    %c0_287 = arith.constant 0 : index
    %194 = vector.load %arg0[%c0_286, %c32, %c0_287] : memref<2x34x96xf32, #tpu.memory_space<vmem>>, vector<2x1x96xf32>
    %195 = vector.shape_cast %194 : vector<2x1x96xf32> to vector<2x96xf32>
    %c30_288 = arith.constant 30 : index
    %c256_289 = arith.constant 256 : index
    %196 = vector.load %arg16[%c30_288, %c256_289] : memref<32x512xf32, #tpu.memory_space<vmem>>, vector<2x96xf32>
    tpu.vector_store %arg16[%c30_288, %c256_289], %195 {strides = array<i32>} : memref<32x512xf32, #tpu.memory_space<vmem>>, vector<2x96xf32>,
    %c0_290 = arith.constant 0 : index
    %c33 = arith.constant 33 : index
    %c0_291 = arith.constant 0 : index
    %197 = vector.load %arg0[%c0_290, %c33, %c0_291] : memref<2x34x96xf32, #tpu.memory_space<vmem>>, vector<2x1x96xf32>
    %198 = vector.shape_cast %197 : vector<2x1x96xf32> to vector<2x96xf32>
    %c30_292 = arith.constant 30 : index
    %c384_293 = arith.constant 384 : index
    %199 = vector.load %arg16[%c30_292, %c384_293] : memref<32x512xf32, #tpu.memory_space<vmem>>, vector<2x96xf32>
    tpu.vector_store %arg16[%c30_292, %c384_293], %198 {strides = array<i32>} : memref<32x512xf32, #tpu.memory_space<vmem>>, vector<2x96xf32>,
    %c0_294 = arith.constant 0 : index
    %c0_295 = arith.constant 0 : index
    %200 = vector.load %arg16[%c0_294, %c0_295] : memref<32x512xf32, #tpu.memory_space<vmem>>, vector<32x512xf32>
    %c0_296 = arith.constant 0 : index
    %c0_297 = arith.constant 0 : index
    %201 = vector.load %arg1[%c0_296, %c0_297] : memref<512x128xf32, #tpu.memory_space<vmem>>, vector<512x128xf32>
    %cst_298 = arith.constant dense<0.000000e+00> : vector<32x128xf32>
    %202 = tpu.matmul %200, %201, %cst_298 {dimension_numbers = #tpu.dot_dimension_numbers<[1], [0], [0], [1], [0, 0, 1, 1], [], []>} : vector<32x512xf32>, vector<512x128xf32>, vector<32x128xf32> -> vector<32x128xf32>
    %c0_299 = arith.constant 0 : index
    %c0_300 = arith.constant 0 : index
    %203 = vector.load %arg2[%c0_299, %c0_300] : memref<1x128xf32, #tpu.memory_space<vmem>>, vector<1x128xf32>
    %204 = vector.broadcast %203 : vector<1x128xf32> to vector<32x128xf32>
    %205 = arith.addf %202, %204 : vector<32x128xf32>
    %cst_301 = arith.constant 0.000000e+00 : f32
    %206 = vector.broadcast %cst_301 : f32 to vector<32x128xf32>
    %207 = arith.cmpf ogt, %205, %206 : vector<32x128xf32>
    %cst_302 = arith.constant 2.000000e-01 : f32
    %208 = vector.broadcast %cst_302 : f32 to vector<32x128xf32>
    %209 = arith.mulf %208, %205 : vector<32x128xf32>
    %210 = arith.select %207, %205, %209 : vector<32x128xi1>, vector<32x128xf32>
    %211 = vector.extract_strided_slice %210 {offsets = [0, 0], sizes = [2, 128], strides = [1, 1]} : vector<32x128xf32> to vector<2x128xf32>
    %c0_303 = arith.constant 0 : index
    %c128_304 = arith.constant 128 : index
    %212 = vector.load %arg17[%c0_303, %c128_304] : memref<16x512xf32, #tpu.memory_space<vmem>>, vector<2x128xf32>
    tpu.vector_store %arg17[%c0_303, %c128_304], %211 {strides = array<i32>} : memref<16x512xf32, #tpu.memory_space<vmem>>, vector<2x128xf32>,
    %213 = vector.extract_strided_slice %210 {offsets = [2, 0], sizes = [2, 128], strides = [1, 1]} : vector<32x128xf32> to vector<2x128xf32>
    %c0_305 = arith.constant 0 : index
    %c256_306 = arith.constant 256 : index
    %214 = vector.load %arg17[%c0_305, %c256_306] : memref<16x512xf32, #tpu.memory_space<vmem>>, vector<2x128xf32>
    tpu.vector_store %arg17[%c0_305, %c256_306], %213 {strides = array<i32>} : memref<16x512xf32, #tpu.memory_space<vmem>>, vector<2x128xf32>,
    %215 = vector.extract_strided_slice %210 {offsets = [4, 0], sizes = [2, 128], strides = [1, 1]} : vector<32x128xf32> to vector<2x128xf32>
    %c0_307 = arith.constant 0 : index
    %c384_308 = arith.constant 384 : index
    %216 = vector.load %arg17[%c0_307, %c384_308] : memref<16x512xf32, #tpu.memory_space<vmem>>, vector<2x128xf32>
    tpu.vector_store %arg17[%c0_307, %c384_308], %215 {strides = array<i32>} : memref<16x512xf32, #tpu.memory_space<vmem>>, vector<2x128xf32>,
    %217 = vector.extract_strided_slice %210 {offsets = [2, 0], sizes = [2, 128], strides = [1, 1]} : vector<32x128xf32> to vector<2x128xf32>
    %c2_309 = arith.constant 2 : index
    %c0_310 = arith.constant 0 : index
    %218 = vector.load %arg17[%c2_309, %c0_310] : memref<16x512xf32, #tpu.memory_space<vmem>>, vector<2x128xf32>
    tpu.vector_store %arg17[%c2_309, %c0_310], %217 {strides = array<i32>} : memref<16x512xf32, #tpu.memory_space<vmem>>, vector<2x128xf32>,
    %219 = vector.extract_strided_slice %210 {offsets = [4, 0], sizes = [2, 128], strides = [1, 1]} : vector<32x128xf32> to vector<2x128xf32>
    %c2_311 = arith.constant 2 : index
    %c128_312 = arith.constant 128 : index
    %220 = vector.load %arg17[%c2_311, %c128_312] : memref<16x512xf32, #tpu.memory_space<vmem>>, vector<2x128xf32>
    tpu.vector_store %arg17[%c2_311, %c128_312], %219 {strides = array<i32>} : memref<16x512xf32, #tpu.memory_space<vmem>>, vector<2x128xf32>,
    %221 = vector.extract_strided_slice %210 {offsets = [6, 0], sizes = [2, 128], strides = [1, 1]} : vector<32x128xf32> to vector<2x128xf32>
    %c2_313 = arith.constant 2 : index
    %c256_314 = arith.constant 256 : index
    %222 = vector.load %arg17[%c2_313, %c256_314] : memref<16x512xf32, #tpu.memory_space<vmem>>, vector<2x128xf32>
    tpu.vector_store %arg17[%c2_313, %c256_314], %221 {strides = array<i32>} : memref<16x512xf32, #tpu.memory_space<vmem>>, vector<2x128xf32>,
    %223 = vector.extract_strided_slice %210 {offsets = [8, 0], sizes = [2, 128], strides = [1, 1]} : vector<32x128xf32> to vector<2x128xf32>
    %c2_315 = arith.constant 2 : index
    %c384_316 = arith.constant 384 : index
    %224 = vector.load %arg17[%c2_315, %c384_316] : memref<16x512xf32, #tpu.memory_space<vmem>>, vector<2x128xf32>
    tpu.vector_store %arg17[%c2_315, %c384_316], %223 {strides = array<i32>} : memref<16x512xf32, #tpu.memory_space<vmem>>, vector<2x128xf32>,
    %225 = vector.extract_strided_slice %210 {offsets = [6, 0], sizes = [2, 128], strides = [1, 1]} : vector<32x128xf32> to vector<2x128xf32>
    %c4_317 = arith.constant 4 : index
    %c0_318 = arith.constant 0 : index
    %226 = vector.load %arg17[%c4_317, %c0_318] : memref<16x512xf32, #tpu.memory_space<vmem>>, vector<2x128xf32>
    tpu.vector_store %arg17[%c4_317, %c0_318], %225 {strides = array<i32>} : memref<16x512xf32, #tpu.memory_space<vmem>>, vector<2x128xf32>,
    %227 = vector.extract_strided_slice %210 {offsets = [8, 0], sizes = [2, 128], strides = [1, 1]} : vector<32x128xf32> to vector<2x128xf32>
    %c4_319 = arith.constant 4 : index
    %c128_320 = arith.constant 128 : index
    %228 = vector.load %arg17[%c4_319, %c128_320] : memref<16x512xf32, #tpu.memory_space<vmem>>, vector<2x128xf32>
    tpu.vector_store %arg17[%c4_319, %c128_320], %227 {strides = array<i32>} : memref<16x512xf32, #tpu.memory_space<vmem>>, vector<2x128xf32>,
    %229 = vector.extract_strided_slice %210 {offsets = [10, 0], sizes = [2, 128], strides = [1, 1]} : vector<32x128xf32> to vector<2x128xf32>
    %c4_321 = arith.constant 4 : index
    %c256_322 = arith.constant 256 : index
    %230 = vector.load %arg17[%c4_321, %c256_322] : memref<16x512xf32, #tpu.memory_space<vmem>>, vector<2x128xf32>
    tpu.vector_store %arg17[%c4_321, %c256_322], %229 {strides = array<i32>} : memref<16x512xf32, #tpu.memory_space<vmem>>, vector<2x128xf32>,
    %231 = vector.extract_strided_slice %210 {offsets = [12, 0], sizes = [2, 128], strides = [1, 1]} : vector<32x128xf32> to vector<2x128xf32>
    %c4_323 = arith.constant 4 : index
    %c384_324 = arith.constant 384 : index
    %232 = vector.load %arg17[%c4_323, %c384_324] : memref<16x512xf32, #tpu.memory_space<vmem>>, vector<2x128xf32>
    tpu.vector_store %arg17[%c4_323, %c384_324], %231 {strides = array<i32>} : memref<16x512xf32, #tpu.memory_space<vmem>>, vector<2x128xf32>,
    %233 = vector.extract_strided_slice %210 {offsets = [10, 0], sizes = [2, 128], strides = [1, 1]} : vector<32x128xf32> to vector<2x128xf32>
    %c6_325 = arith.constant 6 : index
    %c0_326 = arith.constant 0 : index
    %234 = vector.load %arg17[%c6_325, %c0_326] : memref<16x512xf32, #tpu.memory_space<vmem>>, vector<2x128xf32>
    tpu.vector_store %arg17[%c6_325, %c0_326], %233 {strides = array<i32>} : memref<16x512xf32, #tpu.memory_space<vmem>>, vector<2x128xf32>,
    %235 = vector.extract_strided_slice %210 {offsets = [12, 0], sizes = [2, 128], strides = [1, 1]} : vector<32x128xf32> to vector<2x128xf32>
    %c6_327 = arith.constant 6 : index
    %c128_328 = arith.constant 128 : index
    %236 = vector.load %arg17[%c6_327, %c128_328] : memref<16x512xf32, #tpu.memory_space<vmem>>, vector<2x128xf32>
    tpu.vector_store %arg17[%c6_327, %c128_328], %235 {strides = array<i32>} : memref<16x512xf32, #tpu.memory_space<vmem>>, vector<2x128xf32>,
    %237 = vector.extract_strided_slice %210 {offsets = [14, 0], sizes = [2, 128], strides = [1, 1]} : vector<32x128xf32> to vector<2x128xf32>
    %c6_329 = arith.constant 6 : index
    %c256_330 = arith.constant 256 : index
    %238 = vector.load %arg17[%c6_329, %c256_330] : memref<16x512xf32, #tpu.memory_space<vmem>>, vector<2x128xf32>
    tpu.vector_store %arg17[%c6_329, %c256_330], %237 {strides = array<i32>} : memref<16x512xf32, #tpu.memory_space<vmem>>, vector<2x128xf32>,
    %239 = vector.extract_strided_slice %210 {offsets = [16, 0], sizes = [2, 128], strides = [1, 1]} : vector<32x128xf32> to vector<2x128xf32>
    %c6_331 = arith.constant 6 : index
    %c384_332 = arith.constant 384 : index
    %240 = vector.load %arg17[%c6_331, %c384_332] : memref<16x512xf32, #tpu.memory_space<vmem>>, vector<2x128xf32>
    tpu.vector_store %arg17[%c6_331, %c384_332], %239 {strides = array<i32>} : memref<16x512xf32, #tpu.memory_space<vmem>>, vector<2x128xf32>,
    %241 = vector.extract_strided_slice %210 {offsets = [14, 0], sizes = [2, 128], strides = [1, 1]} : vector<32x128xf32> to vector<2x128xf32>
    %c8_333 = arith.constant 8 : index
    %c0_334 = arith.constant 0 : index
    %242 = vector.load %arg17[%c8_333, %c0_334] : memref<16x512xf32, #tpu.memory_space<vmem>>, vector<2x128xf32>
    tpu.vector_store %arg17[%c8_333, %c0_334], %241 {strides = array<i32>} : memref<16x512xf32, #tpu.memory_space<vmem>>, vector<2x128xf32>,
    %243 = vector.extract_strided_slice %210 {offsets = [16, 0], sizes = [2, 128], strides = [1, 1]} : vector<32x128xf32> to vector<2x128xf32>
    %c8_335 = arith.constant 8 : index
    %c128_336 = arith.constant 128 : index
    %244 = vector.load %arg17[%c8_335, %c128_336] : memref<16x512xf32, #tpu.memory_space<vmem>>, vector<2x128xf32>
    tpu.vector_store %arg17[%c8_335, %c128_336], %243 {strides = array<i32>} : memref<16x512xf32, #tpu.memory_space<vmem>>, vector<2x128xf32>,
    %245 = vector.extract_strided_slice %210 {offsets = [18, 0], sizes = [2, 128], strides = [1, 1]} : vector<32x128xf32> to vector<2x128xf32>
    %c8_337 = arith.constant 8 : index
    %c256_338 = arith.constant 256 : index
    %246 = vector.load %arg17[%c8_337, %c256_338] : memref<16x512xf32, #tpu.memory_space<vmem>>, vector<2x128xf32>
    tpu.vector_store %arg17[%c8_337, %c256_338], %245 {strides = array<i32>} : memref<16x512xf32, #tpu.memory_space<vmem>>, vector<2x128xf32>,
    %247 = vector.extract_strided_slice %210 {offsets = [20, 0], sizes = [2, 128], strides = [1, 1]} : vector<32x128xf32> to vector<2x128xf32>
    %c8_339 = arith.constant 8 : index
    %c384_340 = arith.constant 384 : index
    %248 = vector.load %arg17[%c8_339, %c384_340] : memref<16x512xf32, #tpu.memory_space<vmem>>, vector<2x128xf32>
    tpu.vector_store %arg17[%c8_339, %c384_340], %247 {strides = array<i32>} : memref<16x512xf32, #tpu.memory_space<vmem>>, vector<2x128xf32>,
    %249 = vector.extract_strided_slice %210 {offsets = [18, 0], sizes = [2, 128], strides = [1, 1]} : vector<32x128xf32> to vector<2x128xf32>
    %c10_341 = arith.constant 10 : index
    %c0_342 = arith.constant 0 : index
    %250 = vector.load %arg17[%c10_341, %c0_342] : memref<16x512xf32, #tpu.memory_space<vmem>>, vector<2x128xf32>
    tpu.vector_store %arg17[%c10_341, %c0_342], %249 {strides = array<i32>} : memref<16x512xf32, #tpu.memory_space<vmem>>, vector<2x128xf32>,
    %251 = vector.extract_strided_slice %210 {offsets = [20, 0], sizes = [2, 128], strides = [1, 1]} : vector<32x128xf32> to vector<2x128xf32>
    %c10_343 = arith.constant 10 : index
    %c128_344 = arith.constant 128 : index
    %252 = vector.load %arg17[%c10_343, %c128_344] : memref<16x512xf32, #tpu.memory_space<vmem>>, vector<2x128xf32>
    tpu.vector_store %arg17[%c10_343, %c128_344], %251 {strides = array<i32>} : memref<16x512xf32, #tpu.memory_space<vmem>>, vector<2x128xf32>,
    %253 = vector.extract_strided_slice %210 {offsets = [22, 0], sizes = [2, 128], strides = [1, 1]} : vector<32x128xf32> to vector<2x128xf32>
    %c10_345 = arith.constant 10 : index
    %c256_346 = arith.constant 256 : index
    %254 = vector.load %arg17[%c10_345, %c256_346] : memref<16x512xf32, #tpu.memory_space<vmem>>, vector<2x128xf32>
    tpu.vector_store %arg17[%c10_345, %c256_346], %253 {strides = array<i32>} : memref<16x512xf32, #tpu.memory_space<vmem>>, vector<2x128xf32>,
    %255 = vector.extract_strided_slice %210 {offsets = [24, 0], sizes = [2, 128], strides = [1, 1]} : vector<32x128xf32> to vector<2x128xf32>
    %c10_347 = arith.constant 10 : index
    %c384_348 = arith.constant 384 : index
    %256 = vector.load %arg17[%c10_347, %c384_348] : memref<16x512xf32, #tpu.memory_space<vmem>>, vector<2x128xf32>
    tpu.vector_store %arg17[%c10_347, %c384_348], %255 {strides = array<i32>} : memref<16x512xf32, #tpu.memory_space<vmem>>, vector<2x128xf32>,
    %257 = vector.extract_strided_slice %210 {offsets = [22, 0], sizes = [2, 128], strides = [1, 1]} : vector<32x128xf32> to vector<2x128xf32>
    %c12_349 = arith.constant 12 : index
    %c0_350 = arith.constant 0 : index
    %258 = vector.load %arg17[%c12_349, %c0_350] : memref<16x512xf32, #tpu.memory_space<vmem>>, vector<2x128xf32>
    tpu.vector_store %arg17[%c12_349, %c0_350], %257 {strides = array<i32>} : memref<16x512xf32, #tpu.memory_space<vmem>>, vector<2x128xf32>,
    %259 = vector.extract_strided_slice %210 {offsets = [24, 0], sizes = [2, 128], strides = [1, 1]} : vector<32x128xf32> to vector<2x128xf32>
    %c12_351 = arith.constant 12 : index
    %c128_352 = arith.constant 128 : index
    %260 = vector.load %arg17[%c12_351, %c128_352] : memref<16x512xf32, #tpu.memory_space<vmem>>, vector<2x128xf32>
    tpu.vector_store %arg17[%c12_351, %c128_352], %259 {strides = array<i32>} : memref<16x512xf32, #tpu.memory_space<vmem>>, vector<2x128xf32>,
    %261 = vector.extract_strided_slice %210 {offsets = [26, 0], sizes = [2, 128], strides = [1, 1]} : vector<32x128xf32> to vector<2x128xf32>
    %c12_353 = arith.constant 12 : index
    %c256_354 = arith.constant 256 : index
    %262 = vector.load %arg17[%c12_353, %c256_354] : memref<16x512xf32, #tpu.memory_space<vmem>>, vector<2x128xf32>
    tpu.vector_store %arg17[%c12_353, %c256_354], %261 {strides = array<i32>} : memref<16x512xf32, #tpu.memory_space<vmem>>, vector<2x128xf32>,
    %263 = vector.extract_strided_slice %210 {offsets = [28, 0], sizes = [2, 128], strides = [1, 1]} : vector<32x128xf32> to vector<2x128xf32>
    %c12_355 = arith.constant 12 : index
    %c384_356 = arith.constant 384 : index
    %264 = vector.load %arg17[%c12_355, %c384_356] : memref<16x512xf32, #tpu.memory_space<vmem>>, vector<2x128xf32>
    tpu.vector_store %arg17[%c12_355, %c384_356], %263 {strides = array<i32>} : memref<16x512xf32, #tpu.memory_space<vmem>>, vector<2x128xf32>,
    %265 = vector.extract_strided_slice %210 {offsets = [26, 0], sizes = [2, 128], strides = [1, 1]} : vector<32x128xf32> to vector<2x128xf32>
    %c14_357 = arith.constant 14 : index
    %c0_358 = arith.constant 0 : index
    %266 = vector.load %arg17[%c14_357, %c0_358] : memref<16x512xf32, #tpu.memory_space<vmem>>, vector<2x128xf32>
    tpu.vector_store %arg17[%c14_357, %c0_358], %265 {strides = array<i32>} : memref<16x512xf32, #tpu.memory_space<vmem>>, vector<2x128xf32>,
    %267 = vector.extract_strided_slice %210 {offsets = [28, 0], sizes = [2, 128], strides = [1, 1]} : vector<32x128xf32> to vector<2x128xf32>
    %c14_359 = arith.constant 14 : index
    %c128_360 = arith.constant 128 : index
    %268 = vector.load %arg17[%c14_359, %c128_360] : memref<16x512xf32, #tpu.memory_space<vmem>>, vector<2x128xf32>
    tpu.vector_store %arg17[%c14_359, %c128_360], %267 {strides = array<i32>} : memref<16x512xf32, #tpu.memory_space<vmem>>, vector<2x128xf32>,
    %269 = vector.extract_strided_slice %210 {offsets = [30, 0], sizes = [2, 128], strides = [1, 1]} : vector<32x128xf32> to vector<2x128xf32>
    %c14_361 = arith.constant 14 : index
    %c256_362 = arith.constant 256 : index
    %270 = vector.load %arg17[%c14_361, %c256_362] : memref<16x512xf32, #tpu.memory_space<vmem>>, vector<2x128xf32>
    tpu.vector_store %arg17[%c14_361, %c256_362], %269 {strides = array<i32>} : memref<16x512xf32, #tpu.memory_space<vmem>>, vector<2x128xf32>,
    %c0_363 = arith.constant 0 : index
    %c0_364 = arith.constant 0 : index
    %271 = vector.load %arg17[%c0_363, %c0_364] : memref<16x512xf32, #tpu.memory_space<vmem>>, vector<16x512xf32>
    %c0_365 = arith.constant 0 : index
    %c0_366 = arith.constant 0 : index
    %272 = vector.load %arg3[%c0_365, %c0_366] : memref<512x128xf32, #tpu.memory_space<vmem>>, vector<512x128xf32>
    %cst_367 = arith.constant dense<0.000000e+00> : vector<16x128xf32>
    %273 = tpu.matmul %271, %272, %cst_367 {dimension_numbers = #tpu.dot_dimension_numbers<[1], [0], [0], [1], [0, 0, 1, 1], [], []>} : vector<16x512xf32>, vector<512x128xf32>, vector<16x128xf32> -> vector<16x128xf32>
    %cst_368 = arith.constant dense<0.000000e+00> : vector<128xf32>
    %274 = vector.multi_reduction <add>, %273, %cst_368 [0] : vector<16x128xf32> to vector<128xf32>
    %275 = vector.shape_cast %274 : vector<128xf32> to vector<1x128xf32>
    %c0_369 = arith.constant 0 : index
    %c0_370 = arith.constant 0 : index
    %276 = vector.load %arg4[%c0_369, %c0_370] : memref<128x16xf32, #tpu.memory_space<vmem>>, vector<128x16xf32>
    %cst_371 = arith.constant dense<0.000000e+00> : vector<1x16xf32>
    %277 = tpu.matmul %275, %276, %cst_371 {dimension_numbers = #tpu.dot_dimension_numbers<[1], [0], [0], [1], [0, 0, 1, 1], [], []>} : vector<1x128xf32>, vector<128x16xf32>, vector<1x16xf32> -> vector<1x16xf32>
    %cst_372 = arith.constant 7.812500e-03 : f32
    %278 = vector.broadcast %cst_372 : f32 to vector<1x16xf32>
    %279 = arith.mulf %277, %278 : vector<1x16xf32>
    %c0_373 = arith.constant 0 : index
    %c0_374 = arith.constant 0 : index
    %280 = vector.load %arg5[%c0_373, %c0_374] : memref<16x128xf32, #tpu.memory_space<vmem>>, vector<16x128xf32>
    %cst_375 = arith.constant dense<0.000000e+00> : vector<1x128xf32>
    %281 = tpu.matmul %279, %280, %cst_375 {dimension_numbers = #tpu.dot_dimension_numbers<[1], [0], [0], [1], [0, 0, 1, 1], [], []>} : vector<1x16xf32>, vector<16x128xf32>, vector<1x128xf32> -> vector<1x128xf32>
    %282 = vector.broadcast %281 : vector<1x128xf32> to vector<16x128xf32>
    %283 = arith.subf %273, %282 : vector<16x128xf32>
    %284 = arith.mulf %283, %283 : vector<16x128xf32>
    %cst_376 = arith.constant dense<0.000000e+00> : vector<128xf32>
    %285 = vector.multi_reduction <add>, %284, %cst_376 [0] : vector<16x128xf32> to vector<128xf32>
    %286 = vector.shape_cast %285 : vector<128xf32> to vector<1x128xf32>
    %c0_377 = arith.constant 0 : index
    %c0_378 = arith.constant 0 : index
    %287 = vector.load %arg4[%c0_377, %c0_378] : memref<128x16xf32, #tpu.memory_space<vmem>>, vector<128x16xf32>
    %cst_379 = arith.constant dense<0.000000e+00> : vector<1x16xf32>
    %288 = tpu.matmul %286, %287, %cst_379 {dimension_numbers = #tpu.dot_dimension_numbers<[1], [0], [0], [1], [0, 0, 1, 1], [], []>} : vector<1x128xf32>, vector<128x16xf32>, vector<1x16xf32> -> vector<1x16xf32>
    %cst_380 = arith.constant 7.812500e-03 : f32
    %289 = vector.broadcast %cst_380 : f32 to vector<1x16xf32>
    %290 = arith.mulf %288, %289 : vector<1x16xf32>
    %c0_381 = arith.constant 0 : index
    %c0_382 = arith.constant 0 : index
    %291 = vector.load %arg5[%c0_381, %c0_382] : memref<16x128xf32, #tpu.memory_space<vmem>>, vector<16x128xf32>
    %cst_383 = arith.constant dense<0.000000e+00> : vector<1x128xf32>
    %292 = tpu.matmul %290, %291, %cst_383 {dimension_numbers = #tpu.dot_dimension_numbers<[1], [0], [0], [1], [0, 0, 1, 1], [], []>} : vector<1x16xf32>, vector<16x128xf32>, vector<1x128xf32> -> vector<1x128xf32>
    %c0_384 = arith.constant 0 : index
    %c0_385 = arith.constant 0 : index
    %293 = vector.load %arg6[%c0_384, %c0_385] : memref<1x128xf32, #tpu.memory_space<vmem>>, vector<1x128xf32>
    %cst_386 = arith.constant 9.99999974E-6 : f32
    %294 = vector.broadcast %cst_386 : f32 to vector<1x128xf32>
    %295 = arith.addf %292, %294 : vector<1x128xf32>
    %296 = math.rsqrt %295 : vector<1x128xf32>
    %297 = arith.mulf %293, %296 : vector<1x128xf32>
    %c0_387 = arith.constant 0 : index
    %c0_388 = arith.constant 0 : index
    %298 = vector.load %arg7[%c0_387, %c0_388] : memref<1x128xf32, #tpu.memory_space<vmem>>, vector<1x128xf32>
    %299 = arith.mulf %281, %297 : vector<1x128xf32>
    %300 = arith.subf %298, %299 : vector<1x128xf32>
    %301 = vector.broadcast %297 : vector<1x128xf32> to vector<16x128xf32>
    %302 = arith.mulf %273, %301 : vector<16x128xf32>
    %303 = vector.broadcast %300 : vector<1x128xf32> to vector<16x128xf32>
    %304 = arith.addf %302, %303 : vector<16x128xf32>
    %cst_389 = arith.constant 0.000000e+00 : f32
    %305 = vector.broadcast %cst_389 : f32 to vector<16x128xf32>
    %306 = arith.cmpf ogt, %304, %305 : vector<16x128xf32>
    %cst_390 = arith.constant 2.000000e-01 : f32
    %307 = vector.broadcast %cst_390 : f32 to vector<16x128xf32>
    %308 = arith.mulf %307, %304 : vector<16x128xf32>
    %309 = arith.select %306, %304, %308 : vector<16x128xi1>, vector<16x128xf32>
    %310 = vector.extract_strided_slice %309 {offsets = [0, 0], sizes = [2, 128], strides = [1, 1]} : vector<16x128xf32> to vector<2x128xf32>
    %c0_391 = arith.constant 0 : index
    %c128_392 = arith.constant 128 : index
    %311 = vector.load %arg18[%c0_391, %c128_392] : memref<8x512xf32, #tpu.memory_space<vmem>>, vector<2x128xf32>
    tpu.vector_store %arg18[%c0_391, %c128_392], %310 {strides = array<i32>} : memref<8x512xf32, #tpu.memory_space<vmem>>, vector<2x128xf32>,
    %312 = vector.extract_strided_slice %309 {offsets = [2, 0], sizes = [2, 128], strides = [1, 1]} : vector<16x128xf32> to vector<2x128xf32>
    %c0_393 = arith.constant 0 : index
    %c256_394 = arith.constant 256 : index
    %313 = vector.load %arg18[%c0_393, %c256_394] : memref<8x512xf32, #tpu.memory_space<vmem>>, vector<2x128xf32>
    tpu.vector_store %arg18[%c0_393, %c256_394], %312 {strides = array<i32>} : memref<8x512xf32, #tpu.memory_space<vmem>>, vector<2x128xf32>,
    %314 = vector.extract_strided_slice %309 {offsets = [4, 0], sizes = [2, 128], strides = [1, 1]} : vector<16x128xf32> to vector<2x128xf32>
    %c0_395 = arith.constant 0 : index
    %c384_396 = arith.constant 384 : index
    %315 = vector.load %arg18[%c0_395, %c384_396] : memref<8x512xf32, #tpu.memory_space<vmem>>, vector<2x128xf32>
    tpu.vector_store %arg18[%c0_395, %c384_396], %314 {strides = array<i32>} : memref<8x512xf32, #tpu.memory_space<vmem>>, vector<2x128xf32>,
    %316 = vector.extract_strided_slice %309 {offsets = [2, 0], sizes = [2, 128], strides = [1, 1]} : vector<16x128xf32> to vector<2x128xf32>
    %c2_397 = arith.constant 2 : index
    %c0_398 = arith.constant 0 : index
    %317 = vector.load %arg18[%c2_397, %c0_398] : memref<8x512xf32, #tpu.memory_space<vmem>>, vector<2x128xf32>
    tpu.vector_store %arg18[%c2_397, %c0_398], %316 {strides = array<i32>} : memref<8x512xf32, #tpu.memory_space<vmem>>, vector<2x128xf32>,
    %318 = vector.extract_strided_slice %309 {offsets = [4, 0], sizes = [2, 128], strides = [1, 1]} : vector<16x128xf32> to vector<2x128xf32>
    %c2_399 = arith.constant 2 : index
    %c128_400 = arith.constant 128 : index
    %319 = vector.load %arg18[%c2_399, %c128_400] : memref<8x512xf32, #tpu.memory_space<vmem>>, vector<2x128xf32>
    tpu.vector_store %arg18[%c2_399, %c128_400], %318 {strides = array<i32>} : memref<8x512xf32, #tpu.memory_space<vmem>>, vector<2x128xf32>,
    %320 = vector.extract_strided_slice %309 {offsets = [6, 0], sizes = [2, 128], strides = [1, 1]} : vector<16x128xf32> to vector<2x128xf32>
    %c2_401 = arith.constant 2 : index
    %c256_402 = arith.constant 256 : index
    %321 = vector.load %arg18[%c2_401, %c256_402] : memref<8x512xf32, #tpu.memory_space<vmem>>, vector<2x128xf32>
    tpu.vector_store %arg18[%c2_401, %c256_402], %320 {strides = array<i32>} : memref<8x512xf32, #tpu.memory_space<vmem>>, vector<2x128xf32>,
    %322 = vector.extract_strided_slice %309 {offsets = [8, 0], sizes = [2, 128], strides = [1, 1]} : vector<16x128xf32> to vector<2x128xf32>
    %c2_403 = arith.constant 2 : index
    %c384_404 = arith.constant 384 : index
    %323 = vector.load %arg18[%c2_403, %c384_404] : memref<8x512xf32, #tpu.memory_space<vmem>>, vector<2x128xf32>
    tpu.vector_store %arg18[%c2_403, %c384_404], %322 {strides = array<i32>} : memref<8x512xf32, #tpu.memory_space<vmem>>, vector<2x128xf32>,
    %324 = vector.extract_strided_slice %309 {offsets = [6, 0], sizes = [2, 128], strides = [1, 1]} : vector<16x128xf32> to vector<2x128xf32>
    %c4_405 = arith.constant 4 : index
    %c0_406 = arith.constant 0 : index
    %325 = vector.load %arg18[%c4_405, %c0_406] : memref<8x512xf32, #tpu.memory_space<vmem>>, vector<2x128xf32>
    tpu.vector_store %arg18[%c4_405, %c0_406], %324 {strides = array<i32>} : memref<8x512xf32, #tpu.memory_space<vmem>>, vector<2x128xf32>,
    %326 = vector.extract_strided_slice %309 {offsets = [8, 0], sizes = [2, 128], strides = [1, 1]} : vector<16x128xf32> to vector<2x128xf32>
    %c4_407 = arith.constant 4 : index
    %c128_408 = arith.constant 128 : index
    %327 = vector.load %arg18[%c4_407, %c128_408] : memref<8x512xf32, #tpu.memory_space<vmem>>, vector<2x128xf32>
    tpu.vector_store %arg18[%c4_407, %c128_408], %326 {strides = array<i32>} : memref<8x512xf32, #tpu.memory_space<vmem>>, vector<2x128xf32>,
    %328 = vector.extract_strided_slice %309 {offsets = [10, 0], sizes = [2, 128], strides = [1, 1]} : vector<16x128xf32> to vector<2x128xf32>
    %c4_409 = arith.constant 4 : index
    %c256_410 = arith.constant 256 : index
    %329 = vector.load %arg18[%c4_409, %c256_410] : memref<8x512xf32, #tpu.memory_space<vmem>>, vector<2x128xf32>
    tpu.vector_store %arg18[%c4_409, %c256_410], %328 {strides = array<i32>} : memref<8x512xf32, #tpu.memory_space<vmem>>, vector<2x128xf32>,
    %330 = vector.extract_strided_slice %309 {offsets = [12, 0], sizes = [2, 128], strides = [1, 1]} : vector<16x128xf32> to vector<2x128xf32>
    %c4_411 = arith.constant 4 : index
    %c384_412 = arith.constant 384 : index
    %331 = vector.load %arg18[%c4_411, %c384_412] : memref<8x512xf32, #tpu.memory_space<vmem>>, vector<2x128xf32>
    tpu.vector_store %arg18[%c4_411, %c384_412], %330 {strides = array<i32>} : memref<8x512xf32, #tpu.memory_space<vmem>>, vector<2x128xf32>,
    %332 = vector.extract_strided_slice %309 {offsets = [10, 0], sizes = [2, 128], strides = [1, 1]} : vector<16x128xf32> to vector<2x128xf32>
    %c6_413 = arith.constant 6 : index
    %c0_414 = arith.constant 0 : index
    %333 = vector.load %arg18[%c6_413, %c0_414] : memref<8x512xf32, #tpu.memory_space<vmem>>, vector<2x128xf32>
    tpu.vector_store %arg18[%c6_413, %c0_414], %332 {strides = array<i32>} : memref<8x512xf32, #tpu.memory_space<vmem>>, vector<2x128xf32>,
    %334 = vector.extract_strided_slice %309 {offsets = [12, 0], sizes = [2, 128], strides = [1, 1]} : vector<16x128xf32> to vector<2x128xf32>
    %c6_415 = arith.constant 6 : index
    %c128_416 = arith.constant 128 : index
    %335 = vector.load %arg18[%c6_415, %c128_416] : memref<8x512xf32, #tpu.memory_space<vmem>>, vector<2x128xf32>
    tpu.vector_store %arg18[%c6_415, %c128_416], %334 {strides = array<i32>} : memref<8x512xf32, #tpu.memory_space<vmem>>, vector<2x128xf32>,
    %336 = vector.extract_strided_slice %309 {offsets = [14, 0], sizes = [2, 128], strides = [1, 1]} : vector<16x128xf32> to vector<2x128xf32>
    %c6_417 = arith.constant 6 : index
    %c256_418 = arith.constant 256 : index
    %337 = vector.load %arg18[%c6_417, %c256_418] : memref<8x512xf32, #tpu.memory_space<vmem>>, vector<2x128xf32>
    tpu.vector_store %arg18[%c6_417, %c256_418], %336 {strides = array<i32>} : memref<8x512xf32, #tpu.memory_space<vmem>>, vector<2x128xf32>,
    %c0_419 = arith.constant 0 : index
    %c0_420 = arith.constant 0 : index
    %338 = vector.load %arg18[%c0_419, %c0_420] : memref<8x512xf32, #tpu.memory_space<vmem>>, vector<8x512xf32>
    %c0_421 = arith.constant 0 : index
    %c0_422 = arith.constant 0 : index
    %339 = vector.load %arg8[%c0_421, %c0_422] : memref<512x128xf32, #tpu.memory_space<vmem>>, vector<512x128xf32>
    %cst_423 = arith.constant dense<0.000000e+00> : vector<8x128xf32>
    %340 = tpu.matmul %338, %339, %cst_423 {dimension_numbers = #tpu.dot_dimension_numbers<[1], [0], [0], [1], [0, 0, 1, 1], [], []>} : vector<8x512xf32>, vector<512x128xf32>, vector<8x128xf32> -> vector<8x128xf32>
    %cst_424 = arith.constant dense<0.000000e+00> : vector<128xf32>
    %341 = vector.multi_reduction <add>, %340, %cst_424 [0] : vector<8x128xf32> to vector<128xf32>
    %342 = vector.shape_cast %341 : vector<128xf32> to vector<1x128xf32>
    %c0_425 = arith.constant 0 : index
    %c0_426 = arith.constant 0 : index
    %343 = vector.load %arg9[%c0_425, %c0_426] : memref<128x32xf32, #tpu.memory_space<vmem>>, vector<128x32xf32>
    %cst_427 = arith.constant dense<0.000000e+00> : vector<1x32xf32>
    %344 = tpu.matmul %342, %343, %cst_427 {dimension_numbers = #tpu.dot_dimension_numbers<[1], [0], [0], [1], [0, 0, 1, 1], [], []>} : vector<1x128xf32>, vector<128x32xf32>, vector<1x32xf32> -> vector<1x32xf32>
    %cst_428 = arith.constant 3.125000e-02 : f32
    %345 = vector.broadcast %cst_428 : f32 to vector<1x32xf32>
    %346 = arith.mulf %344, %345 : vector<1x32xf32>
    %c0_429 = arith.constant 0 : index
    %c0_430 = arith.constant 0 : index
    %347 = vector.load %arg10[%c0_429, %c0_430] : memref<32x128xf32, #tpu.memory_space<vmem>>, vector<32x128xf32>
    %cst_431 = arith.constant dense<0.000000e+00> : vector<1x128xf32>
    %348 = tpu.matmul %346, %347, %cst_431 {dimension_numbers = #tpu.dot_dimension_numbers<[1], [0], [0], [1], [0, 0, 1, 1], [], []>} : vector<1x32xf32>, vector<32x128xf32>, vector<1x128xf32> -> vector<1x128xf32>
    %349 = vector.broadcast %348 : vector<1x128xf32> to vector<8x128xf32>
    %350 = arith.subf %340, %349 : vector<8x128xf32>
    %351 = arith.mulf %350, %350 : vector<8x128xf32>
    %cst_432 = arith.constant dense<0.000000e+00> : vector<128xf32>
    %352 = vector.multi_reduction <add>, %351, %cst_432 [0] : vector<8x128xf32> to vector<128xf32>
    %353 = vector.shape_cast %352 : vector<128xf32> to vector<1x128xf32>
    %c0_433 = arith.constant 0 : index
    %c0_434 = arith.constant 0 : index
    %354 = vector.load %arg9[%c0_433, %c0_434] : memref<128x32xf32, #tpu.memory_space<vmem>>, vector<128x32xf32>
    %cst_435 = arith.constant dense<0.000000e+00> : vector<1x32xf32>
    %355 = tpu.matmul %353, %354, %cst_435 {dimension_numbers = #tpu.dot_dimension_numbers<[1], [0], [0], [1], [0, 0, 1, 1], [], []>} : vector<1x128xf32>, vector<128x32xf32>, vector<1x32xf32> -> vector<1x32xf32>
    %cst_436 = arith.constant 3.125000e-02 : f32
    %356 = vector.broadcast %cst_436 : f32 to vector<1x32xf32>
    %357 = arith.mulf %355, %356 : vector<1x32xf32>
    %c0_437 = arith.constant 0 : index
    %c0_438 = arith.constant 0 : index
    %358 = vector.load %arg10[%c0_437, %c0_438] : memref<32x128xf32, #tpu.memory_space<vmem>>, vector<32x128xf32>
    %cst_439 = arith.constant dense<0.000000e+00> : vector<1x128xf32>
    %359 = tpu.matmul %357, %358, %cst_439 {dimension_numbers = #tpu.dot_dimension_numbers<[1], [0], [0], [1], [0, 0, 1, 1], [], []>} : vector<1x32xf32>, vector<32x128xf32>, vector<1x128xf32> -> vector<1x128xf32>
    %c0_440 = arith.constant 0 : index
    %c0_441 = arith.constant 0 : index
    %360 = vector.load %arg11[%c0_440, %c0_441] : memref<1x128xf32, #tpu.memory_space<vmem>>, vector<1x128xf32>
    %cst_442 = arith.constant 9.99999974E-6 : f32
    %361 = vector.broadcast %cst_442 : f32 to vector<1x128xf32>
    %362 = arith.addf %359, %361 : vector<1x128xf32>
    %363 = math.rsqrt %362 : vector<1x128xf32>
    %364 = arith.mulf %360, %363 : vector<1x128xf32>
    %c0_443 = arith.constant 0 : index
    %c0_444 = arith.constant 0 : index
    %365 = vector.load %arg12[%c0_443, %c0_444] : memref<1x128xf32, #tpu.memory_space<vmem>>, vector<1x128xf32>
    %366 = arith.mulf %348, %364 : vector<1x128xf32>
    %367 = arith.subf %365, %366 : vector<1x128xf32>
    %368 = vector.broadcast %364 : vector<1x128xf32> to vector<8x128xf32>
    %369 = arith.mulf %340, %368 : vector<8x128xf32>
    %370 = vector.broadcast %367 : vector<1x128xf32> to vector<8x128xf32>
    %371 = arith.addf %369, %370 : vector<8x128xf32>
    %cst_445 = arith.constant 0.000000e+00 : f32
    %372 = vector.broadcast %cst_445 : f32 to vector<8x128xf32>
    %373 = arith.cmpf ogt, %371, %372 : vector<8x128xf32>
    %cst_446 = arith.constant 2.000000e-01 : f32
    %374 = vector.broadcast %cst_446 : f32 to vector<8x128xf32>
    %375 = arith.mulf %374, %371 : vector<8x128xf32>
    %376 = arith.select %373, %371, %375 : vector<8x128xi1>, vector<8x128xf32>
    %377 = vector.extract_strided_slice %376 {offsets = [0, 0], sizes = [2, 128], strides = [1, 1]} : vector<8x128xf32> to vector<2x128xf32>
    %c0_447 = arith.constant 0 : index
    %c0_448 = arith.constant 0 : index
    %378 = vector.load %arg19[%c0_447, %c0_448] : memref<2x512xf32, #tpu.memory_space<vmem>>, vector<2x128xf32>
    tpu.vector_store %arg19[%c0_447, %c0_448], %377 {strides = array<i32>} : memref<2x512xf32, #tpu.memory_space<vmem>>, vector<2x128xf32>,
    %379 = vector.extract_strided_slice %376 {offsets = [2, 0], sizes = [2, 128], strides = [1, 1]} : vector<8x128xf32> to vector<2x128xf32>
    %c0_449 = arith.constant 0 : index
    %c128_450 = arith.constant 128 : index
    %380 = vector.load %arg19[%c0_449, %c128_450] : memref<2x512xf32, #tpu.memory_space<vmem>>, vector<2x128xf32>
    tpu.vector_store %arg19[%c0_449, %c128_450], %379 {strides = array<i32>} : memref<2x512xf32, #tpu.memory_space<vmem>>, vector<2x128xf32>,
    %381 = vector.extract_strided_slice %376 {offsets = [4, 0], sizes = [2, 128], strides = [1, 1]} : vector<8x128xf32> to vector<2x128xf32>
    %c0_451 = arith.constant 0 : index
    %c256_452 = arith.constant 256 : index
    %382 = vector.load %arg19[%c0_451, %c256_452] : memref<2x512xf32, #tpu.memory_space<vmem>>, vector<2x128xf32>
    tpu.vector_store %arg19[%c0_451, %c256_452], %381 {strides = array<i32>} : memref<2x512xf32, #tpu.memory_space<vmem>>, vector<2x128xf32>,
    %383 = vector.extract_strided_slice %376 {offsets = [6, 0], sizes = [2, 128], strides = [1, 1]} : vector<8x128xf32> to vector<2x128xf32>
    %c0_453 = arith.constant 0 : index
    %c384_454 = arith.constant 384 : index
    %384 = vector.load %arg19[%c0_453, %c384_454] : memref<2x512xf32, #tpu.memory_space<vmem>>, vector<2x128xf32>
    tpu.vector_store %arg19[%c0_453, %c384_454], %383 {strides = array<i32>} : memref<2x512xf32, #tpu.memory_space<vmem>>, vector<2x128xf32>,
    %c0_455 = arith.constant 0 : index
    %c0_456 = arith.constant 0 : index
    %385 = vector.load %arg19[%c0_455, %c0_456] : memref<2x512xf32, #tpu.memory_space<vmem>>, vector<2x512xf32>
    %c0_457 = arith.constant 0 : index
    %c0_458 = arith.constant 0 : index
    %386 = vector.load %arg13[%c0_457, %c0_458] : memref<512x1xf32, #tpu.memory_space<vmem>>, vector<512x1xf32>
    %cst_459 = arith.constant dense<0.000000e+00> : vector<2x1xf32>
    %387 = tpu.matmul %385, %386, %cst_459 {dimension_numbers = #tpu.dot_dimension_numbers<[1], [0], [0], [1], [0, 0, 1, 1], [], []>} : vector<2x512xf32>, vector<512x1xf32>, vector<2x1xf32> -> vector<2x1xf32>
    %c0_460 = arith.constant 0 : index
    %c0_461 = arith.constant 0 : index
    %388 = vector.load %arg14[%c0_460, %c0_461] : memref<1x1xf32, #tpu.memory_space<vmem>>, vector<1x1xf32>
    %389 = vector.broadcast %388 : vector<1x1xf32> to vector<2x1xf32>
    %390 = arith.addf %387, %389 : vector<2x1xf32>
    %c0_462 = arith.constant 0 : index
    %c0_463 = arith.constant 0 : index
    %391 = vector.load %arg15[%c0_462, %c0_463] : memref<2x1xf32, #tpu.memory_space<vmem>>, vector<2x1xf32>
    tpu.vector_store %arg15[%c0_462, %c0_463], %390 {strides = array<i32>} : memref<2x1xf32, #tpu.memory_space<vmem>>, vector<2x1xf32>,
    return
  }
}

</mosaic_0001>

<llo_original>
// kernel: _lambda_.1
$region0: #{_lambda_.1}
  #allocation0 [shape = 'u32[]', space=smem, size = 0x4, offset = 0x4, fixed_abs, tag = 'smem constant byte address 0x4 - core index']
  #allocation1 [shape = 'u32[72,128]{1,0:T(1,128)}', space=vmem, size = 0x9000, scoped, tag = 'internal scratch']
  #allocation2 [shape = 'f32[32,512]{1,0:T(8,128)}', space=vmem, size = 0x10000, scoped, tag = 'scratch operand']
  #allocation3 [shape = 'f32[16,512]{1,0:T(8,128)}', space=vmem, size = 0x8000, scoped, tag = 'scratch operand']
  #allocation4 [shape = 'f32[8,512]{1,0:T(8,128)}', space=vmem, size = 0x4000, scoped, tag = 'scratch operand']
  #allocation5 [shape = 'f32[2,512]{1,0:T(2,128)}', space=vmem, size = 0x1000, scoped, tag = 'scratch operand']
  #allocation6 [shape = 'f32[1,1]{1,0:T(1,128)S(1)}', space=vmem, size = 0x200, scoped, tag = 'scoped memory for _lambda_.1']
  %s0 = inlined_call_operand.vmem [shape: f32[2,34,96], index: 0, kind: input, shape index: {}]
  %s1 = inlined_call_operand.vmem [shape: f32[512,128], index: 1, kind: input, shape index: {}]
  %s2 = inlined_call_operand.vmem [shape: f32[1,128], index: 2, kind: input, shape index: {}]
  %s3 = inlined_call_operand.hbm [shape: f32[512,128], index: 3, kind: input, shape index: {}]
  %s4 = inlined_call_operand.vmem [shape: f32[128,16], index: 4, kind: input, shape index: {}]
  %s5 = inlined_call_operand.hbm [shape: f32[16,128], index: 5, kind: input, shape index: {}]
  %s6 = inlined_call_operand.vmem [shape: f32[1,128], index: 6, kind: input, shape index: {}, may-alias: {6,11}]
  %s7 = inlined_call_operand.vmem [shape: f32[1,128], index: 7, kind: input, shape index: {}, may-alias: {7,12}]
  %s8 = inlined_call_operand.hbm [shape: f32[512,128], index: 8, kind: input, shape index: {}]
  %s9 = inlined_call_operand.vmem [shape: f32[128,32], index: 9, kind: input, shape index: {}]
  %s10 = inlined_call_operand.vmem [shape: f32[32,128], index: 10, kind: input, shape index: {}]
  %s11 = inlined_call_operand.vmem [shape: f32[1,128], index: 11, kind: input, shape index: {}, may-alias: {6,11}]
  %s12 = inlined_call_operand.vmem [shape: f32[1,128], index: 12, kind: input, shape index: {}, may-alias: {7,12}]
  %s13 = inlined_call_operand.hbm [shape: f32[512,1], index: 13, kind: input, shape index: {}]
  %s14 = inlined_call_operand.<no memory space> [shape: f32[1,1], index: 14, kind: input, shape index: {}]
  %s15 = inlined_call_operand.vmem [shape: f32[2,1], index: 15, kind: output, shape index: {}]
  %s16 = sld [smem:[#allocation0]]
  $region86: #{_lambda_.1} parent=0
    _
  %s18 = ssub.s32 1, %s16
  %s19 = scalar_select 0, %s18, %s16
  %v20 = vstv %s14
  %21 = vst [vmem:[#allocation6] sm:$0x1] %v20
  $region1: #{_lambda_.1} parent=0
    #allocation7 [shape = 'u8[262144]{0}', space=vmem, size = 0x40000, scoped, tag = 'input window, operand 3, single buffered']
    #allocation8 [shape = 's32[1]{0}', space=sflag, size = 0x4, scoped, tag = 'scoped memory for _lambda_.1']
    #allocation9 [shape = 'u8[8192]{0}', space=vmem, size = 0x2000, scoped, tag = 'input window, operand 5, single buffered']
    #allocation10 [shape = 's32[1]{0}', space=sflag, size = 0x4, scoped, tag = 'scoped memory for _lambda_.1']
    #allocation11 [shape = 'u8[262144]{0}', space=vmem, size = 0x40000, scoped, tag = 'input window, operand 8, single buffered']
    #allocation12 [shape = 'u8[262144]{0}', space=vmem, size = 0x40000, scoped, tag = 'input window, operand 13, single buffered']
    #allocation13 [shape = 's32[1]{0}', space=sflag, size = 0x4, scoped, tag = 'scoped memory for _lambda_.1']
    %22 = vsyncpa [#allocation8], 0
    %23 = vsyncpa [#allocation10], 0
    %24 = vsyncpa [#allocation13], 0
    // Predicated region
    $region2: #{_lambda_.1} parent=1 // pred_check
      _
    $region3: #{_lambda_.1} parent=1 // pred_check_branch
      %26 = sbr.rel (0) target = $region5
    $region4: #{_lambda_.1} parent=1 // pred_region
      _
    $region5: #{_lambda_.1} parent=1 // pred_fallthru
      _
    // Predicated region
    $region6: #{_lambda_.1} parent=1 // pred_check
      _
    $region7: #{_lambda_.1} parent=1 // pred_check_branch
      %28 = sbr.rel (0) target = $region9
    $region8: #{_lambda_.1} parent=1 // pred_region
      _
    $region9: #{_lambda_.1} parent=1 // pred_fallthru
      _
    // Predicated region
    $region10: #{_lambda_.1} parent=1 // pred_check
      _
    $region11: #{_lambda_.1} parent=1 // pred_check_branch
      %30 = sbr.rel (0) target = $region13
    $region12: #{_lambda_.1} parent=1 // pred_region
      _
    $region13: #{_lambda_.1} parent=1 // pred_fallthru
      _
    // Predicated region
    $region14: #{_lambda_.1} parent=1 // pred_check
      _
    $region15: #{_lambda_.1} parent=1 // pred_check_branch
      %32 = sbr.rel (0) target = $region17
    $region16: #{_lambda_.1} parent=1 // pred_region
      %34 = vsyncadd [#allocation8], 0
      %s35 = sshll.u32 %s3, 4
      %s36 = int_to_ptr.hbm [resolvable:$true] %s35
      %s37 = sshll.u32 [#allocation7], 4
      %s38 = int_to_ptr.vmem [resolvable:$true] %s37
      %43 = dma.hbm_to_vmem [thread:$0]  %s36, 8192, %s38, [#allocation8], 128, 128, 8
    $region17: #{_lambda_.1} parent=1 // pred_fallthru
      _
    // Predicated region
    $region18: #{_lambda_.1} parent=1 // pred_check
      _
    $region19: #{_lambda_.1} parent=1 // pred_check_branch
      %45 = sbr.rel (0) target = $region21
    $region20: #{_lambda_.1} parent=1 // pred_region
      _
    $region21: #{_lambda_.1} parent=1 // pred_fallthru
      _
    // Predicated region
    $region22: #{_lambda_.1} parent=1 // pred_check
      _
    $region23: #{_lambda_.1} parent=1 // pred_check_branch
      %47 = sbr.rel (0) target = $region25
    $region24: #{_lambda_.1} parent=1 // pred_region
      %49 = vsyncadd [#allocation10], 0
      %s50 = sshll.u32 %s5, 4
      %s51 = int_to_ptr.hbm [resolvable:$true] %s50
      %s52 = sshll.u32 [#allocation9], 4
      %s53 = int_to_ptr.vmem [resolvable:$true] %s52
      %58 = dma.hbm_to_vmem [thread:$0]  %s51, 256, %s53, [#allocation10], 128, 128, 8
    $region25: #{_lambda_.1} parent=1 // pred_fallthru
      _
    // Predicated region
    $region26: #{_lambda_.1} parent=1 // pred_check
      _
    $region27: #{_lambda_.1} parent=1 // pred_check_branch
      %60 = sbr.rel (0) target = $region29
    $region28: #{_lambda_.1} parent=1 // pred_region
      _
    $region29: #{_lambda_.1} parent=1 // pred_fallthru
      _
    // Predicated region
    $region30: #{_lambda_.1} parent=1 // pred_check
      _
    $region31: #{_lambda_.1} parent=1 // pred_check_branch
      %62 = sbr.rel (0) target = $region33
    $region32: #{_lambda_.1} parent=1 // pred_region
      _
    $region33: #{_lambda_.1} parent=1 // pred_fallthru
      _
    // Predicated region
    $region34: #{_lambda_.1} parent=1 // pred_check
      _
    $region35: #{_lambda_.1} parent=1 // pred_check_branch
      %64 = sbr.rel (0) target = $region37
    $region36: #{_lambda_.1} parent=1 // pred_region
      %66 = vsyncadd [#allocation10], 0
      %s67 = sshll.u32 %s8, 4
      %s68 = int_to_ptr.hbm [resolvable:$true] %s67
      %s69 = sshll.u32 [#allocation11], 4
      %s70 = int_to_ptr.vmem [resolvable:$true] %s69
      %75 = dma.hbm_to_vmem [thread:$0]  %s68, 8192, %s70, [#allocation10], 128, 128, 8
    $region37: #{_lambda_.1} parent=1 // pred_fallthru
      _
    // Predicated region
    $region38: #{_lambda_.1} parent=1 // pred_check
      _
    $region39: #{_lambda_.1} parent=1 // pred_check_branch
      %77 = sbr.rel (0) target = $region41
    $region40: #{_lambda_.1} parent=1 // pred_region
      _
    $region41: #{_lambda_.1} parent=1 // pred_fallthru
      _
    // Predicated region
    $region42: #{_lambda_.1} parent=1 // pred_check
      _
    $region43: #{_lambda_.1} parent=1 // pred_check_branch
      %79 = sbr.rel (0) target = $region45
    $region44: #{_lambda_.1} parent=1 // pred_region
      _
    $region45: #{_lambda_.1} parent=1 // pred_fallthru
      _
    // Predicated region
    $region46: #{_lambda_.1} parent=1 // pred_check
      _
    $region47: #{_lambda_.1} parent=1 // pred_check_branch
      %81 = sbr.rel (0) target = $region49
    $region48: #{_lambda_.1} parent=1 // pred_region
      _
    $region49: #{_lambda_.1} parent=1 // pred_fallthru
      _
    // Predicated region
    $region50: #{_lambda_.1} parent=1 // pred_check
      _
    $region51: #{_lambda_.1} parent=1 // pred_check_branch
      %83 = sbr.rel (0) target = $region53
    $region52: #{_lambda_.1} parent=1 // pred_region
      _
    $region53: #{_lambda_.1} parent=1 // pred_fallthru
      _
    // Predicated region
    $region54: #{_lambda_.1} parent=1 // pred_check
      _
    $region55: #{_lambda_.1} parent=1 // pred_check_branch
      %85 = sbr.rel (0) target = $region57
    $region56: #{_lambda_.1} parent=1 // pred_region
      %87 = vsyncadd [#allocation13], 0
      %s88 = sshll.u32 %s13, 4
      %s89 = int_to_ptr.hbm [resolvable:$true] %s88
      %s90 = sshll.u32 [#allocation12], 4
      %s91 = int_to_ptr.vmem [resolvable:$true] %s90
      %96 = dma.hbm_to_vmem [thread:$0]  %s89, 8192, %s91, [#allocation13], 128, 128, 8
    $region57: #{_lambda_.1} parent=1 // pred_fallthru
      _
    // Predicated region
    $region58: #{_lambda_.1} parent=1 // pred_check
      _
    $region59: #{_lambda_.1} parent=1 // pred_check_branch
      %98 = sbr.rel (0) target = $region61
    $region60: #{_lambda_.1} parent=1 // pred_region
      _
    $region61: #{_lambda_.1} parent=1 // pred_fallthru
      _
    // Predicated region
    $region62: #{_lambda_.1} parent=1 // pred_check
      _
    $region63: #{_lambda_.1} parent=1 // pred_check_branch
      %100 = sbr.rel (0) target = $region65
    $region64: #{_lambda_.1} parent=1 // pred_region
      %102 = dma.done [#allocation8], 8192
    $region65: #{_lambda_.1} parent=1 // pred_fallthru
      _
    // Predicated region
    $region66: #{_lambda_.1} parent=1 // pred_check
      _
    $region67: #{_lambda_.1} parent=1 // pred_check_branch
      %104 = sbr.rel (0) target = $region69
    $region68: #{_lambda_.1} parent=1 // pred_region
      %106 = dma.done [#allocation10], 256
    $region69: #{_lambda_.1} parent=1 // pred_fallthru
      _
    // Predicated region
    $region70: #{_lambda_.1} parent=1 // pred_check
      _
    $region71: #{_lambda_.1} parent=1 // pred_check_branch
      %108 = sbr.rel (0) target = $region73
    $region72: #{_lambda_.1} parent=1 // pred_region
      %110 = dma.done [#allocation10], 8192
    $region73: #{_lambda_.1} parent=1 // pred_fallthru
      _
    // Predicated region
    $region74: #{_lambda_.1} parent=1 // pred_check
      _
    $region75: #{_lambda_.1} parent=1 // pred_check_branch
      %112 = sbr.rel (0) target = $region77
    $region76: #{_lambda_.1} parent=1 // pred_region
      %114 = dma.done [#allocation13], 8192
    $region77: #{_lambda_.1} parent=1 // pred_fallthru
      _
    %115 = vst [vmem:[#allocation2] sm:$0xff] 0.0
    %116 = vst [vmem:[#allocation2 + $0x8] sm:$0xff] 0.0
    %117 = vst [vmem:[#allocation2 + $0x10] sm:$0xff] 0.0
    %118 = vst [vmem:[#allocation2 + $0x18] sm:$0xff] 0.0
    %119 = vst [vmem:[#allocation2 + $0x20] sm:$0xff] 0.0
    %120 = vst [vmem:[#allocation2 + $0x28] sm:$0xff] 0.0
    %121 = vst [vmem:[#allocation2 + $0x30] sm:$0xff] 0.0
    %122 = vst [vmem:[#allocation2 + $0x38] sm:$0xff] 0.0
    %123 = vst [vmem:[#allocation2 + $0x40] sm:$0xff] 0.0
    %124 = vst [vmem:[#allocation2 + $0x48] sm:$0xff] 0.0
    %125 = vst [vmem:[#allocation2 + $0x50] sm:$0xff] 0.0
    %126 = vst [vmem:[#allocation2 + $0x58] sm:$0xff] 0.0
    %127 = vst [vmem:[#allocation2 + $0x60] sm:$0xff] 0.0
    %128 = vst [vmem:[#allocation2 + $0x68] sm:$0xff] 0.0
    %129 = vst [vmem:[#allocation2 + $0x70] sm:$0xff] 0.0
    %130 = vst [vmem:[#allocation2 + $0x78] sm:$0xff] 0.0
    %131 = vst [vmem:[#allocation3] sm:$0xff] 0.0
    %132 = vst [vmem:[#allocation3 + $0x8] sm:$0xff] 0.0
    %133 = vst [vmem:[#allocation3 + $0x10] sm:$0xff] 0.0
    %134 = vst [vmem:[#allocation3 + $0x18] sm:$0xff] 0.0
    %135 = vst [vmem:[#allocation3 + $0x20] sm:$0xff] 0.0
    %136 = vst [vmem:[#allocation3 + $0x28] sm:$0xff] 0.0
    %137 = vst [vmem:[#allocation3 + $0x30] sm:$0xff] 0.0
    %138 = vst [vmem:[#allocation3 + $0x38] sm:$0xff] 0.0
    %139 = vst [vmem:[#allocation4] sm:$0xff] 0.0
    %140 = vst [vmem:[#allocation4 + $0x8] sm:$0xff] 0.0
    %141 = vst [vmem:[#allocation4 + $0x10] sm:$0xff] 0.0
    %142 = vst [vmem:[#allocation4 + $0x18] sm:$0xff] 0.0
    %143 = vst [vmem:[#allocation5] sm:$0xff] 0.0
    %v144 = vld [vmem:[%s0] sm:$0x1]
    %v145 = vld [vmem:[%s0 + $0x28] sm:$0x1]
    %v148 = vrot.slane %v145, 7
    %vm149 = vcmask 1041409
    %v150 = vsel %vm149, %v148, %v144
    %vm152 = vcmask 779264
    %153 = vst.msk [vmem:[#allocation2] sm:$0x3] %vm152, %v150
    %v154 = vld [vmem:[%s0 + $0x1] sm:$0x1]
    %v155 = vld [vmem:[%s0 + $0x29] sm:$0x1]
    %v158 = vrot.slane %v155, 7
    %v159 = vsel %vm149, %v158, %v154
    %161 = vst.msk [vmem:[#allocation2 + $0x8] sm:$0x3] %vm152, %v159
    %v162 = vld [vmem:[%s0 + $0x2] sm:$0x1]
    %v163 = vld [vmem:[%s0 + $0x2a] sm:$0x1]
    %v166 = vrot.slane %v163, 7
    %v167 = vsel %vm149, %v166, %v162
    %169 = vst.msk [vmem:[#allocation2 + $0x10] sm:$0x3] %vm152, %v167
    %v170 = vld [vmem:[%s0 + $0x3] sm:$0x1]
    %v171 = vld [vmem:[%s0 + $0x2b] sm:$0x1]
    %v174 = vrot.slane %v171, 7
    %v175 = vsel %vm149, %v174, %v170
    %177 = vst.msk [vmem:[#allocation2 + $0x18] sm:$0x3] %vm152, %v175
    %v178 = vld [vmem:[%s0 + $0x2] sm:$0x1]
    %v179 = vld [vmem:[%s0 + $0x2a] sm:$0x1]
    %v182 = vrot.slane %v178, 6
    %v183 = vrot.slane %v179, 5
    %vm184 = vcmask 1043459
    %v185 = vsel %vm184, %v183, %v182
    %vm187 = vcmask 781314
    %188 = vst.msk [vmem:[#allocation2] sm:$0xc] %vm187, %v185
    %v189 = vld [vmem:[%s0 + $0x3] sm:$0x1]
    %v190 = vld [vmem:[%s0 + $0x2b] sm:$0x1]
    %v193 = vrot.slane %v189, 6
    %v194 = vrot.slane %v190, 5
    %v195 = vsel %vm184, %v194, %v193
    %197 = vst.msk [vmem:[#allocation2 + $0x8] sm:$0xc] %vm187, %v195
    %v198 = vld [vmem:[%s0 + $0x4] sm:$0x1]
    %v199 = vld [vmem:[%s0 + $0x2c] sm:$0x1]
    %v202 = vrot.slane %v198, 6
    %v203 = vrot.slane %v199, 5
    %v204 = vsel %vm184, %v203, %v202
    %206 = vst.msk [vmem:[#allocation2 + $0x10] sm:$0xc] %vm187, %v204
    %v207 = vld [vmem:[%s0 + $0x5] sm:$0x1]
    %v208 = vld [vmem:[%s0 + $0x2d] sm:$0x1]
    %v211 = vrot.slane %v207, 6
    %v212 = vrot.slane %v208, 5
    %v213 = vsel %vm184, %v212, %v211
    %215 = vst.msk [vmem:[#allocation2 + $0x18] sm:$0xc] %vm187, %v213
    %v216 = vld [vmem:[%s0 + $0x4] sm:$0x1]
    %v217 = vld [vmem:[%s0 + $0x2c] sm:$0x1]
    %v220 = vrot.slane %v216, 4
    %v221 = vrot.slane %v217, 3
    %vm222 = vcmask 1045509
    %v223 = vsel %vm222, %v221, %v220
    %vm225 = vcmask 783364
    %226 = vst.msk [vmem:[#allocation2] sm:$0x30] %vm225, %v223
    %v227 = vld [vmem:[%s0 + $0x5] sm:$0x1]
    %v228 = vld [vmem:[%s0 + $0x2d] sm:$0x1]
    %v231 = vrot.slane %v227, 4
    %v232 = vrot.slane %v228, 3
    %v233 = vsel %vm222, %v232, %v231
    %235 = vst.msk [vmem:[#allocation2 + $0x8] sm:$0x30] %vm225, %v233
    %v236 = vld [vmem:[%s0 + $0x6] sm:$0x1]
    %v237 = vld [vmem:[%s0 + $0x2e] sm:$0x1]
    %v240 = vrot.slane %v236, 4
    %v241 = vrot.slane %v237, 3
    %v242 = vsel %vm222, %v241, %v240
    %244 = vst.msk [vmem:[#allocation2 + $0x10] sm:$0x30] %vm225, %v242
    %v245 = vld [vmem:[%s0 + $0x7] sm:$0x1]
    %v246 = vld [vmem:[%s0 + $0x2f] sm:$0x1]
    %v249 = vrot.slane %v245, 4
    %v250 = vrot.slane %v246, 3
    %v251 = vsel %vm222, %v250, %v249
    %253 = vst.msk [vmem:[#allocation2 + $0x18] sm:$0x30] %vm225, %v251
    %v254 = vld [vmem:[%s0 + $0x6] sm:$0x1]
    %v255 = vld [vmem:[%s0 + $0x2e] sm:$0x1]
    %v258 = vrot.slane %v254, 2
    %v259 = vrot.slane %v255, 1
    %vm260 = vcmask 1047559
    %v261 = vsel %vm260, %v259, %v258
    %vm263 = vcmask 785414
    %264 = vst.msk [vmem:[#allocation2] sm:$0xc0] %vm263, %v261
    %v265 = vld [vmem:[%s0 + $0x7] sm:$0x1]
    %v266 = vld [vmem:[%s0 + $0x2f] sm:$0x1]
    %v269 = vrot.slane %v265, 2
    %v270 = vrot.slane %v266, 1
    %v271 = vsel %vm260, %v270, %v269
    %273 = vst.msk [vmem:[#allocation2 + $0x8] sm:$0xc0] %vm263, %v271
    %v274 = vld [vmem:[%s0 + $0x8] sm:$0x1]
    %v275 = vld [vmem:[%s0 + $0x30] sm:$0x1]
    %v278 = vrot.slane %v274, 2
    %v279 = vrot.slane %v275, 1
    %v280 = vsel %vm260, %v279, %v278
    %282 = vst.msk [vmem:[#allocation2 + $0x10] sm:$0xc0] %vm263, %v280
    %v283 = vld [vmem:[%s0 + $0x9] sm:$0x1]
    %v284 = vld [vmem:[%s0 + $0x31] sm:$0x1]
    %v287 = vrot.slane %v283, 2
    %v288 = vrot.slane %v284, 1
    %v289 = vsel %vm260, %v288, %v287
    %291 = vst.msk [vmem:[#allocation2 + $0x18] sm:$0xc0] %vm263, %v289
    %v292 = vld [vmem:[%s0 + $0x8] sm:$0x1]
    %v293 = vld [vmem:[%s0 + $0x30] sm:$0x1]
    %v296 = vrot.slane %v293, 7
    %v297 = vsel %vm149, %v296, %v292
    %299 = vst.msk [vmem:[#allocation2 + $0x20] sm:$0x3] %vm152, %v297
    %v300 = vld [vmem:[%s0 + $0x9] sm:$0x1]
    %v301 = vld [vmem:[%s0 + $0x31] sm:$0x1]
    %v304 = vrot.slane %v301, 7
    %v305 = vsel %vm149, %v304, %v300
    %307 = vst.msk [vmem:[#allocation2 + $0x28] sm:$0x3] %vm152, %v305
    %v308 = vld [vmem:[%s0 + $0xa] sm:$0x1]
    %v309 = vld [vmem:[%s0 + $0x32] sm:$0x1]
    %v312 = vrot.slane %v309, 7
    %v313 = vsel %vm149, %v312, %v308
    %315 = vst.msk [vmem:[#allocation2 + $0x30] sm:$0x3] %vm152, %v313
    %v316 = vld [vmem:[%s0 + $0xb] sm:$0x1]
    %v317 = vld [vmem:[%s0 + $0x33] sm:$0x1]
    %v320 = vrot.slane %v317, 7
    %v321 = vsel %vm149, %v320, %v316
    %323 = vst.msk [vmem:[#allocation2 + $0x38] sm:$0x3] %vm152, %v321
    %v324 = vld [vmem:[%s0 + $0xa] sm:$0x1]
    %v325 = vld [vmem:[%s0 + $0x32] sm:$0x1]
    %v328 = vrot.slane %v324, 6
    %v329 = vrot.slane %v325, 5
    %v330 = vsel %vm184, %v329, %v328
    %332 = vst.msk [vmem:[#allocation2 + $0x20] sm:$0xc] %vm187, %v330
    %v333 = vld [vmem:[%s0 + $0xb] sm:$0x1]
    %v334 = vld [vmem:[%s0 + $0x33] sm:$0x1]
    %v337 = vrot.slane %v333, 6
    %v338 = vrot.slane %v334, 5
    %v339 = vsel %vm184, %v338, %v337
    %341 = vst.msk [vmem:[#allocation2 + $0x28] sm:$0xc] %vm187, %v339
    %v342 = vld [vmem:[%s0 + $0xc] sm:$0x1]
    %v343 = vld [vmem:[%s0 + $0x34] sm:$0x1]
    %v346 = vrot.slane %v342, 6
    %v347 = vrot.slane %v343, 5
    %v348 = vsel %vm184, %v347, %v346
    %350 = vst.msk [vmem:[#allocation2 + $0x30] sm:$0xc] %vm187, %v348
    %v351 = vld [vmem:[%s0 + $0xd] sm:$0x1]
    %v352 = vld [vmem:[%s0 + $0x35] sm:$0x1]
    %v355 = vrot.slane %v351, 6
    %v356 = vrot.slane %v352, 5
    %v357 = vsel %vm184, %v356, %v355
    %359 = vst.msk [vmem:[#allocation2 + $0x38] sm:$0xc] %vm187, %v357
    %v360 = vld [vmem:[%s0 + $0xc] sm:$0x1]
    %v361 = vld [vmem:[%s0 + $0x34] sm:$0x1]
    %v364 = vrot.slane %v360, 4
    %v365 = vrot.slane %v361, 3
    %v366 = vsel %vm222, %v365, %v364
    %368 = vst.msk [vmem:[#allocation2 + $0x20] sm:$0x30] %vm225, %v366
    %v369 = vld [vmem:[%s0 + $0xd] sm:$0x1]
    %v370 = vld [vmem:[%s0 + $0x35] sm:$0x1]
    %v373 = vrot.slane %v369, 4
    %v374 = vrot.slane %v370, 3
    %v375 = vsel %vm222, %v374, %v373
    %377 = vst.msk [vmem:[#allocation2 + $0x28] sm:$0x30] %vm225, %v375
    %v378 = vld [vmem:[%s0 + $0xe] sm:$0x1]
    %v379 = vld [vmem:[%s0 + $0x36] sm:$0x1]
    %v382 = vrot.slane %v378, 4
    %v383 = vrot.slane %v379, 3
    %v384 = vsel %vm222, %v383, %v382
    %386 = vst.msk [vmem:[#allocation2 + $0x30] sm:$0x30] %vm225, %v384
    %v387 = vld [vmem:[%s0 + $0xf] sm:$0x1]
    %v388 = vld [vmem:[%s0 + $0x37] sm:$0x1]
    %v391 = vrot.slane %v387, 4
    %v392 = vrot.slane %v388, 3
    %v393 = vsel %vm222, %v392, %v391
    %395 = vst.msk [vmem:[#allocation2 + $0x38] sm:$0x30] %vm225, %v393
    %v396 = vld [vmem:[%s0 + $0xe] sm:$0x1]
    %v397 = vld [vmem:[%s0 + $0x36] sm:$0x1]
    %v400 = vrot.slane %v396, 2
    %v401 = vrot.slane %v397, 1
    %v402 = vsel %vm260, %v401, %v400
    %404 = vst.msk [vmem:[#allocation2 + $0x20] sm:$0xc0] %vm263, %v402
    %v405 = vld [vmem:[%s0 + $0xf] sm:$0x1]
    %v406 = vld [vmem:[%s0 + $0x37] sm:$0x1]
    %v409 = vrot.slane %v405, 2
    %v410 = vrot.slane %v406, 1
    %v411 = vsel %vm260, %v410, %v409
    %413 = vst.msk [vmem:[#allocation2 + $0x28] sm:$0xc0] %vm263, %v411
    %v414 = vld [vmem:[%s0 + $0x10] sm:$0x1]
    %v415 = vld [vmem:[%s0 + $0x38] sm:$0x1]
    %v418 = vrot.slane %v414, 2
    %v419 = vrot.slane %v415, 1
    %v420 = vsel %vm260, %v419, %v418
    %422 = vst.msk [vmem:[#allocation2 + $0x30] sm:$0xc0] %vm263, %v420
    %v423 = vld [vmem:[%s0 + $0x11] sm:$0x1]
    %v424 = vld [vmem:[%s0 + $0x39] sm:$0x1]
    %v427 = vrot.slane %v423, 2
    %v428 = vrot.slane %v424, 1
    %v429 = vsel %vm260, %v428, %v427
    %431 = vst.msk [vmem:[#allocation2 + $0x38] sm:$0xc0] %vm263, %v429
    %v432 = vld [vmem:[%s0 + $0x10] sm:$0x1]
    %v433 = vld [vmem:[%s0 + $0x38] sm:$0x1]
    %v436 = vrot.slane %v433, 7
    %v437 = vsel %vm149, %v436, %v432
    %439 = vst.msk [vmem:[#allocation2 + $0x40] sm:$0x3] %vm152, %v437
    %v440 = vld [vmem:[%s0 + $0x11] sm:$0x1]
    %v441 = vld [vmem:[%s0 + $0x39] sm:$0x1]
    %v444 = vrot.slane %v441, 7
    %v445 = vsel %vm149, %v444, %v440
    %447 = vst.msk [vmem:[#allocation2 + $0x48] sm:$0x3] %vm152, %v445
    %v448 = vld [vmem:[%s0 + $0x12] sm:$0x1]
    %v449 = vld [vmem:[%s0 + $0x3a] sm:$0x1]
    %v452 = vrot.slane %v449, 7
    %v453 = vsel %vm149, %v452, %v448
    %455 = vst.msk [vmem:[#allocation2 + $0x50] sm:$0x3] %vm152, %v453
    %v456 = vld [vmem:[%s0 + $0x13] sm:$0x1]
    %v457 = vld [vmem:[%s0 + $0x3b] sm:$0x1]
    %v460 = vrot.slane %v457, 7
    %v461 = vsel %vm149, %v460, %v456
    %463 = vst.msk [vmem:[#allocation2 + $0x58] sm:$0x3] %vm152, %v461
    %v464 = vld [vmem:[%s0 + $0x12] sm:$0x1]
    %v465 = vld [vmem:[%s0 + $0x3a] sm:$0x1]
    %v468 = vrot.slane %v464, 6
    %v469 = vrot.slane %v465, 5
    %v470 = vsel %vm184, %v469, %v468
    %472 = vst.msk [vmem:[#allocation2 + $0x40] sm:$0xc] %vm187, %v470
    %v473 = vld [vmem:[%s0 + $0x13] sm:$0x1]
    %v474 = vld [vmem:[%s0 + $0x3b] sm:$0x1]
    %v477 = vrot.slane %v473, 6
    %v478 = vrot.slane %v474, 5
    %v479 = vsel %vm184, %v478, %v477
    %481 = vst.msk [vmem:[#allocation2 + $0x48] sm:$0xc] %vm187, %v479
    %v482 = vld [vmem:[%s0 + $0x14] sm:$0x1]
    %v483 = vld [vmem:[%s0 + $0x3c] sm:$0x1]
    %v486 = vrot.slane %v482, 6
    %v487 = vrot.slane %v483, 5
    %v488 = vsel %vm184, %v487, %v486
    %490 = vst.msk [vmem:[#allocation2 + $0x50] sm:$0xc] %vm187, %v488
    %v491 = vld [vmem:[%s0 + $0x15] sm:$0x1]
    %v492 = vld [vmem:[%s0 + $0x3d] sm:$0x1]
    %v495 = vrot.slane %v491, 6
    %v496 = vrot.slane %v492, 5
    %v497 = vsel %vm184, %v496, %v495
    %499 = vst.msk [vmem:[#allocation2 + $0x58] sm:$0xc] %vm187, %v497
    %v500 = vld [vmem:[%s0 + $0x14] sm:$0x1]
    %v501 = vld [vmem:[%s0 + $0x3c] sm:$0x1]
    %v504 = vrot.slane %v500, 4
    %v505 = vrot.slane %v501, 3
    %v506 = vsel %vm222, %v505, %v504
    %508 = vst.msk [vmem:[#allocation2 + $0x40] sm:$0x30] %vm225, %v506
    %v509 = vld [vmem:[%s0 + $0x15] sm:$0x1]
    %v510 = vld [vmem:[%s0 + $0x3d] sm:$0x1]
    %v513 = vrot.slane %v509, 4
    %v514 = vrot.slane %v510, 3
    %v515 = vsel %vm222, %v514, %v513
    %517 = vst.msk [vmem:[#allocation2 + $0x48] sm:$0x30] %vm225, %v515
    %v518 = vld [vmem:[%s0 + $0x16] sm:$0x1]
    %v519 = vld [vmem:[%s0 + $0x3e] sm:$0x1]
    %v522 = vrot.slane %v518, 4
    %v523 = vrot.slane %v519, 3
    %v524 = vsel %vm222, %v523, %v522
    %526 = vst.msk [vmem:[#allocation2 + $0x50] sm:$0x30] %vm225, %v524
    %v527 = vld [vmem:[%s0 + $0x17] sm:$0x1]
    %v528 = vld [vmem:[%s0 + $0x3f] sm:$0x1]
    %v531 = vrot.slane %v527, 4
    %v532 = vrot.slane %v528, 3
    %v533 = vsel %vm222, %v532, %v531
    %535 = vst.msk [vmem:[#allocation2 + $0x58] sm:$0x30] %vm225, %v533
    %v536 = vld [vmem:[%s0 + $0x16] sm:$0x1]
    %v537 = vld [vmem:[%s0 + $0x3e] sm:$0x1]
    %v540 = vrot.slane %v536, 2
    %v541 = vrot.slane %v537, 1
    %v542 = vsel %vm260, %v541, %v540
    %544 = vst.msk [vmem:[#allocation2 + $0x40] sm:$0xc0] %vm263, %v542
    %v545 = vld [vmem:[%s0 + $0x17] sm:$0x1]
    %v546 = vld [vmem:[%s0 + $0x3f] sm:$0x1]
    %v549 = vrot.slane %v545, 2
    %v550 = vrot.slane %v546, 1
    %v551 = vsel %vm260, %v550, %v549
    %553 = vst.msk [vmem:[#allocation2 + $0x48] sm:$0xc0] %vm263, %v551
    %v554 = vld [vmem:[%s0 + $0x18] sm:$0x1]
    %v555 = vld [vmem:[%s0 + $0x40] sm:$0x1]
    %v558 = vrot.slane %v554, 2
    %v559 = vrot.slane %v555, 1
    %v560 = vsel %vm260, %v559, %v558
    %562 = vst.msk [vmem:[#allocation2 + $0x50] sm:$0xc0] %vm263, %v560
    %v563 = vld [vmem:[%s0 + $0x19] sm:$0x1]
    %v564 = vld [vmem:[%s0 + $0x41] sm:$0x1]
    %v567 = vrot.slane %v563, 2
    %v568 = vrot.slane %v564, 1
    %v569 = vsel %vm260, %v568, %v567
    %571 = vst.msk [vmem:[#allocation2 + $0x58] sm:$0xc0] %vm263, %v569
    %v572 = vld [vmem:[%s0 + $0x18] sm:$0x1]
    %v573 = vld [vmem:[%s0 + $0x40] sm:$0x1]
    %v576 = vrot.slane %v573, 7
    %v577 = vsel %vm149, %v576, %v572
    %579 = vst.msk [vmem:[#allocation2 + $0x60] sm:$0x3] %vm152, %v577
    %v580 = vld [vmem:[%s0 + $0x19] sm:$0x1]
    %v581 = vld [vmem:[%s0 + $0x41] sm:$0x1]
    %v584 = vrot.slane %v581, 7
    %v585 = vsel %vm149, %v584, %v580
    %587 = vst.msk [vmem:[#allocation2 + $0x68] sm:$0x3] %vm152, %v585
    %v588 = vld [vmem:[%s0 + $0x1a] sm:$0x1]
    %v589 = vld [vmem:[%s0 + $0x42] sm:$0x1]
    %v592 = vrot.slane %v589, 7
    %v593 = vsel %vm149, %v592, %v588
    %595 = vst.msk [vmem:[#allocation2 + $0x70] sm:$0x3] %vm152, %v593
    %v596 = vld [vmem:[%s0 + $0x1b] sm:$0x1]
    %v597 = vld [vmem:[%s0 + $0x43] sm:$0x1]
    %v600 = vrot.slane %v597, 7
    %v601 = vsel %vm149, %v600, %v596
    %603 = vst.msk [vmem:[#allocation2 + $0x78] sm:$0x3] %vm152, %v601
    %v604 = vld [vmem:[%s0 + $0x1a] sm:$0x1]
    %v605 = vld [vmem:[%s0 + $0x42] sm:$0x1]
    %v608 = vrot.slane %v604, 6
    %v609 = vrot.slane %v605, 5
    %v610 = vsel %vm184, %v609, %v608
    %612 = vst.msk [vmem:[#allocation2 + $0x60] sm:$0xc] %vm187, %v610
    %v613 = vld [vmem:[%s0 + $0x1b] sm:$0x1]
    %v614 = vld [vmem:[%s0 + $0x43] sm:$0x1]
    %v617 = vrot.slane %v613, 6
    %v618 = vrot.slane %v614, 5
    %v619 = vsel %vm184, %v618, %v617
    %621 = vst.msk [vmem:[#allocation2 + $0x68] sm:$0xc] %vm187, %v619
    %v622 = vld [vmem:[%s0 + $0x1c] sm:$0x1]
    %v623 = vld [vmem:[%s0 + $0x44] sm:$0x1]
    %v626 = vrot.slane %v622, 6
    %v627 = vrot.slane %v623, 5
    %v628 = vsel %vm184, %v627, %v626
    %630 = vst.msk [vmem:[#allocation2 + $0x70] sm:$0xc] %vm187, %v628
    %v631 = vld [vmem:[%s0 + $0x1d] sm:$0x1]
    %v632 = vld [vmem:[%s0 + $0x45] sm:$0x1]
    %v635 = vrot.slane %v631, 6
    %v636 = vrot.slane %v632, 5
    %v637 = vsel %vm184, %v636, %v635
    %639 = vst.msk [vmem:[#allocation2 + $0x78] sm:$0xc] %vm187, %v637
    %v640 = vld [vmem:[%s0 + $0x1c] sm:$0x1]
    %v641 = vld [vmem:[%s0 + $0x44] sm:$0x1]
    %v644 = vrot.slane %v640, 4
    %v645 = vrot.slane %v641, 3
    %v646 = vsel %vm222, %v645, %v644
    %648 = vst.msk [vmem:[#allocation2 + $0x60] sm:$0x30] %vm225, %v646
    %v649 = vld [vmem:[%s0 + $0x1d] sm:$0x1]
    %v650 = vld [vmem:[%s0 + $0x45] sm:$0x1]
    %v653 = vrot.slane %v649, 4
    %v654 = vrot.slane %v650, 3
    %v655 = vsel %vm222, %v654, %v653
    %657 = vst.msk [vmem:[#allocation2 + $0x68] sm:$0x30] %vm225, %v655
    %v658 = vld [vmem:[%s0 + $0x1e] sm:$0x1]
    %v659 = vld [vmem:[%s0 + $0x46] sm:$0x1]
    %v662 = vrot.slane %v658, 4
    %v663 = vrot.slane %v659, 3
    %v664 = vsel %vm222, %v663, %v662
    %666 = vst.msk [vmem:[#allocation2 + $0x70] sm:$0x30] %vm225, %v664
    %v667 = vld [vmem:[%s0 + $0x1f] sm:$0x1]
    %v668 = vld [vmem:[%s0 + $0x47] sm:$0x1]
    %v671 = vrot.slane %v667, 4
    %v672 = vrot.slane %v668, 3
    %v673 = vsel %vm222, %v672, %v671
    %675 = vst.msk [vmem:[#allocation2 + $0x78] sm:$0x30] %vm225, %v673
    %v676 = vld [vmem:[%s0 + $0x1e] sm:$0x1]
    %v677 = vld [vmem:[%s0 + $0x46] sm:$0x1]
    %v680 = vrot.slane %v676, 2
    %v681 = vrot.slane %v677, 1
    %v682 = vsel %vm260, %v681, %v680
    %684 = vst.msk [vmem:[#allocation2 + $0x60] sm:$0xc0] %vm263, %v682
    %v685 = vld [vmem:[%s0 + $0x1f] sm:$0x1]
    %v686 = vld [vmem:[%s0 + $0x47] sm:$0x1]
    %v689 = vrot.slane %v685, 2
    %v690 = vrot.slane %v686, 1
    %v691 = vsel %vm260, %v690, %v689
    %693 = vst.msk [vmem:[#allocation2 + $0x68] sm:$0xc0] %vm263, %v691
    %v694 = vld [vmem:[%s0 + $0x20] sm:$0x1]
    %v695 = vld [vmem:[%s0 + $0x48] sm:$0x1]
    %v698 = vrot.slane %v694, 2
    %v699 = vrot.slane %v695, 1
    %v700 = vsel %vm260, %v699, %v698
    %702 = vst.msk [vmem:[#allocation2 + $0x70] sm:$0xc0] %vm263, %v700
    %v703 = vld [vmem:[%s0 + $0x21] sm:$0x1]
    %v704 = vld [vmem:[%s0 + $0x49] sm:$0x1]
    %v707 = vrot.slane %v703, 2
    %v708 = vrot.slane %v704, 1
    %v709 = vsel %vm260, %v708, %v707
    %711 = vst.msk [vmem:[#allocation2 + $0x78] sm:$0xc0] %vm263, %v709
    %v712 = vld [vmem:[#allocation2] sm:$0xff]
    %v713 = vld [vmem:[#allocation2 + $0x8] sm:$0xff]
    %v714 = vld [vmem:[#allocation2 + $0x10] sm:$0xff]
    %v715 = vld [vmem:[#allocation2 + $0x18] sm:$0xff]
    %v716 = vld [vmem:[#allocation2 + $0x20] sm:$0xff]
    %v717 = vld [vmem:[#allocation2 + $0x28] sm:$0xff]
    %v718 = vld [vmem:[#allocation2 + $0x30] sm:$0xff]
    %v719 = vld [vmem:[#allocation2 + $0x38] sm:$0xff]
    %v720 = vld [vmem:[#allocation2 + $0x40] sm:$0xff]
    %v721 = vld [vmem:[#allocation2 + $0x48] sm:$0xff]
    %v722 = vld [vmem:[#allocation2 + $0x50] sm:$0xff]
    %v723 = vld [vmem:[#allocation2 + $0x58] sm:$0xff]
    %v724 = vld [vmem:[#allocation2 + $0x60] sm:$0xff]
    %v725 = vld [vmem:[#allocation2 + $0x68] sm:$0xff]
    %v726 = vld [vmem:[#allocation2 + $0x70] sm:$0xff]
    %v727 = vld [vmem:[#allocation2 + $0x78] sm:$0xff]
    %v728 = vld [vmem:[%s1] sm:$0xff]
    %v729 = vld [vmem:[%s1 + $0x8] sm:$0xff]
    %v730 = vld [vmem:[%s1 + $0x10] sm:$0xff]
    %v731 = vld [vmem:[%s1 + $0x18] sm:$0xff]
    %v732 = vld [vmem:[%s1 + $0x20] sm:$0xff]
    %v733 = vld [vmem:[%s1 + $0x28] sm:$0xff]
    %v734 = vld [vmem:[%s1 + $0x30] sm:$0xff]
    %v735 = vld [vmem:[%s1 + $0x38] sm:$0xff]
    %v736 = vld [vmem:[%s1 + $0x40] sm:$0xff]
    %v737 = vld [vmem:[%s1 + $0x48] sm:$0xff]
    %v738 = vld [vmem:[%s1 + $0x50] sm:$0xff]
    %v739 = vld [vmem:[%s1 + $0x58] sm:$0xff]
    %v740 = vld [vmem:[%s1 + $0x60] sm:$0xff]
    %v741 = vld [vmem:[%s1 + $0x68] sm:$0xff]
    %v742 = vld [vmem:[%s1 + $0x70] sm:$0xff]
    %v743 = vld [vmem:[%s1 + $0x78] sm:$0xff]
    %v744 = vld [vmem:[%s1 + $0x80] sm:$0xff]
    %v745 = vld [vmem:[%s1 + $0x88] sm:$0xff]
    %v746 = vld [vmem:[%s1 + $0x90] sm:$0xff]
    %v747 = vld [vmem:[%s1 + $0x98] sm:$0xff]
    %v748 = vld [vmem:[%s1 + $0xa0] sm:$0xff]
    %v749 = vld [vmem:[%s1 + $0xa8] sm:$0xff]
    %v750 = vld [vmem:[%s1 + $0xb0] sm:$0xff]
    %v751 = vld [vmem:[%s1 + $0xb8] sm:$0xff]
    %v752 = vld [vmem:[%s1 + $0xc0] sm:$0xff]
    %v753 = vld [vmem:[%s1 + $0xc8] sm:$0xff]
    %v754 = vld [vmem:[%s1 + $0xd0] sm:$0xff]
    %v755 = vld [vmem:[%s1 + $0xd8] sm:$0xff]
    %v756 = vld [vmem:[%s1 + $0xe0] sm:$0xff]
    %v757 = vld [vmem:[%s1 + $0xe8] sm:$0xff]
    %v758 = vld [vmem:[%s1 + $0xf0] sm:$0xff]
    %v759 = vld [vmem:[%s1 + $0xf8] sm:$0xff]
    %v760 = vld [vmem:[%s1 + $0x100] sm:$0xff]
    %v761 = vld [vmem:[%s1 + $0x108] sm:$0xff]
    %v762 = vld [vmem:[%s1 + $0x110] sm:$0xff]
    %v763 = vld [vmem:[%s1 + $0x118] sm:$0xff]
    %v764 = vld [vmem:[%s1 + $0x120] sm:$0xff]
    %v765 = vld [vmem:[%s1 + $0x128] sm:$0xff]
    %v766 = vld [vmem:[%s1 + $0x130] sm:$0xff]
    %v767 = vld [vmem:[%s1 + $0x138] sm:$0xff]
    %v768 = vld [vmem:[%s1 + $0x140] sm:$0xff]
    %v769 = vld [vmem:[%s1 + $0x148] sm:$0xff]
    %v770 = vld [vmem:[%s1 + $0x150] sm:$0xff]
    %v771 = vld [vmem:[%s1 + $0x158] sm:$0xff]
    %v772 = vld [vmem:[%s1 + $0x160] sm:$0xff]
    %v773 = vld [vmem:[%s1 + $0x168] sm:$0xff]
    %v774 = vld [vmem:[%s1 + $0x170] sm:$0xff]
    %v775 = vld [vmem:[%s1 + $0x178] sm:$0xff]
    %v776 = vld [vmem:[%s1 + $0x180] sm:$0xff]
    %v777 = vld [vmem:[%s1 + $0x188] sm:$0xff]
    %v778 = vld [vmem:[%s1 + $0x190] sm:$0xff]
    %v779 = vld [vmem:[%s1 + $0x198] sm:$0xff]
    %v780 = vld [vmem:[%s1 + $0x1a0] sm:$0xff]
    %v781 = vld [vmem:[%s1 + $0x1a8] sm:$0xff]
    %v782 = vld [vmem:[%s1 + $0x1b0] sm:$0xff]
    %v783 = vld [vmem:[%s1 + $0x1b8] sm:$0xff]
    %v784 = vld [vmem:[%s1 + $0x1c0] sm:$0xff]
    %v785 = vld [vmem:[%s1 + $0x1c8] sm:$0xff]
    %v786 = vld [vmem:[%s1 + $0x1d0] sm:$0xff]
    %v787 = vld [vmem:[%s1 + $0x1d8] sm:$0xff]
    %v788 = vld [vmem:[%s1 + $0x1e0] sm:$0xff]
    %v789 = vld [vmem:[%s1 + $0x1e8] sm:$0xff]
    %v790 = vld [vmem:[%s1 + $0x1f0] sm:$0xff]
    %v791 = vld [vmem:[%s1 + $0x1f8] sm:$0xff]
    %v792 = vld [vmem:[%s2] sm:$0x1]
    %v794 = vperm.slane %v792, 0
    %796 = vmatpush.msra.mxu0 %v743
    %797 = vmatpush.msra.mxu0 %v742
    %798 = vmatpush.msra.mxu0 %v741
    %799 = vmatpush.msra.mxu0 %v740
    %800 = vmatpush.msra.mxu0 %v739
    %801 = vmatpush.msra.mxu0 %v738
    %802 = vmatpush.msra.mxu0 %v737
    %803 = vmatpush.msra.mxu0 %v736
    %804 = vmatpush.msra.mxu0 %v735
    %805 = vmatpush.msra.mxu0 %v734
    %806 = vmatpush.msra.mxu0 %v733
    %807 = vmatpush.msra.mxu0 %v732
    %808 = vmatpush.msra.mxu0 %v731
    %809 = vmatpush.msra.mxu0 %v730
    %810 = vmatpush.msra.mxu0 %v729
    %811 = vmatpush.msra.mxu0 %v728
    %812 = vmatmul.f32.gmra.mxu0 %v712
    %v813 = vpop.f32.mrf.mxu0
    %v814 = vadd.f32 %v794, %v813
    %815 = vmatmul.f32.gmra.mxu0 %v716
    %v816 = vpop.f32.mrf.mxu0
    %v817 = vadd.f32 %v794, %v816
    %818 = vmatmul.f32.gmra.mxu0 %v720
    %v819 = vpop.f32.mrf.mxu0
    %v820 = vadd.f32 %v794, %v819
    %821 = vmatmul.f32.gmra.mxu0 %v724
    %v822 = vpop.f32.mrf.mxu0
    %v823 = vadd.f32 %v794, %v822
    %824 = vdwg.mxu0
    %825 = vmatpush.msra.mxu0 %v759
    %826 = vmatpush.msra.mxu0 %v758
    %827 = vmatpush.msra.mxu0 %v757
    %828 = vmatpush.msra.mxu0 %v756
    %829 = vmatpush.msra.mxu0 %v755
    %830 = vmatpush.msra.mxu0 %v754
    %831 = vmatpush.msra.mxu0 %v753
    %832 = vmatpush.msra.mxu0 %v752
    %833 = vmatpush.msra.mxu0 %v751
    %834 = vmatpush.msra.mxu0 %v750
    %835 = vmatpush.msra.mxu0 %v749
    %836 = vmatpush.msra.mxu0 %v748
    %837 = vmatpush.msra.mxu0 %v747
    %838 = vmatpush.msra.mxu0 %v746
    %839 = vmatpush.msra.mxu0 %v745
    %840 = vmatpush.msra.mxu0 %v744
    %841 = vmatmul.f32.gmra.mxu0 %v713
    %v842 = vpop.f32.mrf.mxu0
    %v843 = vadd.f32 %v814, %v842
    %844 = vmatmul.f32.gmra.mxu0 %v717
    %v845 = vpop.f32.mrf.mxu0
    %v846 = vadd.f32 %v817, %v845
    %847 = vmatmul.f32.gmra.mxu0 %v721
    %v848 = vpop.f32.mrf.mxu0
    %v849 = vadd.f32 %v820, %v848
    %850 = vmatmul.f32.gmra.mxu0 %v725
    %v851 = vpop.f32.mrf.mxu0
    %v852 = vadd.f32 %v823, %v851
    %853 = vdwg.mxu0
    %854 = vmatpush.msra.mxu0 %v775
    %855 = vmatpush.msra.mxu0 %v774
    %856 = vmatpush.msra.mxu0 %v773
    %857 = vmatpush.msra.mxu0 %v772
    %858 = vmatpush.msra.mxu0 %v771
    %859 = vmatpush.msra.mxu0 %v770
    %860 = vmatpush.msra.mxu0 %v769
    %861 = vmatpush.msra.mxu0 %v768
    %862 = vmatpush.msra.mxu0 %v767
    %863 = vmatpush.msra.mxu0 %v766
    %864 = vmatpush.msra.mxu0 %v765
    %865 = vmatpush.msra.mxu0 %v764
    %866 = vmatpush.msra.mxu0 %v763
    %867 = vmatpush.msra.mxu0 %v762
    %868 = vmatpush.msra.mxu0 %v761
    %869 = vmatpush.msra.mxu0 %v760
    %870 = vmatmul.f32.gmra.mxu0 %v714
    %v871 = vpop.f32.mrf.mxu0
    %v872 = vadd.f32 %v843, %v871
    %873 = vmatmul.f32.gmra.mxu0 %v718
    %v874 = vpop.f32.mrf.mxu0
    %v875 = vadd.f32 %v846, %v874
    %876 = vmatmul.f32.gmra.mxu0 %v722
    %v877 = vpop.f32.mrf.mxu0
    %v878 = vadd.f32 %v849, %v877
    %879 = vmatmul.f32.gmra.mxu0 %v726
    %v880 = vpop.f32.mrf.mxu0
    %v881 = vadd.f32 %v852, %v880
    %882 = vdwg.mxu0
    %883 = vmatpush.msra.mxu0 %v791
    %884 = vmatpush.msra.mxu0 %v790
    %885 = vmatpush.msra.mxu0 %v789
    %886 = vmatpush.msra.mxu0 %v788
    %887 = vmatpush.msra.mxu0 %v787
    %888 = vmatpush.msra.mxu0 %v786
    %889 = vmatpush.msra.mxu0 %v785
    %890 = vmatpush.msra.mxu0 %v784
    %891 = vmatpush.msra.mxu0 %v783
    %892 = vmatpush.msra.mxu0 %v782
    %893 = vmatpush.msra.mxu0 %v781
    %894 = vmatpush.msra.mxu0 %v780
    %895 = vmatpush.msra.mxu0 %v779
    %896 = vmatpush.msra.mxu0 %v778
    %897 = vmatpush.msra.mxu0 %v777
    %898 = vmatpush.msra.mxu0 %v776
    %899 = vmatmul.f32.gmra.mxu0 %v715
    %v900 = vpop.f32.mrf.mxu0
    %v901 = vadd.f32 %v872, %v900
    %902 = vmatmul.f32.gmra.mxu0 %v719
    %v903 = vpop.f32.mrf.mxu0
    %v904 = vadd.f32 %v875, %v903
    %905 = vmatmul.f32.gmra.mxu0 %v723
    %v906 = vpop.f32.mrf.mxu0
    %v907 = vadd.f32 %v878, %v906
    %908 = vmatmul.f32.gmra.mxu0 %v727
    %v909 = vpop.f32.mrf.mxu0
    %v910 = vadd.f32 %v881, %v909
    %911 = vdwg.mxu0
    %vm912 = vcmp.gt.f32.partialorder %v901, 0.0
    %vm913 = vcmp.gt.f32.partialorder %v904, 0.0
    %vm914 = vcmp.gt.f32.partialorder %v907, 0.0
    %vm915 = vcmp.gt.f32.partialorder %v910, 0.0
    %v916 = vmul.f32 %v901, 0.2
    %v917 = vmul.f32 %v904, 0.2
    %v918 = vmul.f32 %v907, 0.2
    %v919 = vmul.f32 %v910, 0.2
    %v920 = vsel %vm912, %v901, %v916
    %v921 = vsel %vm913, %v904, %v917
    %v922 = vsel %vm914, %v907, %v918
    %v923 = vsel %vm915, %v910, %v919
    %924 = vst [vmem:[#allocation3 + $0x8] sm:$0x3] %v920
    %v926 = vrot.slane %v920, 2
    %928 = vst [vmem:[#allocation3 + $0x10] sm:$0x3] %v926
    %v929 = vrot.slane %v920, 4
    %931 = vst [vmem:[#allocation3 + $0x18] sm:$0x3] %v929
    %932 = vst [vmem:[#allocation3] sm:$0xc] %v920
    %933 = vst [vmem:[#allocation3 + $0x8] sm:$0xc] %v926
    %934 = vst [vmem:[#allocation3 + $0x10] sm:$0xc] %v929
    %v936 = vrot.slane %v921, 6
    %938 = vst [vmem:[#allocation3 + $0x18] sm:$0xc] %v936
    %939 = vst [vmem:[#allocation3] sm:$0x30] %v926
    %v940 = vrot.slane %v921, 4
    %942 = vst [vmem:[#allocation3 + $0x8] sm:$0x30] %v940
    %943 = vst [vmem:[#allocation3 + $0x10] sm:$0x30] %v936
    %944 = vst [vmem:[#allocation3 + $0x18] sm:$0x30] %v921
    %945 = vst [vmem:[#allocation3] sm:$0xc0] %v940
    %946 = vst [vmem:[#allocation3 + $0x8] sm:$0xc0] %v936
    %947 = vst [vmem:[#allocation3 + $0x10] sm:$0xc0] %v921
    %v949 = vrot.slane %v922, 2
    %951 = vst [vmem:[#allocation3 + $0x18] sm:$0xc0] %v949
    %952 = vst [vmem:[#allocation3 + $0x20] sm:$0x3] %v936
    %953 = vst [vmem:[#allocation3 + $0x28] sm:$0x3] %v922
    %954 = vst [vmem:[#allocation3 + $0x30] sm:$0x3] %v949
    %v955 = vrot.slane %v922, 4
    %957 = vst [vmem:[#allocation3 + $0x38] sm:$0x3] %v955
    %958 = vst [vmem:[#allocation3 + $0x20] sm:$0xc] %v922
    %959 = vst [vmem:[#allocation3 + $0x28] sm:$0xc] %v949
    %960 = vst [vmem:[#allocation3 + $0x30] sm:$0xc] %v955
    %v962 = vrot.slane %v923, 6
    %964 = vst [vmem:[#allocation3 + $0x38] sm:$0xc] %v962
    %965 = vst [vmem:[#allocation3 + $0x20] sm:$0x30] %v949
    %v966 = vrot.slane %v923, 4
    %968 = vst [vmem:[#allocation3 + $0x28] sm:$0x30] %v966
    %969 = vst [vmem:[#allocation3 + $0x30] sm:$0x30] %v962
    %970 = vst [vmem:[#allocation3 + $0x38] sm:$0x30] %v923
    %971 = vst [vmem:[#allocation3 + $0x20] sm:$0xc0] %v966
    %972 = vst [vmem:[#allocation3 + $0x28] sm:$0xc0] %v962
    %973 = vst [vmem:[#allocation3 + $0x30] sm:$0xc0] %v923
    %v974 = vld [vmem:[#allocation3] sm:$0xff]
    %v975 = vld [vmem:[#allocation3 + $0x8] sm:$0xff]
    %v976 = vld [vmem:[#allocation3 + $0x10] sm:$0xff]
    %v977 = vld [vmem:[#allocation3 + $0x18] sm:$0xff]
    %v978 = vld [vmem:[#allocation3 + $0x20] sm:$0xff]
    %v979 = vld [vmem:[#allocation3 + $0x28] sm:$0xff]
    %v980 = vld [vmem:[#allocation3 + $0x30] sm:$0xff]
    %v981 = vld [vmem:[#allocation3 + $0x38] sm:$0xff]
    %v982 = vld [vmem:[#allocation7] sm:$0xff]
    %v983 = vld [vmem:[#allocation7 + $0x8] sm:$0xff]
    %v984 = vld [vmem:[#allocation7 + $0x10] sm:$0xff]
    %v985 = vld [vmem:[#allocation7 + $0x18] sm:$0xff]
    %v986 = vld [vmem:[#allocation7 + $0x20] sm:$0xff]
    %v987 = vld [vmem:[#allocation7 + $0x28] sm:$0xff]
    %v988 = vld [vmem:[#allocation7 + $0x30] sm:$0xff]
    %v989 = vld [vmem:[#allocation7 + $0x38] sm:$0xff]
    %v990 = vld [vmem:[#allocation7 + $0x40] sm:$0xff]
    %v991 = vld [vmem:[#allocation7 + $0x48] sm:$0xff]
    %v992 = vld [vmem:[#allocation7 + $0x50] sm:$0xff]
    %v993 = vld [vmem:[#allocation7 + $0x58] sm:$0xff]
    %v994 = vld [vmem:[#allocation7 + $0x60] sm:$0xff]
    %v995 = vld [vmem:[#allocation7 + $0x68] sm:$0xff]
    %v996 = vld [vmem:[#allocation7 + $0x70] sm:$0xff]
    %v997 = vld [vmem:[#allocation7 + $0x78] sm:$0xff]
    %v998 = vld [vmem:[#allocation7 + $0x80] sm:$0xff]
    %v999 = vld [vmem:[#allocation7 + $0x88] sm:$0xff]
    %v1000 = vld [vmem:[#allocation7 + $0x90] sm:$0xff]
    %v1001 = vld [vmem:[#allocation7 + $0x98] sm:$0xff]
    %v1002 = vld [vmem:[#allocation7 + $0xa0] sm:$0xff]
    %v1003 = vld [vmem:[#allocation7 + $0xa8] sm:$0xff]
    %v1004 = vld [vmem:[#allocation7 + $0xb0] sm:$0xff]
    %v1005 = vld [vmem:[#allocation7 + $0xb8] sm:$0xff]
    %v1006 = vld [vmem:[#allocation7 + $0xc0] sm:$0xff]
    %v1007 = vld [vmem:[#allocation7 + $0xc8] sm:$0xff]
    %v1008 = vld [vmem:[#allocation7 + $0xd0] sm:$0xff]
    %v1009 = vld [vmem:[#allocation7 + $0xd8] sm:$0xff]
    %v1010 = vld [vmem:[#allocation7 + $0xe0] sm:$0xff]
    %v1011 = vld [vmem:[#allocation7 + $0xe8] sm:$0xff]
    %v1012 = vld [vmem:[#allocation7 + $0xf0] sm:$0xff]
    %v1013 = vld [vmem:[#allocation7 + $0xf8] sm:$0xff]
    %v1014 = vld [vmem:[#allocation7 + $0x100] sm:$0xff]
    %v1015 = vld [vmem:[#allocation7 + $0x108] sm:$0xff]
    %v1016 = vld [vmem:[#allocation7 + $0x110] sm:$0xff]
    %v1017 = vld [vmem:[#allocation7 + $0x118] sm:$0xff]
    %v1018 = vld [vmem:[#allocation7 + $0x120] sm:$0xff]
    %v1019 = vld [vmem:[#allocation7 + $0x128] sm:$0xff]
    %v1020 = vld [vmem:[#allocation7 + $0x130] sm:$0xff]
    %v1021 = vld [vmem:[#allocation7 + $0x138] sm:$0xff]
    %v1022 = vld [vmem:[#allocation7 + $0x140] sm:$0xff]
    %v1023 = vld [vmem:[#allocation7 + $0x148] sm:$0xff]
    %v1024 = vld [vmem:[#allocation7 + $0x150] sm:$0xff]
    %v1025 = vld [vmem:[#allocation7 + $0x158] sm:$0xff]
    %v1026 = vld [vmem:[#allocation7 + $0x160] sm:$0xff]
    %v1027 = vld [vmem:[#allocation7 + $0x168] sm:$0xff]
    %v1028 = vld [vmem:[#allocation7 + $0x170] sm:$0xff]
    %v1029 = vld [vmem:[#allocation7 + $0x178] sm:$0xff]
    %v1030 = vld [vmem:[#allocation7 + $0x180] sm:$0xff]
    %v1031 = vld [vmem:[#allocation7 + $0x188] sm:$0xff]
    %v1032 = vld [vmem:[#allocation7 + $0x190] sm:$0xff]
    %v1033 = vld [vmem:[#allocation7 + $0x198] sm:$0xff]
    %v1034 = vld [vmem:[#allocation7 + $0x1a0] sm:$0xff]
    %v1035 = vld [vmem:[#allocation7 + $0x1a8] sm:$0xff]
    %v1036 = vld [vmem:[#allocation7 + $0x1b0] sm:$0xff]
    %v1037 = vld [vmem:[#allocation7 + $0x1b8] sm:$0xff]
    %v1038 = vld [vmem:[#allocation7 + $0x1c0] sm:$0xff]
    %v1039 = vld [vmem:[#allocation7 + $0x1c8] sm:$0xff]
    %v1040 = vld [vmem:[#allocation7 + $0x1d0] sm:$0xff]
    %v1041 = vld [vmem:[#allocation7 + $0x1d8] sm:$0xff]
    %v1042 = vld [vmem:[#allocation7 + $0x1e0] sm:$0xff]
    %v1043 = vld [vmem:[#allocation7 + $0x1e8] sm:$0xff]
    %v1044 = vld [vmem:[#allocation7 + $0x1f0] sm:$0xff]
    %v1045 = vld [vmem:[#allocation7 + $0x1f8] sm:$0xff]
    %1046 = vmatpush.msra.mxu0 %v997
    %1047 = vmatpush.msra.mxu0 %v996
    %1048 = vmatpush.msra.mxu0 %v995
    %1049 = vmatpush.msra.mxu0 %v994
    %1050 = vmatpush.msra.mxu0 %v993
    %1051 = vmatpush.msra.mxu0 %v992
    %1052 = vmatpush.msra.mxu0 %v991
    %1053 = vmatpush.msra.mxu0 %v990
    %1054 = vmatpush.msra.mxu0 %v989
    %1055 = vmatpush.msra.mxu0 %v988
    %1056 = vmatpush.msra.mxu0 %v987
    %1057 = vmatpush.msra.mxu0 %v986
    %1058 = vmatpush.msra.mxu0 %v985
    %1059 = vmatpush.msra.mxu0 %v984
    %1060 = vmatpush.msra.mxu0 %v983
    %1061 = vmatpush.msra.mxu0 %v982
    %1062 = vmatmul.f32.gmra.mxu0 %v974
    %v1063 = vpop.f32.mrf.mxu0
    %v1064 = vadd.f32 0.0, %v1063
    %1065 = vmatmul.f32.gmra.mxu0 %v978
    %v1066 = vpop.f32.mrf.mxu0
    %v1067 = vadd.f32 0.0, %v1066
    %1068 = vdwg.mxu0
    %1069 = vmatpush.msra.mxu0 %v1013
    %1070 = vmatpush.msra.mxu0 %v1012
    %1071 = vmatpush.msra.mxu0 %v1011
    %1072 = vmatpush.msra.mxu0 %v1010
    %1073 = vmatpush.msra.mxu0 %v1009
    %1074 = vmatpush.msra.mxu0 %v1008
    %1075 = vmatpush.msra.mxu0 %v1007
    %1076 = vmatpush.msra.mxu0 %v1006
    %1077 = vmatpush.msra.mxu0 %v1005
    %1078 = vmatpush.msra.mxu0 %v1004
    %1079 = vmatpush.msra.mxu0 %v1003
    %1080 = vmatpush.msra.mxu0 %v1002
    %1081 = vmatpush.msra.mxu0 %v1001
    %1082 = vmatpush.msra.mxu0 %v1000
    %1083 = vmatpush.msra.mxu0 %v999
    %1084 = vmatpush.msra.mxu0 %v998
    %1085 = vmatmul.f32.gmra.mxu0 %v975
    %v1086 = vpop.f32.mrf.mxu0
    %v1087 = vadd.f32 %v1064, %v1086
    %1088 = vmatmul.f32.gmra.mxu0 %v979
    %v1089 = vpop.f32.mrf.mxu0
    %v1090 = vadd.f32 %v1067, %v1089
    %1091 = vdwg.mxu0
    %1092 = vmatpush.msra.mxu0 %v1029
    %1093 = vmatpush.msra.mxu0 %v1028
    %1094 = vmatpush.msra.mxu0 %v1027
    %1095 = vmatpush.msra.mxu0 %v1026
    %1096 = vmatpush.msra.mxu0 %v1025
    %1097 = vmatpush.msra.mxu0 %v1024
    %1098 = vmatpush.msra.mxu0 %v1023
    %1099 = vmatpush.msra.mxu0 %v1022
    %1100 = vmatpush.msra.mxu0 %v1021
    %1101 = vmatpush.msra.mxu0 %v1020
    %1102 = vmatpush.msra.mxu0 %v1019
    %1103 = vmatpush.msra.mxu0 %v1018
    %1104 = vmatpush.msra.mxu0 %v1017
    %1105 = vmatpush.msra.mxu0 %v1016
    %1106 = vmatpush.msra.mxu0 %v1015
    %1107 = vmatpush.msra.mxu0 %v1014
    %1108 = vmatmul.f32.gmra.mxu0 %v976
    %v1109 = vpop.f32.mrf.mxu0
    %v1110 = vadd.f32 %v1087, %v1109
    %1111 = vmatmul.f32.gmra.mxu0 %v980
    %v1112 = vpop.f32.mrf.mxu0
    %v1113 = vadd.f32 %v1090, %v1112
    %1114 = vdwg.mxu0
    %1115 = vmatpush.msra.mxu0 %v1045
    %1116 = vmatpush.msra.mxu0 %v1044
    %1117 = vmatpush.msra.mxu0 %v1043
    %1118 = vmatpush.msra.mxu0 %v1042
    %1119 = vmatpush.msra.mxu0 %v1041
    %1120 = vmatpush.msra.mxu0 %v1040
    %1121 = vmatpush.msra.mxu0 %v1039
    %1122 = vmatpush.msra.mxu0 %v1038
    %1123 = vmatpush.msra.mxu0 %v1037
    %1124 = vmatpush.msra.mxu0 %v1036
    %1125 = vmatpush.msra.mxu0 %v1035
    %1126 = vmatpush.msra.mxu0 %v1034
    %1127 = vmatpush.msra.mxu0 %v1033
    %1128 = vmatpush.msra.mxu0 %v1032
    %1129 = vmatpush.msra.mxu0 %v1031
    %1130 = vmatpush.msra.mxu0 %v1030
    %1131 = vmatmul.f32.gmra.mxu0 %v977
    %v1132 = vpop.f32.mrf.mxu0
    %v1133 = vadd.f32 %v1110, %v1132
    %1134 = vmatmul.f32.gmra.mxu0 %v981
    %v1135 = vpop.f32.mrf.mxu0
    %v1136 = vadd.f32 %v1113, %v1135
    %1137 = vdwg.mxu0
    %v1138 = vadd.f32 %v1133, %v1136
    %v1139 = vrot.slane %v1138, 4
    %v1140 = vadd.f32 %v1138, %v1139
    %v1141 = vrot.slane %v1140, 2
    %v1142 = vadd.f32 %v1140, %v1141
    %v1143 = vrot.slane %v1142, 1
    %v1144 = vadd.f32 %v1142, %v1143
    %v1145 = vld [vmem:[%s4] sm:$0xff]
    %v1146 = vld [vmem:[%s4 + $0x8] sm:$0xff]
    %v1147 = vld [vmem:[%s4 + $0x10] sm:$0xff]
    %v1148 = vld [vmem:[%s4 + $0x18] sm:$0xff]
    %v1149 = vld [vmem:[%s4 + $0x20] sm:$0xff]
    %v1150 = vld [vmem:[%s4 + $0x28] sm:$0xff]
    %v1151 = vld [vmem:[%s4 + $0x30] sm:$0xff]
    %v1152 = vld [vmem:[%s4 + $0x38] sm:$0xff]
    %v1153 = vld [vmem:[%s4 + $0x40] sm:$0xff]
    %v1154 = vld [vmem:[%s4 + $0x48] sm:$0xff]
    %v1155 = vld [vmem:[%s4 + $0x50] sm:$0xff]
    %v1156 = vld [vmem:[%s4 + $0x58] sm:$0xff]
    %v1157 = vld [vmem:[%s4 + $0x60] sm:$0xff]
    %v1158 = vld [vmem:[%s4 + $0x68] sm:$0xff]
    %v1159 = vld [vmem:[%s4 + $0x70] sm:$0xff]
    %v1160 = vld [vmem:[%s4 + $0x78] sm:$0xff]
    %1161 = vmatpush.msra.mxu0 %v1160
    %1162 = vmatpush.msra.mxu0 %v1159
    %1163 = vmatpush.msra.mxu0 %v1158
    %1164 = vmatpush.msra.mxu0 %v1157
    %1165 = vmatpush.msra.mxu0 %v1156
    %1166 = vmatpush.msra.mxu0 %v1155
    %1167 = vmatpush.msra.mxu0 %v1154
    %1168 = vmatpush.msra.mxu0 %v1153
    %1169 = vmatpush.msra.mxu0 %v1152
    %1170 = vmatpush.msra.mxu0 %v1151
    %1171 = vmatpush.msra.mxu0 %v1150
    %1172 = vmatpush.msra.mxu0 %v1149
    %1173 = vmatpush.msra.mxu0 %v1148
    %1174 = vmatpush.msra.mxu0 %v1147
    %1175 = vmatpush.msra.mxu0 %v1146
    %1176 = vmatpush.msra.mxu0 %v1145
    %1177 = vmatmul.f32.gmra.mxu0 %v1144
    %v1178 = vpop.f32.mrf.mxu0
    %v1179 = vadd.f32 0.0, %v1178
    %1180 = vdwg.mxu0
    %v1181 = vmul.f32 %v1179, 0.0078125
    %v1182 = vld [vmem:[#allocation9] sm:$0xff]
    %v1183 = vld [vmem:[#allocation9 + $0x8] sm:$0xff]
    %vm1184 = vcmask 130048
    %v1186 = vsel %vm1184, %v1181, 0
    %1188 = vmatpush.msra.mxu0 0.0
    %1189 = vmatpush.msra.mxu0 0.0
    %1190 = vmatpush.msra.mxu0 0.0
    %1191 = vmatpush.msra.mxu0 0.0
    %1192 = vmatpush.msra.mxu0 0.0
    %1193 = vmatpush.msra.mxu0 0.0
    %1194 = vmatpush.msra.mxu0 0.0
    %1195 = vmatpush.msra.mxu0 0.0
    %1196 = vmatpush.msra.mxu0 0.0
    %1197 = vmatpush.msra.mxu0 0.0
    %1198 = vmatpush.msra.mxu0 0.0
    %1199 = vmatpush.msra.mxu0 0.0
    %1200 = vmatpush.msra.mxu0 0.0
    %1201 = vmatpush.msra.mxu0 0.0
    %1202 = vmatpush.msra.mxu0 %v1183
    %1203 = vmatpush.msra.mxu0 %v1182
    %1204 = vmatmul.f32.gmra.mxu0 %v1186
    %v1205 = vpop.f32.mrf.mxu0
    %v1206 = vadd.f32 0.0, %v1205
    %1207 = vdwg.mxu0
    %v1208 = vperm.slane %v1206, 0
    %v1209 = vsub.f32 %v1133, %v1208
    %v1210 = vsub.f32 %v1136, %v1208
    %v1211 = vmul.f32 %v1209, %v1209
    %v1212 = vmul.f32 %v1210, %v1210
    %v1213 = vadd.f32 %v1211, %v1212
    %v1214 = vrot.slane %v1213, 4
    %v1215 = vadd.f32 %v1213, %v1214
    %v1216 = vrot.slane %v1215, 2
    %v1217 = vadd.f32 %v1215, %v1216
    %v1218 = vrot.slane %v1217, 1
    %v1219 = vadd.f32 %v1217, %v1218
    %1220 = vmatpush.msra.mxu0 %v1160
    %1221 = vmatpush.msra.mxu0 %v1159
    %1222 = vmatpush.msra.mxu0 %v1158
    %1223 = vmatpush.msra.mxu0 %v1157
    %1224 = vmatpush.msra.mxu0 %v1156
    %1225 = vmatpush.msra.mxu0 %v1155
    %1226 = vmatpush.msra.mxu0 %v1154
    %1227 = vmatpush.msra.mxu0 %v1153
    %1228 = vmatpush.msra.mxu0 %v1152
    %1229 = vmatpush.msra.mxu0 %v1151
    %1230 = vmatpush.msra.mxu0 %v1150
    %1231 = vmatpush.msra.mxu0 %v1149
    %1232 = vmatpush.msra.mxu0 %v1148
    %1233 = vmatpush.msra.mxu0 %v1147
    %1234 = vmatpush.msra.mxu0 %v1146
    %1235 = vmatpush.msra.mxu0 %v1145
    %1236 = vmatmul.f32.gmra.mxu0 %v1219
    %v1237 = vpop.f32.mrf.mxu0
    %v1238 = vadd.f32 0.0, %v1237
    %1239 = vdwg.mxu0
    %v1240 = vmul.f32 %v1238, 0.0078125
    %v1241 = vld [vmem:[%s6] sm:$0x1]
    %v1243 = vsel %vm1184, %v1240, 0
    %1245 = vmatpush.msra.mxu0 0.0
    %1246 = vmatpush.msra.mxu0 0.0
    %1247 = vmatpush.msra.mxu0 0.0
    %1248 = vmatpush.msra.mxu0 0.0
    %1249 = vmatpush.msra.mxu0 0.0
    %1250 = vmatpush.msra.mxu0 0.0
    %1251 = vmatpush.msra.mxu0 0.0
    %1252 = vmatpush.msra.mxu0 0.0
    %1253 = vmatpush.msra.mxu0 0.0
    %1254 = vmatpush.msra.mxu0 0.0
    %1255 = vmatpush.msra.mxu0 0.0
    %1256 = vmatpush.msra.mxu0 0.0
    %1257 = vmatpush.msra.mxu0 0.0
    %1258 = vmatpush.msra.mxu0 0.0
    %1259 = vmatpush.msra.mxu0 %v1183
    %1260 = vmatpush.msra.mxu0 %v1182
    %1261 = vmatmul.f32.gmra.mxu0 %v1243
    %v1262 = vpop.f32.mrf.mxu0
    %v1263 = vadd.f32 1e-05, %v1262
    %1264 = vdwg.mxu0
    %v1265 = vrsqrt.pop %v1263
    %v1266 = vmul.f32 %v1265, %v1263
    %v1267 = vmul.f32 %v1266, %v1265
    %v1268 = vmul.f32 0.5, %v1267
    %v1269 = vsub.f32 1.5, %v1268
    %v1270 = vmul.f32 %v1265, %v1269
    %vm1271 = vweird.f32 %v1263
    %vm1272 = vweird.f32 %v1265
    %vm1273 = vmor %vm1271, %vm1272
    %v1274 = vsel %vm1273, %v1265, %v1270
    %v1275 = vmul.f32 %v1241, %v1274
    %v1276 = vld [vmem:[%s7] sm:$0x1]
    %v1277 = vmul.f32 %v1206, %v1275
    %v1278 = vsub.f32 %v1276, %v1277
    %v1280 = vperm.slane %v1275, 0
    %v1282 = vmul.f32 %v1133, %v1280
    %v1283 = vmul.f32 %v1136, %v1280
    %v1285 = vperm.slane %v1278, 0
    %v1287 = vadd.f32 %v1282, %v1285
    %v1288 = vadd.f32 %v1283, %v1285
    %vm1289 = vcmp.gt.f32.partialorder %v1287, 0.0
    %vm1290 = vcmp.gt.f32.partialorder %v1288, 0.0
    %v1291 = vmul.f32 %v1287, 0.2
    %v1292 = vmul.f32 %v1288, 0.2
    %v1293 = vsel %vm1289, %v1287, %v1291
    %v1294 = vsel %vm1290, %v1288, %v1292
    %1295 = vst [vmem:[#allocation4 + $0x8] sm:$0x3] %v1293
    %v1297 = vrot.slane %v1293, 2
    %1299 = vst [vmem:[#allocation4 + $0x10] sm:$0x3] %v1297
    %v1300 = vrot.slane %v1293, 4
    %1302 = vst [vmem:[#allocation4 + $0x18] sm:$0x3] %v1300
    %1303 = vst [vmem:[#allocation4] sm:$0xc] %v1293
    %1304 = vst [vmem:[#allocation4 + $0x8] sm:$0xc] %v1297
    %1305 = vst [vmem:[#allocation4 + $0x10] sm:$0xc] %v1300
    %v1307 = vrot.slane %v1294, 6
    %1309 = vst [vmem:[#allocation4 + $0x18] sm:$0xc] %v1307
    %1310 = vst [vmem:[#allocation4] sm:$0x30] %v1297
    %v1311 = vrot.slane %v1294, 4
    %1313 = vst [vmem:[#allocation4 + $0x8] sm:$0x30] %v1311
    %1314 = vst [vmem:[#allocation4 + $0x10] sm:$0x30] %v1307
    %1315 = vst [vmem:[#allocation4 + $0x18] sm:$0x30] %v1294
    %1316 = vst [vmem:[#allocation4] sm:$0xc0] %v1311
    %1317 = vst [vmem:[#allocation4 + $0x8] sm:$0xc0] %v1307
    %1318 = vst [vmem:[#allocation4 + $0x10] sm:$0xc0] %v1294
    %v1319 = vld [vmem:[#allocation4] sm:$0xff]
    %v1320 = vld [vmem:[#allocation4 + $0x8] sm:$0xff]
    %v1321 = vld [vmem:[#allocation4 + $0x10] sm:$0xff]
    %v1322 = vld [vmem:[#allocation4 + $0x18] sm:$0xff]
    %v1323 = vld [vmem:[#allocation11] sm:$0xff]
    %v1324 = vld [vmem:[#allocation11 + $0x8] sm:$0xff]
    %v1325 = vld [vmem:[#allocation11 + $0x10] sm:$0xff]
    %v1326 = vld [vmem:[#allocation11 + $0x18] sm:$0xff]
    %v1327 = vld [vmem:[#allocation11 + $0x20] sm:$0xff]
    %v1328 = vld [vmem:[#allocation11 + $0x28] sm:$0xff]
    %v1329 = vld [vmem:[#allocation11 + $0x30] sm:$0xff]
    %v1330 = vld [vmem:[#allocation11 + $0x38] sm:$0xff]
    %v1331 = vld [vmem:[#allocation11 + $0x40] sm:$0xff]
    %v1332 = vld [vmem:[#allocation11 + $0x48] sm:$0xff]
    %v1333 = vld [vmem:[#allocation11 + $0x50] sm:$0xff]
    %v1334 = vld [vmem:[#allocation11 + $0x58] sm:$0xff]
    %v1335 = vld [vmem:[#allocation11 + $0x60] sm:$0xff]
    %v1336 = vld [vmem:[#allocation11 + $0x68] sm:$0xff]
    %v1337 = vld [vmem:[#allocation11 + $0x70] sm:$0xff]
    %v1338 = vld [vmem:[#allocation11 + $0x78] sm:$0xff]
    %v1339 = vld [vmem:[#allocation11 + $0x80] sm:$0xff]
    %v1340 = vld [vmem:[#allocation11 + $0x88] sm:$0xff]
    %v1341 = vld [vmem:[#allocation11 + $0x90] sm:$0xff]
    %v1342 = vld [vmem:[#allocation11 + $0x98] sm:$0xff]
    %v1343 = vld [vmem:[#allocation11 + $0xa0] sm:$0xff]
    %v1344 = vld [vmem:[#allocation11 + $0xa8] sm:$0xff]
    %v1345 = vld [vmem:[#allocation11 + $0xb0] sm:$0xff]
    %v1346 = vld [vmem:[#allocation11 + $0xb8] sm:$0xff]
    %v1347 = vld [vmem:[#allocation11 + $0xc0] sm:$0xff]
    %v1348 = vld [vmem:[#allocation11 + $0xc8] sm:$0xff]
    %v1349 = vld [vmem:[#allocation11 + $0xd0] sm:$0xff]
    %v1350 = vld [vmem:[#allocation11 + $0xd8] sm:$0xff]
    %v1351 = vld [vmem:[#allocation11 + $0xe0] sm:$0xff]
    %v1352 = vld [vmem:[#allocation11 + $0xe8] sm:$0xff]
    %v1353 = vld [vmem:[#allocation11 + $0xf0] sm:$0xff]
    %v1354 = vld [vmem:[#allocation11 + $0xf8] sm:$0xff]
    %v1355 = vld [vmem:[#allocation11 + $0x100] sm:$0xff]
    %v1356 = vld [vmem:[#allocation11 + $0x108] sm:$0xff]
    %v1357 = vld [vmem:[#allocation11 + $0x110] sm:$0xff]
    %v1358 = vld [vmem:[#allocation11 + $0x118] sm:$0xff]
    %v1359 = vld [vmem:[#allocation11 + $0x120] sm:$0xff]
    %v1360 = vld [vmem:[#allocation11 + $0x128] sm:$0xff]
    %v1361 = vld [vmem:[#allocation11 + $0x130] sm:$0xff]
    %v1362 = vld [vmem:[#allocation11 + $0x138] sm:$0xff]
    %v1363 = vld [vmem:[#allocation11 + $0x140] sm:$0xff]
    %v1364 = vld [vmem:[#allocation11 + $0x148] sm:$0xff]
    %v1365 = vld [vmem:[#allocation11 + $0x150] sm:$0xff]
    %v1366 = vld [vmem:[#allocation11 + $0x158] sm:$0xff]
    %v1367 = vld [vmem:[#allocation11 + $0x160] sm:$0xff]
    %v1368 = vld [vmem:[#allocation11 + $0x168] sm:$0xff]
    %v1369 = vld [vmem:[#allocation11 + $0x170] sm:$0xff]
    %v1370 = vld [vmem:[#allocation11 + $0x178] sm:$0xff]
    %v1371 = vld [vmem:[#allocation11 + $0x180] sm:$0xff]
    %v1372 = vld [vmem:[#allocation11 + $0x188] sm:$0xff]
    %v1373 = vld [vmem:[#allocation11 + $0x190] sm:$0xff]
    %v1374 = vld [vmem:[#allocation11 + $0x198] sm:$0xff]
    %v1375 = vld [vmem:[#allocation11 + $0x1a0] sm:$0xff]
    %v1376 = vld [vmem:[#allocation11 + $0x1a8] sm:$0xff]
    %v1377 = vld [vmem:[#allocation11 + $0x1b0] sm:$0xff]
    %v1378 = vld [vmem:[#allocation11 + $0x1b8] sm:$0xff]
    %v1379 = vld [vmem:[#allocation11 + $0x1c0] sm:$0xff]
    %v1380 = vld [vmem:[#allocation11 + $0x1c8] sm:$0xff]
    %v1381 = vld [vmem:[#allocation11 + $0x1d0] sm:$0xff]
    %v1382 = vld [vmem:[#allocation11 + $0x1d8] sm:$0xff]
    %v1383 = vld [vmem:[#allocation11 + $0x1e0] sm:$0xff]
    %v1384 = vld [vmem:[#allocation11 + $0x1e8] sm:$0xff]
    %v1385 = vld [vmem:[#allocation11 + $0x1f0] sm:$0xff]
    %v1386 = vld [vmem:[#allocation11 + $0x1f8] sm:$0xff]
    %1387 = vmatpush.msra.mxu0 %v1338
    %1388 = vmatpush.msra.mxu0 %v1337
    %1389 = vmatpush.msra.mxu0 %v1336
    %1390 = vmatpush.msra.mxu0 %v1335
    %1391 = vmatpush.msra.mxu0 %v1334
    %1392 = vmatpush.msra.mxu0 %v1333
    %1393 = vmatpush.msra.mxu0 %v1332
    %1394 = vmatpush.msra.mxu0 %v1331
    %1395 = vmatpush.msra.mxu0 %v1330
    %1396 = vmatpush.msra.mxu0 %v1329
    %1397 = vmatpush.msra.mxu0 %v1328
    %1398 = vmatpush.msra.mxu0 %v1327
    %1399 = vmatpush.msra.mxu0 %v1326
    %1400 = vmatpush.msra.mxu0 %v1325
    %1401 = vmatpush.msra.mxu0 %v1324
    %1402 = vmatpush.msra.mxu0 %v1323
    %1403 = vmatmul.f32.gmra.mxu0 %v1319
    %v1404 = vpop.f32.mrf.mxu0
    %v1405 = vadd.f32 0.0, %v1404
    %1406 = vdwg.mxu0
    %1407 = vmatpush.msra.mxu0 %v1354
    %1408 = vmatpush.msra.mxu0 %v1353
    %1409 = vmatpush.msra.mxu0 %v1352
    %1410 = vmatpush.msra.mxu0 %v1351
    %1411 = vmatpush.msra.mxu0 %v1350
    %1412 = vmatpush.msra.mxu0 %v1349
    %1413 = vmatpush.msra.mxu0 %v1348
    %1414 = vmatpush.msra.mxu0 %v1347
    %1415 = vmatpush.msra.mxu0 %v1346
    %1416 = vmatpush.msra.mxu0 %v1345
    %1417 = vmatpush.msra.mxu0 %v1344
    %1418 = vmatpush.msra.mxu0 %v1343
    %1419 = vmatpush.msra.mxu0 %v1342
    %1420 = vmatpush.msra.mxu0 %v1341
    %1421 = vmatpush.msra.mxu0 %v1340
    %1422 = vmatpush.msra.mxu0 %v1339
    %1423 = vmatmul.f32.gmra.mxu0 %v1320
    %v1424 = vpop.f32.mrf.mxu0
    %v1425 = vadd.f32 %v1405, %v1424
    %1426 = vdwg.mxu0
    %1427 = vmatpush.msra.mxu0 %v1370
    %1428 = vmatpush.msra.mxu0 %v1369
    %1429 = vmatpush.msra.mxu0 %v1368
    %1430 = vmatpush.msra.mxu0 %v1367
    %1431 = vmatpush.msra.mxu0 %v1366
    %1432 = vmatpush.msra.mxu0 %v1365
    %1433 = vmatpush.msra.mxu0 %v1364
    %1434 = vmatpush.msra.mxu0 %v1363
    %1435 = vmatpush.msra.mxu0 %v1362
    %1436 = vmatpush.msra.mxu0 %v1361
    %1437 = vmatpush.msra.mxu0 %v1360
    %1438 = vmatpush.msra.mxu0 %v1359
    %1439 = vmatpush.msra.mxu0 %v1358
    %1440 = vmatpush.msra.mxu0 %v1357
    %1441 = vmatpush.msra.mxu0 %v1356
    %1442 = vmatpush.msra.mxu0 %v1355
    %1443 = vmatmul.f32.gmra.mxu0 %v1321
    %v1444 = vpop.f32.mrf.mxu0
    %v1445 = vadd.f32 %v1425, %v1444
    %1446 = vdwg.mxu0
    %1447 = vmatpush.msra.mxu0 %v1386
    %1448 = vmatpush.msra.mxu0 %v1385
    %1449 = vmatpush.msra.mxu0 %v1384
    %1450 = vmatpush.msra.mxu0 %v1383
    %1451 = vmatpush.msra.mxu0 %v1382
    %1452 = vmatpush.msra.mxu0 %v1381
    %1453 = vmatpush.msra.mxu0 %v1380
    %1454 = vmatpush.msra.mxu0 %v1379
    %1455 = vmatpush.msra.mxu0 %v1378
    %1456 = vmatpush.msra.mxu0 %v1377
    %1457 = vmatpush.msra.mxu0 %v1376
    %1458 = vmatpush.msra.mxu0 %v1375
    %1459 = vmatpush.msra.mxu0 %v1374
    %1460 = vmatpush.msra.mxu0 %v1373
    %1461 = vmatpush.msra.mxu0 %v1372
    %1462 = vmatpush.msra.mxu0 %v1371
    %1463 = vmatmul.f32.gmra.mxu0 %v1322
    %v1464 = vpop.f32.mrf.mxu0
    %v1465 = vadd.f32 %v1445, %v1464
    %1466 = vdwg.mxu0
    %v1467 = vrot.slane %v1465, 4
    %v1468 = vadd.f32 %v1465, %v1467
    %v1469 = vrot.slane %v1468, 2
    %v1470 = vadd.f32 %v1468, %v1469
    %v1471 = vrot.slane %v1470, 1
    %v1472 = vadd.f32 %v1470, %v1471
    %v1473 = vld [vmem:[%s9] sm:$0xff]
    %v1474 = vld [vmem:[%s9 + $0x8] sm:$0xff]
    %v1475 = vld [vmem:[%s9 + $0x10] sm:$0xff]
    %v1476 = vld [vmem:[%s9 + $0x18] sm:$0xff]
    %v1477 = vld [vmem:[%s9 + $0x20] sm:$0xff]
    %v1478 = vld [vmem:[%s9 + $0x28] sm:$0xff]
    %v1479 = vld [vmem:[%s9 + $0x30] sm:$0xff]
    %v1480 = vld [vmem:[%s9 + $0x38] sm:$0xff]
    %v1481 = vld [vmem:[%s9 + $0x40] sm:$0xff]
    %v1482 = vld [vmem:[%s9 + $0x48] sm:$0xff]
    %v1483 = vld [vmem:[%s9 + $0x50] sm:$0xff]
    %v1484 = vld [vmem:[%s9 + $0x58] sm:$0xff]
    %v1485 = vld [vmem:[%s9 + $0x60] sm:$0xff]
    %v1486 = vld [vmem:[%s9 + $0x68] sm:$0xff]
    %v1487 = vld [vmem:[%s9 + $0x70] sm:$0xff]
    %v1488 = vld [vmem:[%s9 + $0x78] sm:$0xff]
    %1489 = vmatpush.msra.mxu0 %v1488
    %1490 = vmatpush.msra.mxu0 %v1487
    %1491 = vmatpush.msra.mxu0 %v1486
    %1492 = vmatpush.msra.mxu0 %v1485
    %1493 = vmatpush.msra.mxu0 %v1484
    %1494 = vmatpush.msra.mxu0 %v1483
    %1495 = vmatpush.msra.mxu0 %v1482
    %1496 = vmatpush.msra.mxu0 %v1481
    %1497 = vmatpush.msra.mxu0 %v1480
    %1498 = vmatpush.msra.mxu0 %v1479
    %1499 = vmatpush.msra.mxu0 %v1478
    %1500 = vmatpush.msra.mxu0 %v1477
    %1501 = vmatpush.msra.mxu0 %v1476
    %1502 = vmatpush.msra.mxu0 %v1475
    %1503 = vmatpush.msra.mxu0 %v1474
    %1504 = vmatpush.msra.mxu0 %v1473
    %1505 = vmatmul.f32.gmra.mxu0 %v1472
    %v1506 = vpop.f32.mrf.mxu0
    %v1507 = vadd.f32 0.0, %v1506
    %1508 = vdwg.mxu0
    %v1509 = vmul.f32 %v1507, 0.03125
    %v1510 = vld [vmem:[%s10] sm:$0xff]
    %v1511 = vld [vmem:[%s10 + $0x8] sm:$0xff]
    %v1512 = vld [vmem:[%s10 + $0x10] sm:$0xff]
    %v1513 = vld [vmem:[%s10 + $0x18] sm:$0xff]
    %vm1514 = vcmask 261120
    %v1516 = vsel %vm1514, %v1509, 0
    %1518 = vmatpush.msra.mxu0 0.0
    %1519 = vmatpush.msra.mxu0 0.0
    %1520 = vmatpush.msra.mxu0 0.0
    %1521 = vmatpush.msra.mxu0 0.0
    %1522 = vmatpush.msra.mxu0 0.0
    %1523 = vmatpush.msra.mxu0 0.0
    %1524 = vmatpush.msra.mxu0 0.0
    %1525 = vmatpush.msra.mxu0 0.0
    %1526 = vmatpush.msra.mxu0 0.0
    %1527 = vmatpush.msra.mxu0 0.0
    %1528 = vmatpush.msra.mxu0 0.0
    %1529 = vmatpush.msra.mxu0 0.0
    %1530 = vmatpush.msra.mxu0 %v1513
    %1531 = vmatpush.msra.mxu0 %v1512
    %1532 = vmatpush.msra.mxu0 %v1511
    %1533 = vmatpush.msra.mxu0 %v1510
    %1534 = vmatmul.f32.gmra.mxu0 %v1516
    %v1535 = vpop.f32.mrf.mxu0
    %v1536 = vadd.f32 0.0, %v1535
    %1537 = vdwg.mxu0
    %v1538 = vperm.slane %v1536, 0
    %v1539 = vsub.f32 %v1465, %v1538
    %v1540 = vmul.f32 %v1539, %v1539
    %v1541 = vrot.slane %v1540, 4
    %v1542 = vadd.f32 %v1540, %v1541
    %v1543 = vrot.slane %v1542, 2
    %v1544 = vadd.f32 %v1542, %v1543
    %v1545 = vrot.slane %v1544, 1
    %v1546 = vadd.f32 %v1544, %v1545
    %1547 = vmatpush.msra.mxu0 %v1488
    %1548 = vmatpush.msra.mxu0 %v1487
    %1549 = vmatpush.msra.mxu0 %v1486
    %1550 = vmatpush.msra.mxu0 %v1485
    %1551 = vmatpush.msra.mxu0 %v1484
    %1552 = vmatpush.msra.mxu0 %v1483
    %1553 = vmatpush.msra.mxu0 %v1482
    %1554 = vmatpush.msra.mxu0 %v1481
    %1555 = vmatpush.msra.mxu0 %v1480
    %1556 = vmatpush.msra.mxu0 %v1479
    %1557 = vmatpush.msra.mxu0 %v1478
    %1558 = vmatpush.msra.mxu0 %v1477
    %1559 = vmatpush.msra.mxu0 %v1476
    %1560 = vmatpush.msra.mxu0 %v1475
    %1561 = vmatpush.msra.mxu0 %v1474
    %1562 = vmatpush.msra.mxu0 %v1473
    %1563 = vmatmul.f32.gmra.mxu0 %v1546
    %v1564 = vpop.f32.mrf.mxu0
    %v1565 = vadd.f32 0.0, %v1564
    %1566 = vdwg.mxu0
    %v1567 = vmul.f32 %v1565, 0.03125
    %v1568 = vld [vmem:[%s11] sm:$0x1]
    %v1570 = vsel %vm1514, %v1567, 0
    %1572 = vmatpush.msra.mxu0 0.0
    %1573 = vmatpush.msra.mxu0 0.0
    %1574 = vmatpush.msra.mxu0 0.0
    %1575 = vmatpush.msra.mxu0 0.0
    %1576 = vmatpush.msra.mxu0 0.0
    %1577 = vmatpush.msra.mxu0 0.0
    %1578 = vmatpush.msra.mxu0 0.0
    %1579 = vmatpush.msra.mxu0 0.0
    %1580 = vmatpush.msra.mxu0 0.0
    %1581 = vmatpush.msra.mxu0 0.0
    %1582 = vmatpush.msra.mxu0 0.0
    %1583 = vmatpush.msra.mxu0 0.0
    %1584 = vmatpush.msra.mxu0 %v1513
    %1585 = vmatpush.msra.mxu0 %v1512
    %1586 = vmatpush.msra.mxu0 %v1511
    %1587 = vmatpush.msra.mxu0 %v1510
    %1588 = vmatmul.f32.gmra.mxu0 %v1570
    %v1589 = vpop.f32.mrf.mxu0
    %v1590 = vadd.f32 1e-05, %v1589
    %1591 = vdwg.mxu0
    %v1592 = vrsqrt.pop %v1590
    %v1593 = vmul.f32 %v1592, %v1590
    %v1594 = vmul.f32 %v1593, %v1592
    %v1595 = vmul.f32 0.5, %v1594
    %v1596 = vsub.f32 1.5, %v1595
    %v1597 = vmul.f32 %v1592, %v1596
    %vm1598 = vweird.f32 %v1590
    %vm1599 = vweird.f32 %v1592
    %vm1600 = vmor %vm1598, %vm1599
    %v1601 = vsel %vm1600, %v1592, %v1597
    %v1602 = vmul.f32 %v1568, %v1601
    %v1603 = vld [vmem:[%s12] sm:$0x1]
    %v1604 = vmul.f32 %v1536, %v1602
    %v1605 = vsub.f32 %v1603, %v1604
    %v1607 = vperm.slane %v1602, 0
    %v1609 = vmul.f32 %v1465, %v1607
    %v1611 = vperm.slane %v1605, 0
    %v1613 = vadd.f32 %v1609, %v1611
    %vm1614 = vcmp.gt.f32.partialorder %v1613, 0.0
    %v1615 = vmul.f32 %v1613, 0.2
    %v1616 = vsel %vm1614, %v1613, %v1615
    %1617 = vst [vmem:[#allocation5] sm:$0x3] %v1616
    %1619 = vst.sshfl [vmem:[#allocation1] sm:$0xff pattern:$0x73625140] %v1616
    %s1620 = scalar_lea.vmem [#allocation1], 1
    %v1621 = vld [vmem:[%s1620] ss:$4 sm:$0xff]
    %1623 = vst [vmem:[#allocation5 + $0x2] sm:$0x3] %v1621
    %1624 = vst.sshfl [vmem:[#allocation1] sm:$0xff pattern:$0x73625140] %v1616
    %s1625 = scalar_lea.vmem [#allocation1], 2
    %v1626 = vld [vmem:[%s1625] ss:$4 sm:$0xff]
    %1628 = vst [vmem:[#allocation5 + $0x4] sm:$0x3] %v1626
    %1629 = vst.sshfl [vmem:[#allocation1] sm:$0xff pattern:$0x73625140] %v1616
    %s1630 = scalar_lea.vmem [#allocation1], 3
    %v1631 = vld [vmem:[%s1630] ss:$4 sm:$0xff]
    %1633 = vst [vmem:[#allocation5 + $0x6] sm:$0x3] %v1631
    %v1634 = vld [vmem:[#allocation5] sm:$0xff]
    %v1635 = vld [vmem:[#allocation12] sm:$0xff]
    %v1636 = vld [vmem:[#allocation12 + $0x8] sm:$0xff]
    %v1637 = vld [vmem:[#allocation12 + $0x10] sm:$0xff]
    %v1638 = vld [vmem:[#allocation12 + $0x18] sm:$0xff]
    %v1639 = vld [vmem:[#allocation12 + $0x20] sm:$0xff]
    %v1640 = vld [vmem:[#allocation12 + $0x28] sm:$0xff]
    %v1641 = vld [vmem:[#allocation12 + $0x30] sm:$0xff]
    %v1642 = vld [vmem:[#allocation12 + $0x38] sm:$0xff]
    %v1643 = vld [vmem:[#allocation12 + $0x40] sm:$0xff]
    %v1644 = vld [vmem:[#allocation12 + $0x48] sm:$0xff]
    %v1645 = vld [vmem:[#allocation12 + $0x50] sm:$0xff]
    %v1646 = vld [vmem:[#allocation12 + $0x58] sm:$0xff]
    %v1647 = vld [vmem:[#allocation12 + $0x60] sm:$0xff]
    %v1648 = vld [vmem:[#allocation12 + $0x68] sm:$0xff]
    %v1649 = vld [vmem:[#allocation12 + $0x70] sm:$0xff]
    %v1650 = vld [vmem:[#allocation12 + $0x78] sm:$0xff]
    %v1651 = vld [vmem:[#allocation12 + $0x80] sm:$0xff]
    %v1652 = vld [vmem:[#allocation12 + $0x88] sm:$0xff]
    %v1653 = vld [vmem:[#allocation12 + $0x90] sm:$0xff]
    %v1654 = vld [vmem:[#allocation12 + $0x98] sm:$0xff]
    %v1655 = vld [vmem:[#allocation12 + $0xa0] sm:$0xff]
    %v1656 = vld [vmem:[#allocation12 + $0xa8] sm:$0xff]
    %v1657 = vld [vmem:[#allocation12 + $0xb0] sm:$0xff]
    %v1658 = vld [vmem:[#allocation12 + $0xb8] sm:$0xff]
    %v1659 = vld [vmem:[#allocation12 + $0xc0] sm:$0xff]
    %v1660 = vld [vmem:[#allocation12 + $0xc8] sm:$0xff]
    %v1661 = vld [vmem:[#allocation12 + $0xd0] sm:$0xff]
    %v1662 = vld [vmem:[#allocation12 + $0xd8] sm:$0xff]
    %v1663 = vld [vmem:[#allocation12 + $0xe0] sm:$0xff]
    %v1664 = vld [vmem:[#allocation12 + $0xe8] sm:$0xff]
    %v1665 = vld [vmem:[#allocation12 + $0xf0] sm:$0xff]
    %v1666 = vld [vmem:[#allocation12 + $0xf8] sm:$0xff]
    %v1667 = vld [vmem:[#allocation12 + $0x100] sm:$0xff]
    %v1668 = vld [vmem:[#allocation12 + $0x108] sm:$0xff]
    %v1669 = vld [vmem:[#allocation12 + $0x110] sm:$0xff]
    %v1670 = vld [vmem:[#allocation12 + $0x118] sm:$0xff]
    %v1671 = vld [vmem:[#allocation12 + $0x120] sm:$0xff]
    %v1672 = vld [vmem:[#allocation12 + $0x128] sm:$0xff]
    %v1673 = vld [vmem:[#allocation12 + $0x130] sm:$0xff]
    %v1674 = vld [vmem:[#allocation12 + $0x138] sm:$0xff]
    %v1675 = vld [vmem:[#allocation12 + $0x140] sm:$0xff]
    %v1676 = vld [vmem:[#allocation12 + $0x148] sm:$0xff]
    %v1677 = vld [vmem:[#allocation12 + $0x150] sm:$0xff]
    %v1678 = vld [vmem:[#allocation12 + $0x158] sm:$0xff]
    %v1679 = vld [vmem:[#allocation12 + $0x160] sm:$0xff]
    %v1680 = vld [vmem:[#allocation12 + $0x168] sm:$0xff]
    %v1681 = vld [vmem:[#allocation12 + $0x170] sm:$0xff]
    %v1682 = vld [vmem:[#allocation12 + $0x178] sm:$0xff]
    %v1683 = vld [vmem:[#allocation12 + $0x180] sm:$0xff]
    %v1684 = vld [vmem:[#allocation12 + $0x188] sm:$0xff]
    %v1685 = vld [vmem:[#allocation12 + $0x190] sm:$0xff]
    %v1686 = vld [vmem:[#allocation12 + $0x198] sm:$0xff]
    %v1687 = vld [vmem:[#allocation12 + $0x1a0] sm:$0xff]
    %v1688 = vld [vmem:[#allocation12 + $0x1a8] sm:$0xff]
    %v1689 = vld [vmem:[#allocation12 + $0x1b0] sm:$0xff]
    %v1690 = vld [vmem:[#allocation12 + $0x1b8] sm:$0xff]
    %v1691 = vld [vmem:[#allocation12 + $0x1c0] sm:$0xff]
    %v1692 = vld [vmem:[#allocation12 + $0x1c8] sm:$0xff]
    %v1693 = vld [vmem:[#allocation12 + $0x1d0] sm:$0xff]
    %v1694 = vld [vmem:[#allocation12 + $0x1d8] sm:$0xff]
    %v1695 = vld [vmem:[#allocation12 + $0x1e0] sm:$0xff]
    %v1696 = vld [vmem:[#allocation12 + $0x1e8] sm:$0xff]
    %v1697 = vld [vmem:[#allocation12 + $0x1f0] sm:$0xff]
    %v1698 = vld [vmem:[#allocation12 + $0x1f8] sm:$0xff]
    %v1699 = vld [vmem:[#allocation6] sm:$0x1]
    %v1701 = vperm.slane %v1699, 0
    %1704 = vst [vmem:[#allocation1] ss:$4 sm:$0xff] %v1634
    %v1705 = vld.sshfl [vmem:[#allocation1] sm:$0xff pattern:$0x73625140]
    %v1706 = vld.sshfl [vmem:[#allocation1 + $0x8] sm:$0xff pattern:$0x73625140]
    %v1707 = vld.sshfl [vmem:[#allocation1 + $0x10] sm:$0xff pattern:$0x73625140]
    %v1708 = vld.sshfl [vmem:[#allocation1 + $0x18] sm:$0xff pattern:$0x73625140]
    %1713 = vmatpush.msra.mxu0 %v1650
    %1714 = vmatpush.msra.mxu0 %v1649
    %1715 = vmatpush.msra.mxu0 %v1648
    %1716 = vmatpush.msra.mxu0 %v1647
    %1717 = vmatpush.msra.mxu0 %v1646
    %1718 = vmatpush.msra.mxu0 %v1645
    %1719 = vmatpush.msra.mxu0 %v1644
    %1720 = vmatpush.msra.mxu0 %v1643
    %1721 = vmatpush.msra.mxu0 %v1642
    %1722 = vmatpush.msra.mxu0 %v1641
    %1723 = vmatpush.msra.mxu0 %v1640
    %1724 = vmatpush.msra.mxu0 %v1639
    %1725 = vmatpush.msra.mxu0 %v1638
    %1726 = vmatpush.msra.mxu0 %v1637
    %1727 = vmatpush.msra.mxu0 %v1636
    %1728 = vmatpush.msra.mxu0 %v1635
    %1729 = vmatmul.f32.gmra.mxu0 %v1705
    %v1730 = vpop.f32.mrf.mxu0
    %v1731 = vadd.f32 %v1701, %v1730
    %1732 = vdwg.mxu0
    %1733 = vmatpush.msra.mxu0 %v1666
    %1734 = vmatpush.msra.mxu0 %v1665
    %1735 = vmatpush.msra.mxu0 %v1664
    %1736 = vmatpush.msra.mxu0 %v1663
    %1737 = vmatpush.msra.mxu0 %v1662
    %1738 = vmatpush.msra.mxu0 %v1661
    %1739 = vmatpush.msra.mxu0 %v1660
    %1740 = vmatpush.msra.mxu0 %v1659
    %1741 = vmatpush.msra.mxu0 %v1658
    %1742 = vmatpush.msra.mxu0 %v1657
    %1743 = vmatpush.msra.mxu0 %v1656
    %1744 = vmatpush.msra.mxu0 %v1655
    %1745 = vmatpush.msra.mxu0 %v1654
    %1746 = vmatpush.msra.mxu0 %v1653
    %1747 = vmatpush.msra.mxu0 %v1652
    %1748 = vmatpush.msra.mxu0 %v1651
    %1749 = vmatmul.f32.gmra.mxu0 %v1706
    %v1750 = vpop.f32.mrf.mxu0
    %v1751 = vadd.f32 %v1731, %v1750
    %1752 = vdwg.mxu0
    %1753 = vmatpush.msra.mxu0 %v1682
    %1754 = vmatpush.msra.mxu0 %v1681
    %1755 = vmatpush.msra.mxu0 %v1680
    %1756 = vmatpush.msra.mxu0 %v1679
    %1757 = vmatpush.msra.mxu0 %v1678
    %1758 = vmatpush.msra.mxu0 %v1677
    %1759 = vmatpush.msra.mxu0 %v1676
    %1760 = vmatpush.msra.mxu0 %v1675
    %1761 = vmatpush.msra.mxu0 %v1674
    %1762 = vmatpush.msra.mxu0 %v1673
    %1763 = vmatpush.msra.mxu0 %v1672
    %1764 = vmatpush.msra.mxu0 %v1671
    %1765 = vmatpush.msra.mxu0 %v1670
    %1766 = vmatpush.msra.mxu0 %v1669
    %1767 = vmatpush.msra.mxu0 %v1668
    %1768 = vmatpush.msra.mxu0 %v1667
    %1769 = vmatmul.f32.gmra.mxu0 %v1707
    %v1770 = vpop.f32.mrf.mxu0
    %v1771 = vadd.f32 %v1751, %v1770
    %1772 = vdwg.mxu0
    %1773 = vmatpush.msra.mxu0 %v1698
    %1774 = vmatpush.msra.mxu0 %v1697
    %1775 = vmatpush.msra.mxu0 %v1696
    %1776 = vmatpush.msra.mxu0 %v1695
    %1777 = vmatpush.msra.mxu0 %v1694
    %1778 = vmatpush.msra.mxu0 %v1693
    %1779 = vmatpush.msra.mxu0 %v1692
    %1780 = vmatpush.msra.mxu0 %v1691
    %1781 = vmatpush.msra.mxu0 %v1690
    %1782 = vmatpush.msra.mxu0 %v1689
    %1783 = vmatpush.msra.mxu0 %v1688
    %1784 = vmatpush.msra.mxu0 %v1687
    %1785 = vmatpush.msra.mxu0 %v1686
    %1786 = vmatpush.msra.mxu0 %v1685
    %1787 = vmatpush.msra.mxu0 %v1684
    %1788 = vmatpush.msra.mxu0 %v1683
    %1789 = vmatmul.f32.gmra.mxu0 %v1708
    %v1790 = vpop.f32.mrf.mxu0
    %v1791 = vadd.f32 %v1771, %v1790
    %1792 = vdwg.mxu0
    %vm1793 = vcmask 1024
    %1794 = vst.msk [vmem:[%s15] sm:$0x3] %vm1793, %v1791
    // Predicated region
    $region78: #{_lambda_.1} parent=1 // pred_check
      _
    $region79: #{_lambda_.1} parent=1 // pred_check_branch
      %1796 = sbr.rel (0) target = $region81
    $region80: #{_lambda_.1} parent=1 // pred_region
      _
    $region81: #{_lambda_.1} parent=1 // pred_fallthru
      _
    // Predicated region
    $region82: #{_lambda_.1} parent=1 // pred_check
      _
    $region83: #{_lambda_.1} parent=1 // pred_check_branch
      %1798 = sbr.rel (0) target = $region85
    $region84: #{_lambda_.1} parent=1 // pred_region
      _
    $region85: #{_lambda_.1} parent=1 // pred_fallthru
      _
    %1799 = vsyncpa [#allocation8], 1
    %1800 = vsyncpa [#allocation10], 1
    %1801 = vsyncpa [#allocation13], 1

</llo_original>
